<compile_context>
chip_gen: v7x
topology: tpu7x:2x2x1
jax: 0.10.0
libtpu: 0.0.40
codegen_flags: <defaults>
</compile_context>

<pallas_src>
import functools

import jax
import jax.numpy as jnp
from jax import lax
from jax.experimental import pallas as pl
from jax.experimental.pallas import tpu as pltpu

N_BLOCKS = 5          # block0..block4 (CResnetBlockConv1d)
BN_EPS = 1e-5


# ----------------------------------------------------------------------------
# Pallas kernel factory: the whole decoder runs in a single invocation with
# every tensor whole-array resident in VMEM, lane-dense at H_pad.
# ----------------------------------------------------------------------------
def _make_kernel(B, T, HP, n_blocks, matmul_dtype):
    BT = B * T
    inv_n = 1.0 / float(BT)

    def mm(x2, w, b):
        # H_pad x H_pad conv1x1 as an MXU matmul on the lane-dense slab.
        # Operands cast to matmul_dtype (bf16 fast path), f32 accumulation.
        return jnp.dot(x2.astype(matmul_dtype), w,
                       preferred_element_type=jnp.float32) + b

    def cbn(x2, gamma, beta):
        # Conditional batch norm on a (BT, HP) slab, f32 throughout.
        # Single-sweep stats (biased variance).  At production BT these sums
        # should move to the MXU (ones-row matmul); at demo scale it's noise.
        s1 = jnp.sum(x2, axis=0, keepdims=True)               # (1, HP)
        s2 = jnp.sum(x2 * x2, axis=0, keepdims=True)          # (1, HP)
        mean = s1 * inv_n
        var = jnp.maximum(s2 * inv_n - mean * mean, 0.0)      # clamp >= 0
        xhat = (x2 - mean) * lax.rsqrt(var + BN_EPS)
        # Per-(batch, channel) affine via the (B, T, HP) view (layout
        # preserving: HP lane-dense, T a multiple of 8).
        y3 = gamma[:, None, :] * xhat.reshape(B, T, HP) + beta[:, None, :]
        return y3.reshape(BT, HP)

    def relu(x):
        return jnp.maximum(x, 0.0)

    def kernel(p_ref, netz_ref, gb_ref,
               fcp_w_ref, fcp_b_ref,
               fc0_w_ref, fc0_b_ref,
               fc1_w_ref, fc1_b_ref,
               fco_w_ref, fco_b_ref,
               out_ref):
        # --- fc_p via VPU broadcast-FMAs (K = dim is tiny; skip the MXU) -----
        p2 = p_ref[...]                                        # (BT, dim)
        fpw = fcp_w_ref[...]                                   # (dim, HP)
        dim = p2.shape[1]
        net = p2[:, 0:1] * fpw[0:1, :]
        for k in range(1, dim):
            net = net + p2[:, k:k + 1] * fpw[k:k + 1, :]
        net = net + fcp_b_ref[...]                             # (1, HP) bias
        # torch: (B,T,H) + fc_z(z).unsqueeze(2) -> one scalar per (b, t) row
        net = net + netz_ref[...]                              # (BT, 1) bcast

        # --- 5 CResnetBlockConv1d blocks, statically unrolled ----------------
        # gb_ref is (22, B, HP); leading-axis indexing is free (no lane shift).
        for i in range(n_blocks):
            h = relu(cbn(net, gb_ref[4 * i + 0], gb_ref[4 * i + 1]))
            h = mm(h, fc0_w_ref[i], fc0_b_ref[i])
            dx = relu(cbn(h, gb_ref[4 * i + 2], gb_ref[4 * i + 3]))
            dx = mm(dx, fc1_w_ref[i], fc1_b_ref[i])
            net = net + dx                                     # identity shortcut

        # --- final CBN + relu + fc_out (lane-dense, bf16 writeback) ----------
        y = relu(cbn(net, gb_ref[4 * n_blocks], gb_ref[4 * n_blocks + 1]))
        out_ref[...] = mm(y, fco_w_ref[...], fco_b_ref[...]).astype(out_ref.dtype)

    return kernel


# ----------------------------------------------------------------------------
# Wrapper
# ----------------------------------------------------------------------------
def _round_up(x, m):
    return ((x + m - 1) // m) * m


@functools.partial(jax.jit, static_argnames=("matmul_dtype",))
def decoder_cbn_forward(p, z, c, prm, matmul_dtype=jnp.bfloat16):
    B, T, dim = p.shape
    H = prm["fcp_w"].shape[1]
    R = prm["fco_w"].shape[1]
    BT = B * T
    HP = max(128, _round_up(H, 128))      # lane-dense hidden width
    RP = max(128, _round_up(R, 128))      # lane-dense output width

    if T != H:
        raise ValueError("original torch broadcast (B,T,H)+(B,H,1) needs T==H")

    # Fast path writes bf16 (halves output HBM traffic); exact path stays f32.
    out_dtype = jnp.float32 if matmul_dtype == jnp.float32 else jnp.bfloat16

    # ---- CBN gamma/beta projections, hoisted entirely into the wrapper ------
    # They depend only on c (tiny matmuls, XLA fuses them).  Zero-pad to HP so
    # padded channels get gamma = beta = 0 -> stay exactly 0 after every CBN.
    def proj(wmat, bias):                                     # -> (B, HP)
        g = jnp.dot(c, wmat) + bias
        return jnp.pad(g, ((0, 0), (0, HP - H)))

    gb_parts = []
    for i in range(N_BLOCKS):
        gb_parts += [proj(prm["bn0_gw"][i], prm["bn0_gb"][i]),
                     proj(prm["bn0_bw"][i], prm["bn0_bb"][i]),
                     proj(prm["bn1_gw"][i], prm["bn1_gb"][i]),
                     proj(prm["bn1_bw"][i], prm["bn1_bb"][i])]
    gb_parts += [proj(prm["bnf_gw"], prm["bnf_gb"]),
                 proj(prm["bnf_bw"], prm["bnf_bb"])]
    gb = jnp.stack(gb_parts, axis=0)                          # (22, B, HP) f32

    # ---- weight packing: zero-pad hidden dim to HP, MXU weights to bf16 -----
    fcp_w = jnp.pad(prm["fcp_w"], ((0, 0), (0, HP - H)))                  # f32
    fcp_b = jnp.pad(prm["fcp_b"], ((0, 0), (0, HP - H)))                  # f32
    fc0_w = jnp.pad(prm["fc0_w"],
                    ((0, 0), (0, HP - H), (0, HP - H))).astype(matmul_dtype)
    fc0_b = jnp.pad(prm["fc0_b"], ((0, 0), (0, 0), (0, HP - H)))
    fc1_w = jnp.pad(prm["fc1_w"],
                    ((0, 0), (0, HP - H), (0, HP - H))).astype(matmul_dtype)
    fc1_b = jnp.pad(prm["fc1_b"], ((0, 0), (0, 0), (0, HP - H)))
    fco_w = jnp.pad(prm["fco_w"],
                    ((0, HP - H), (0, RP - R))).astype(matmul_dtype)
    fco_b = jnp.pad(prm["fco_b"], ((0, 0), (0, RP - R)))

    # fc_z depends only on z: compute it once here (f32) and reshape to one
    # scalar per (b, t) row -- reproduces torch's (B,T,H)+(B,H,1) broadcast.
    net_z = (jnp.dot(z, prm["fcz_w"]) + prm["fcz_b"]).reshape(BT, 1)
    p2 = p.reshape(BT, dim)                                   # lane-dense points

    vmem = pl.BlockSpec(memory_space=pltpu.MemorySpace.VMEM)
    out2 = pl.pallas_call(
        _make_kernel(B, T, HP, N_BLOCKS, matmul_dtype),
        out_shape=jax.ShapeDtypeStruct((BT, RP), out_dtype),
        in_specs=[vmem] * 11,
        out_specs=vmem,
    )(p2, net_z, gb,
      fcp_w, fcp_b,
      fc0_w, fc0_b,
      fc1_w, fc1_b,
      fco_w, fco_b)

    return out2[:, :R].astype(jnp.float32).reshape(B, T, R)


# ----------------------------------------------------------------------------
# Deterministic synthetic parameters (weights stored as (in, out) = W_torch.T)
# ----------------------------------------------------------------------------
def init_params(key, dim, z_dim, c_dim, hidden, z_res):
    keys = iter(jax.random.split(key, 40))

    def w(shape, scale=0.1):
        return (scale * jax.random.normal(next(keys), shape)).astype(jnp.float32)

    prm = {
        "fcp_w": w((dim, hidden)),            "fcp_b": w((1, hidden)),
        "fcz_w": w((z_dim, hidden)),          "fcz_b": w((1, hidden)),
        # 5 stacked CResnetBlockConv1d blocks
        "bn0_gw": w((N_BLOCKS, c_dim, hidden)), "bn0_gb": w((N_BLOCKS, 1, hidden)) + 1.0,
        "bn0_bw": w((N_BLOCKS, c_dim, hidden)), "bn0_bb": w((N_BLOCKS, 1, hidden)),
        "fc0_w": w((N_BLOCKS, hidden, hidden)), "fc0_b": w((N_BLOCKS, 1, hidden)),
        "bn1_gw": w((N_BLOCKS, c_dim, hidden)), "bn1_gb": w((N_BLOCKS, 1, hidden)) + 1.0,
        "bn1_bw": w((N_BLOCKS, c_dim, hidden)), "bn1_bb": w((N_BLOCKS, 1, hidden)),
        "fc1_w": w((N_BLOCKS, hidden, hidden)), "fc1_b": w((N_BLOCKS, 1, hidden)),
        # final CBN + fc_out
        "bnf_gw": w((c_dim, hidden)),          "bnf_gb": w((1, hidden)) + 1.0,
        "bnf_bw": w((c_dim, hidden)),          "bnf_bb": w((1, hidden)),
        "fco_w": w((hidden, z_res)),           "fco_b": w((1, z_res)),
    }
    return prm


# ----------------------------------------------------------------------------
# Pure-JAX reference (same math, plain XLA ops, unpadded).
#   matmul_dtype=float32  -> exact original-module semantics.
#   matmul_dtype=bfloat16 -> precision-matched reference for the bf16 MXU path.
# ----------------------------------------------------------------------------
def reference_forward(p, z, c, prm, matmul_dtype=jnp.float32):
    def mm(x, wmat, b):
        return jnp.dot(x.astype(matmul_dtype), wmat.astype(matmul_dtype),
                       preferred_element_type=jnp.float32) + b

    def cbn(x, gw, gbias, bw, bbias):
        gamma = jnp.dot(c, gw) + gbias
        beta = jnp.dot(c, bw) + bbias
        mean = jnp.mean(x, axis=(0, 1), keepdims=True)
        var = jnp.mean((x - mean) ** 2, axis=(0, 1), keepdims=True)
        xhat = (x - mean) * lax.rsqrt(var + BN_EPS)
        return gamma[:, None, :] * xhat + beta[:, None, :]

    net = jnp.dot(p, prm["fcp_w"]) + prm["fcp_b"]
    net_z = jnp.dot(z, prm["fcz_w"]) + prm["fcz_b"]
    net = net + net_z[:, :, None]
    for i in range(N_BLOCKS):
        h = jax.nn.relu(cbn(net, prm["bn0_gw"][i], prm["bn0_gb"][i],
                            prm["bn0_bw"][i], prm["bn0_bb"][i]))
        h = mm(h, prm["fc0_w"][i], prm["fc0_b"][i])
        d = jax.nn.relu(cbn(h, prm["bn1_gw"][i], prm["bn1_gb"][i],
                            prm["bn1_bw"][i], prm["bn1_bb"][i]))
        d = mm(d, prm["fc1_w"][i], prm["fc1_b"][i])
        net = net + d
    y = jax.nn.relu(cbn(net, prm["bnf_gw"], prm["bnf_gb"],
                        prm["bnf_bw"], prm["bnf_bb"]))
    return mm(y, prm["fco_w"], prm["fco_b"])


if __name__ == "__main__":
    # T == hidden_size is required by the (B,T,H)+(B,H,1) broadcast in the
    # original torch forward (reproduced exactly).
    B, T, D = 2, 32, 2
    Z, C, H, R = 8, 8, 32, 4      # z_dim, c_dim, hidden_size, z_resolution

    key = jax.random.PRNGKey(0)
    kp, kz, kc, kw = jax.random.split(key, 4)
    p = jax.random.normal(kp, (B, T, D), dtype=jnp.float32)
    z = jax.random.normal(kz, (B, Z), dtype=jnp.float32)
    c = jax.random.normal(kc, (B, C), dtype=jnp.float32)
    prm = init_params(kw, D, Z, C, H, R)

    # 1) exact-semantics path (f32 matmuls, f32 output): strict check.
    out_f32 = jax.block_until_ready(
        decoder_cbn_forward(p, z, c, prm, matmul_dtype=jnp.float32))
    ref_f32 = jax.block_until_ready(reference_forward(p, z, c, prm))
    assert out_f32.shape == (B, T, R), out_f32.shape
    if not jnp.allclose(out_f32, ref_f32, rtol=2e-3, atol=2e-3):
        raise AssertionError("f32 Pallas kernel does not match JAX reference")

    # 2) fast path (bf16 MXU operands, f32 accumulation, bf16 writeback)
    #    checked against a precision-matched XLA reference at bf16 tolerance.
    out_bf16 = jax.block_until_ready(decoder_cbn_forward(p, z, c, prm))
    ref_bf16 = jax.block_until_ready(
        reference_forward(p, z, c, prm, matmul_dtype=jnp.bfloat16))
    assert out_bf16.shape == (B, T, R), out_bf16.shape
    if not jnp.allclose(out_bf16, ref_bf16, rtol=1e-2, atol=1e-2):
        raise AssertionError("bf16 Pallas kernel does not match bf16 reference")

    print("KERNEL_OK")
</pallas_src>

<mosaic_0001>
module attributes {stable_mosaic.version = 11 : i64} {
  func.func @kernel(%arg0: memref<64x2xf32, #tpu.memory_space<vmem>>, %arg1: memref<64x1xf32, #tpu.memory_space<vmem>>, %arg2: memref<22x2x128xf32, #tpu.memory_space<vmem>>, %arg3: memref<2x128xf32, #tpu.memory_space<vmem>>, %arg4: memref<1x128xf32, #tpu.memory_space<vmem>>, %arg5: memref<5x128x128xf32, #tpu.memory_space<vmem>>, %arg6: memref<5x1x128xf32, #tpu.memory_space<vmem>>, %arg7: memref<5x128x128xf32, #tpu.memory_space<vmem>>, %arg8: memref<5x1x128xf32, #tpu.memory_space<vmem>>, %arg9: memref<128x128xf32, #tpu.memory_space<vmem>>, %arg10: memref<1x128xf32, #tpu.memory_space<vmem>>, %arg11: memref<64x128xf32, #tpu.memory_space<vmem>>) attributes {dimension_semantics = [], scalar_prefetch = 0 : i64, scratch_operands = 0 : i64, tpu.core_type = #tpu.core_type<tc>} {
    %c0 = arith.constant 0 : index
    %c0_0 = arith.constant 0 : index
    %0 = vector.load %arg0[%c0, %c0_0] : memref<64x2xf32, #tpu.memory_space<vmem>>, vector<64x2xf32>
    %c0_1 = arith.constant 0 : index
    %c0_2 = arith.constant 0 : index
    %1 = vector.load %arg3[%c0_1, %c0_2] : memref<2x128xf32, #tpu.memory_space<vmem>>, vector<2x128xf32>
    %2 = vector.extract_strided_slice %0 {offsets = [0, 0], sizes = [64, 1], strides = [1, 1]} : vector<64x2xf32> to vector<64x1xf32>
    %3 = vector.extract_strided_slice %1 {offsets = [0, 0], sizes = [1, 128], strides = [1, 1]} : vector<2x128xf32> to vector<1x128xf32>
    %4 = vector.broadcast %2 : vector<64x1xf32> to vector<64x128xf32>
    %5 = vector.broadcast %3 : vector<1x128xf32> to vector<64x128xf32>
    %6 = arith.mulf %4, %5 : vector<64x128xf32>
    %7 = vector.extract_strided_slice %0 {offsets = [0, 1], sizes = [64, 1], strides = [1, 1]} : vector<64x2xf32> to vector<64x1xf32>
    %8 = vector.extract_strided_slice %1 {offsets = [1, 0], sizes = [1, 128], strides = [1, 1]} : vector<2x128xf32> to vector<1x128xf32>
    %9 = vector.broadcast %7 : vector<64x1xf32> to vector<64x128xf32>
    %10 = vector.broadcast %8 : vector<1x128xf32> to vector<64x128xf32>
    %11 = arith.mulf %9, %10 : vector<64x128xf32>
    %12 = arith.addf %6, %11 : vector<64x128xf32>
    %c0_3 = arith.constant 0 : index
    %c0_4 = arith.constant 0 : index
    %13 = vector.load %arg4[%c0_3, %c0_4] : memref<1x128xf32, #tpu.memory_space<vmem>>, vector<1x128xf32>
    %14 = vector.broadcast %13 : vector<1x128xf32> to vector<64x128xf32>
    %15 = arith.addf %12, %14 : vector<64x128xf32>
    %c0_5 = arith.constant 0 : index
    %c0_6 = arith.constant 0 : index
    %16 = vector.load %arg1[%c0_5, %c0_6] : memref<64x1xf32, #tpu.memory_space<vmem>>, vector<64x1xf32>
    %17 = vector.broadcast %16 : vector<64x1xf32> to vector<64x128xf32>
    %18 = arith.addf %15, %17 : vector<64x128xf32>
    %c0_7 = arith.constant 0 : index
    %c0_8 = arith.constant 0 : index
    %c0_9 = arith.constant 0 : index
    %19 = vector.load %arg2[%c0_7, %c0_8, %c0_9] : memref<22x2x128xf32, #tpu.memory_space<vmem>>, vector<1x2x128xf32>
    %20 = vector.shape_cast %19 : vector<1x2x128xf32> to vector<2x128xf32>
    %c1 = arith.constant 1 : index
    %c0_10 = arith.constant 0 : index
    %c0_11 = arith.constant 0 : index
    %21 = vector.load %arg2[%c1, %c0_10, %c0_11] : memref<22x2x128xf32, #tpu.memory_space<vmem>>, vector<1x2x128xf32>
    %22 = vector.shape_cast %21 : vector<1x2x128xf32> to vector<2x128xf32>
    %cst = arith.constant dense<0.000000e+00> : vector<128xf32>
    %23 = vector.multi_reduction <add>, %18, %cst [0] : vector<64x128xf32> to vector<128xf32>
    %24 = vector.shape_cast %23 : vector<128xf32> to vector<1x128xf32>
    %25 = arith.mulf %18, %18 : vector<64x128xf32>
    %cst_12 = arith.constant dense<0.000000e+00> : vector<128xf32>
    %26 = vector.multi_reduction <add>, %25, %cst_12 [0] : vector<64x128xf32> to vector<128xf32>
    %27 = vector.shape_cast %26 : vector<128xf32> to vector<1x128xf32>
    %cst_13 = arith.constant 1.562500e-02 : f32
    %28 = vector.broadcast %cst_13 : f32 to vector<1x128xf32>
    %29 = arith.mulf %24, %28 : vector<1x128xf32>
    %cst_14 = arith.constant 1.562500e-02 : f32
    %30 = vector.broadcast %cst_14 : f32 to vector<1x128xf32>
    %31 = arith.mulf %27, %30 : vector<1x128xf32>
    %32 = arith.mulf %29, %29 : vector<1x128xf32>
    %33 = arith.subf %31, %32 : vector<1x128xf32>
    %cst_15 = arith.constant 0.000000e+00 : f32
    %34 = vector.broadcast %cst_15 : f32 to vector<1x128xf32>
    %35 = arith.maximumf %33, %34 : vector<1x128xf32>
    %36 = vector.broadcast %29 : vector<1x128xf32> to vector<64x128xf32>
    %37 = arith.subf %18, %36 : vector<64x128xf32>
    %cst_16 = arith.constant 9.99999974E-6 : f32
    %38 = vector.broadcast %cst_16 : f32 to vector<1x128xf32>
    %39 = arith.addf %35, %38 : vector<1x128xf32>
    %40 = math.rsqrt %39 : vector<1x128xf32>
    %41 = vector.broadcast %40 : vector<1x128xf32> to vector<64x128xf32>
    %42 = arith.mulf %37, %41 : vector<64x128xf32>
    %43 = vector.shape_cast %20 : vector<2x128xf32> to vector<2x1x128xf32>
    %44 = vector.shape_cast %42 : vector<64x128xf32> to vector<2x32x128xf32>
    %45 = vector.broadcast %43 : vector<2x1x128xf32> to vector<2x32x128xf32>
    %46 = arith.mulf %45, %44 : vector<2x32x128xf32>
    %47 = vector.shape_cast %22 : vector<2x128xf32> to vector<2x1x128xf32>
    %48 = vector.broadcast %47 : vector<2x1x128xf32> to vector<2x32x128xf32>
    %49 = arith.addf %46, %48 : vector<2x32x128xf32>
    %50 = vector.shape_cast %49 : vector<2x32x128xf32> to vector<64x128xf32>
    %cst_17 = arith.constant 0.000000e+00 : f32
    %51 = vector.broadcast %cst_17 : f32 to vector<64x128xf32>
    %52 = arith.maximumf %50, %51 : vector<64x128xf32>
    %c0_18 = arith.constant 0 : index
    %c0_19 = arith.constant 0 : index
    %c0_20 = arith.constant 0 : index
    %53 = vector.load %arg5[%c0_18, %c0_19, %c0_20] : memref<5x128x128xf32, #tpu.memory_space<vmem>>, vector<1x128x128xf32>
    %54 = vector.shape_cast %53 : vector<1x128x128xf32> to vector<128x128xf32>
    %c0_21 = arith.constant 0 : index
    %c0_22 = arith.constant 0 : index
    %c0_23 = arith.constant 0 : index
    %55 = vector.load %arg6[%c0_21, %c0_22, %c0_23] : memref<5x1x128xf32, #tpu.memory_space<vmem>>, vector<1x1x128xf32>
    %56 = vector.shape_cast %55 : vector<1x1x128xf32> to vector<1x128xf32>
    %cst_24 = arith.constant dense<0.000000e+00> : vector<64x128xf32>
    %57 = tpu.matmul %52, %54, %cst_24 {dimension_numbers = #tpu.dot_dimension_numbers<[1], [0], [0], [1], [0, 0, 1, 1], [], []>} : vector<64x128xf32>, vector<128x128xf32>, vector<64x128xf32> -> vector<64x128xf32>
    %58 = vector.broadcast %56 : vector<1x128xf32> to vector<64x128xf32>
    %59 = arith.addf %57, %58 : vector<64x128xf32>
    %c2 = arith.constant 2 : index
    %c0_25 = arith.constant 0 : index
    %c0_26 = arith.constant 0 : index
    %60 = vector.load %arg2[%c2, %c0_25, %c0_26] : memref<22x2x128xf32, #tpu.memory_space<vmem>>, vector<1x2x128xf32>
    %61 = vector.shape_cast %60 : vector<1x2x128xf32> to vector<2x128xf32>
    %c3 = arith.constant 3 : index
    %c0_27 = arith.constant 0 : index
    %c0_28 = arith.constant 0 : index
    %62 = vector.load %arg2[%c3, %c0_27, %c0_28] : memref<22x2x128xf32, #tpu.memory_space<vmem>>, vector<1x2x128xf32>
    %63 = vector.shape_cast %62 : vector<1x2x128xf32> to vector<2x128xf32>
    %cst_29 = arith.constant dense<0.000000e+00> : vector<128xf32>
    %64 = vector.multi_reduction <add>, %59, %cst_29 [0] : vector<64x128xf32> to vector<128xf32>
    %65 = vector.shape_cast %64 : vector<128xf32> to vector<1x128xf32>
    %66 = arith.mulf %59, %59 : vector<64x128xf32>
    %cst_30 = arith.constant dense<0.000000e+00> : vector<128xf32>
    %67 = vector.multi_reduction <add>, %66, %cst_30 [0] : vector<64x128xf32> to vector<128xf32>
    %68 = vector.shape_cast %67 : vector<128xf32> to vector<1x128xf32>
    %cst_31 = arith.constant 1.562500e-02 : f32
    %69 = vector.broadcast %cst_31 : f32 to vector<1x128xf32>
    %70 = arith.mulf %65, %69 : vector<1x128xf32>
    %cst_32 = arith.constant 1.562500e-02 : f32
    %71 = vector.broadcast %cst_32 : f32 to vector<1x128xf32>
    %72 = arith.mulf %68, %71 : vector<1x128xf32>
    %73 = arith.mulf %70, %70 : vector<1x128xf32>
    %74 = arith.subf %72, %73 : vector<1x128xf32>
    %cst_33 = arith.constant 0.000000e+00 : f32
    %75 = vector.broadcast %cst_33 : f32 to vector<1x128xf32>
    %76 = arith.maximumf %74, %75 : vector<1x128xf32>
    %77 = vector.broadcast %70 : vector<1x128xf32> to vector<64x128xf32>
    %78 = arith.subf %59, %77 : vector<64x128xf32>
    %cst_34 = arith.constant 9.99999974E-6 : f32
    %79 = vector.broadcast %cst_34 : f32 to vector<1x128xf32>
    %80 = arith.addf %76, %79 : vector<1x128xf32>
    %81 = math.rsqrt %80 : vector<1x128xf32>
    %82 = vector.broadcast %81 : vector<1x128xf32> to vector<64x128xf32>
    %83 = arith.mulf %78, %82 : vector<64x128xf32>
    %84 = vector.shape_cast %61 : vector<2x128xf32> to vector<2x1x128xf32>
    %85 = vector.shape_cast %83 : vector<64x128xf32> to vector<2x32x128xf32>
    %86 = vector.broadcast %84 : vector<2x1x128xf32> to vector<2x32x128xf32>
    %87 = arith.mulf %86, %85 : vector<2x32x128xf32>
    %88 = vector.shape_cast %63 : vector<2x128xf32> to vector<2x1x128xf32>
    %89 = vector.broadcast %88 : vector<2x1x128xf32> to vector<2x32x128xf32>
    %90 = arith.addf %87, %89 : vector<2x32x128xf32>
    %91 = vector.shape_cast %90 : vector<2x32x128xf32> to vector<64x128xf32>
    %cst_35 = arith.constant 0.000000e+00 : f32
    %92 = vector.broadcast %cst_35 : f32 to vector<64x128xf32>
    %93 = arith.maximumf %91, %92 : vector<64x128xf32>
    %c0_36 = arith.constant 0 : index
    %c0_37 = arith.constant 0 : index
    %c0_38 = arith.constant 0 : index
    %94 = vector.load %arg7[%c0_36, %c0_37, %c0_38] : memref<5x128x128xf32, #tpu.memory_space<vmem>>, vector<1x128x128xf32>
    %95 = vector.shape_cast %94 : vector<1x128x128xf32> to vector<128x128xf32>
    %c0_39 = arith.constant 0 : index
    %c0_40 = arith.constant 0 : index
    %c0_41 = arith.constant 0 : index
    %96 = vector.load %arg8[%c0_39, %c0_40, %c0_41] : memref<5x1x128xf32, #tpu.memory_space<vmem>>, vector<1x1x128xf32>
    %97 = vector.shape_cast %96 : vector<1x1x128xf32> to vector<1x128xf32>
    %cst_42 = arith.constant dense<0.000000e+00> : vector<64x128xf32>
    %98 = tpu.matmul %93, %95, %cst_42 {dimension_numbers = #tpu.dot_dimension_numbers<[1], [0], [0], [1], [0, 0, 1, 1], [], []>} : vector<64x128xf32>, vector<128x128xf32>, vector<64x128xf32> -> vector<64x128xf32>
    %99 = vector.broadcast %97 : vector<1x128xf32> to vector<64x128xf32>
    %100 = arith.addf %98, %99 : vector<64x128xf32>
    %101 = arith.addf %18, %100 : vector<64x128xf32>
    %c4 = arith.constant 4 : index
    %c0_43 = arith.constant 0 : index
    %c0_44 = arith.constant 0 : index
    %102 = vector.load %arg2[%c4, %c0_43, %c0_44] : memref<22x2x128xf32, #tpu.memory_space<vmem>>, vector<1x2x128xf32>
    %103 = vector.shape_cast %102 : vector<1x2x128xf32> to vector<2x128xf32>
    %c5 = arith.constant 5 : index
    %c0_45 = arith.constant 0 : index
    %c0_46 = arith.constant 0 : index
    %104 = vector.load %arg2[%c5, %c0_45, %c0_46] : memref<22x2x128xf32, #tpu.memory_space<vmem>>, vector<1x2x128xf32>
    %105 = vector.shape_cast %104 : vector<1x2x128xf32> to vector<2x128xf32>
    %cst_47 = arith.constant dense<0.000000e+00> : vector<128xf32>
    %106 = vector.multi_reduction <add>, %101, %cst_47 [0] : vector<64x128xf32> to vector<128xf32>
    %107 = vector.shape_cast %106 : vector<128xf32> to vector<1x128xf32>
    %108 = arith.mulf %101, %101 : vector<64x128xf32>
    %cst_48 = arith.constant dense<0.000000e+00> : vector<128xf32>
    %109 = vector.multi_reduction <add>, %108, %cst_48 [0] : vector<64x128xf32> to vector<128xf32>
    %110 = vector.shape_cast %109 : vector<128xf32> to vector<1x128xf32>
    %cst_49 = arith.constant 1.562500e-02 : f32
    %111 = vector.broadcast %cst_49 : f32 to vector<1x128xf32>
    %112 = arith.mulf %107, %111 : vector<1x128xf32>
    %cst_50 = arith.constant 1.562500e-02 : f32
    %113 = vector.broadcast %cst_50 : f32 to vector<1x128xf32>
    %114 = arith.mulf %110, %113 : vector<1x128xf32>
    %115 = arith.mulf %112, %112 : vector<1x128xf32>
    %116 = arith.subf %114, %115 : vector<1x128xf32>
    %cst_51 = arith.constant 0.000000e+00 : f32
    %117 = vector.broadcast %cst_51 : f32 to vector<1x128xf32>
    %118 = arith.maximumf %116, %117 : vector<1x128xf32>
    %119 = vector.broadcast %112 : vector<1x128xf32> to vector<64x128xf32>
    %120 = arith.subf %101, %119 : vector<64x128xf32>
    %cst_52 = arith.constant 9.99999974E-6 : f32
    %121 = vector.broadcast %cst_52 : f32 to vector<1x128xf32>
    %122 = arith.addf %118, %121 : vector<1x128xf32>
    %123 = math.rsqrt %122 : vector<1x128xf32>
    %124 = vector.broadcast %123 : vector<1x128xf32> to vector<64x128xf32>
    %125 = arith.mulf %120, %124 : vector<64x128xf32>
    %126 = vector.shape_cast %103 : vector<2x128xf32> to vector<2x1x128xf32>
    %127 = vector.shape_cast %125 : vector<64x128xf32> to vector<2x32x128xf32>
    %128 = vector.broadcast %126 : vector<2x1x128xf32> to vector<2x32x128xf32>
    %129 = arith.mulf %128, %127 : vector<2x32x128xf32>
    %130 = vector.shape_cast %105 : vector<2x128xf32> to vector<2x1x128xf32>
    %131 = vector.broadcast %130 : vector<2x1x128xf32> to vector<2x32x128xf32>
    %132 = arith.addf %129, %131 : vector<2x32x128xf32>
    %133 = vector.shape_cast %132 : vector<2x32x128xf32> to vector<64x128xf32>
    %cst_53 = arith.constant 0.000000e+00 : f32
    %134 = vector.broadcast %cst_53 : f32 to vector<64x128xf32>
    %135 = arith.maximumf %133, %134 : vector<64x128xf32>
    %c1_54 = arith.constant 1 : index
    %c0_55 = arith.constant 0 : index
    %c0_56 = arith.constant 0 : index
    %136 = vector.load %arg5[%c1_54, %c0_55, %c0_56] : memref<5x128x128xf32, #tpu.memory_space<vmem>>, vector<1x128x128xf32>
    %137 = vector.shape_cast %136 : vector<1x128x128xf32> to vector<128x128xf32>
    %c1_57 = arith.constant 1 : index
    %c0_58 = arith.constant 0 : index
    %c0_59 = arith.constant 0 : index
    %138 = vector.load %arg6[%c1_57, %c0_58, %c0_59] : memref<5x1x128xf32, #tpu.memory_space<vmem>>, vector<1x1x128xf32>
    %139 = vector.shape_cast %138 : vector<1x1x128xf32> to vector<1x128xf32>
    %cst_60 = arith.constant dense<0.000000e+00> : vector<64x128xf32>
    %140 = tpu.matmul %135, %137, %cst_60 {dimension_numbers = #tpu.dot_dimension_numbers<[1], [0], [0], [1], [0, 0, 1, 1], [], []>} : vector<64x128xf32>, vector<128x128xf32>, vector<64x128xf32> -> vector<64x128xf32>
    %141 = vector.broadcast %139 : vector<1x128xf32> to vector<64x128xf32>
    %142 = arith.addf %140, %141 : vector<64x128xf32>
    %c6 = arith.constant 6 : index
    %c0_61 = arith.constant 0 : index
    %c0_62 = arith.constant 0 : index
    %143 = vector.load %arg2[%c6, %c0_61, %c0_62] : memref<22x2x128xf32, #tpu.memory_space<vmem>>, vector<1x2x128xf32>
    %144 = vector.shape_cast %143 : vector<1x2x128xf32> to vector<2x128xf32>
    %c7 = arith.constant 7 : index
    %c0_63 = arith.constant 0 : index
    %c0_64 = arith.constant 0 : index
    %145 = vector.load %arg2[%c7, %c0_63, %c0_64] : memref<22x2x128xf32, #tpu.memory_space<vmem>>, vector<1x2x128xf32>
    %146 = vector.shape_cast %145 : vector<1x2x128xf32> to vector<2x128xf32>
    %cst_65 = arith.constant dense<0.000000e+00> : vector<128xf32>
    %147 = vector.multi_reduction <add>, %142, %cst_65 [0] : vector<64x128xf32> to vector<128xf32>
    %148 = vector.shape_cast %147 : vector<128xf32> to vector<1x128xf32>
    %149 = arith.mulf %142, %142 : vector<64x128xf32>
    %cst_66 = arith.constant dense<0.000000e+00> : vector<128xf32>
    %150 = vector.multi_reduction <add>, %149, %cst_66 [0] : vector<64x128xf32> to vector<128xf32>
    %151 = vector.shape_cast %150 : vector<128xf32> to vector<1x128xf32>
    %cst_67 = arith.constant 1.562500e-02 : f32
    %152 = vector.broadcast %cst_67 : f32 to vector<1x128xf32>
    %153 = arith.mulf %148, %152 : vector<1x128xf32>
    %cst_68 = arith.constant 1.562500e-02 : f32
    %154 = vector.broadcast %cst_68 : f32 to vector<1x128xf32>
    %155 = arith.mulf %151, %154 : vector<1x128xf32>
    %156 = arith.mulf %153, %153 : vector<1x128xf32>
    %157 = arith.subf %155, %156 : vector<1x128xf32>
    %cst_69 = arith.constant 0.000000e+00 : f32
    %158 = vector.broadcast %cst_69 : f32 to vector<1x128xf32>
    %159 = arith.maximumf %157, %158 : vector<1x128xf32>
    %160 = vector.broadcast %153 : vector<1x128xf32> to vector<64x128xf32>
    %161 = arith.subf %142, %160 : vector<64x128xf32>
    %cst_70 = arith.constant 9.99999974E-6 : f32
    %162 = vector.broadcast %cst_70 : f32 to vector<1x128xf32>
    %163 = arith.addf %159, %162 : vector<1x128xf32>
    %164 = math.rsqrt %163 : vector<1x128xf32>
    %165 = vector.broadcast %164 : vector<1x128xf32> to vector<64x128xf32>
    %166 = arith.mulf %161, %165 : vector<64x128xf32>
    %167 = vector.shape_cast %144 : vector<2x128xf32> to vector<2x1x128xf32>
    %168 = vector.shape_cast %166 : vector<64x128xf32> to vector<2x32x128xf32>
    %169 = vector.broadcast %167 : vector<2x1x128xf32> to vector<2x32x128xf32>
    %170 = arith.mulf %169, %168 : vector<2x32x128xf32>
    %171 = vector.shape_cast %146 : vector<2x128xf32> to vector<2x1x128xf32>
    %172 = vector.broadcast %171 : vector<2x1x128xf32> to vector<2x32x128xf32>
    %173 = arith.addf %170, %172 : vector<2x32x128xf32>
    %174 = vector.shape_cast %173 : vector<2x32x128xf32> to vector<64x128xf32>
    %cst_71 = arith.constant 0.000000e+00 : f32
    %175 = vector.broadcast %cst_71 : f32 to vector<64x128xf32>
    %176 = arith.maximumf %174, %175 : vector<64x128xf32>
    %c1_72 = arith.constant 1 : index
    %c0_73 = arith.constant 0 : index
    %c0_74 = arith.constant 0 : index
    %177 = vector.load %arg7[%c1_72, %c0_73, %c0_74] : memref<5x128x128xf32, #tpu.memory_space<vmem>>, vector<1x128x128xf32>
    %178 = vector.shape_cast %177 : vector<1x128x128xf32> to vector<128x128xf32>
    %c1_75 = arith.constant 1 : index
    %c0_76 = arith.constant 0 : index
    %c0_77 = arith.constant 0 : index
    %179 = vector.load %arg8[%c1_75, %c0_76, %c0_77] : memref<5x1x128xf32, #tpu.memory_space<vmem>>, vector<1x1x128xf32>
    %180 = vector.shape_cast %179 : vector<1x1x128xf32> to vector<1x128xf32>
    %cst_78 = arith.constant dense<0.000000e+00> : vector<64x128xf32>
    %181 = tpu.matmul %176, %178, %cst_78 {dimension_numbers = #tpu.dot_dimension_numbers<[1], [0], [0], [1], [0, 0, 1, 1], [], []>} : vector<64x128xf32>, vector<128x128xf32>, vector<64x128xf32> -> vector<64x128xf32>
    %182 = vector.broadcast %180 : vector<1x128xf32> to vector<64x128xf32>
    %183 = arith.addf %181, %182 : vector<64x128xf32>
    %184 = arith.addf %101, %183 : vector<64x128xf32>
    %c8 = arith.constant 8 : index
    %c0_79 = arith.constant 0 : index
    %c0_80 = arith.constant 0 : index
    %185 = vector.load %arg2[%c8, %c0_79, %c0_80] : memref<22x2x128xf32, #tpu.memory_space<vmem>>, vector<1x2x128xf32>
    %186 = vector.shape_cast %185 : vector<1x2x128xf32> to vector<2x128xf32>
    %c9 = arith.constant 9 : index
    %c0_81 = arith.constant 0 : index
    %c0_82 = arith.constant 0 : index
    %187 = vector.load %arg2[%c9, %c0_81, %c0_82] : memref<22x2x128xf32, #tpu.memory_space<vmem>>, vector<1x2x128xf32>
    %188 = vector.shape_cast %187 : vector<1x2x128xf32> to vector<2x128xf32>
    %cst_83 = arith.constant dense<0.000000e+00> : vector<128xf32>
    %189 = vector.multi_reduction <add>, %184, %cst_83 [0] : vector<64x128xf32> to vector<128xf32>
    %190 = vector.shape_cast %189 : vector<128xf32> to vector<1x128xf32>
    %191 = arith.mulf %184, %184 : vector<64x128xf32>
    %cst_84 = arith.constant dense<0.000000e+00> : vector<128xf32>
    %192 = vector.multi_reduction <add>, %191, %cst_84 [0] : vector<64x128xf32> to vector<128xf32>
    %193 = vector.shape_cast %192 : vector<128xf32> to vector<1x128xf32>
    %cst_85 = arith.constant 1.562500e-02 : f32
    %194 = vector.broadcast %cst_85 : f32 to vector<1x128xf32>
    %195 = arith.mulf %190, %194 : vector<1x128xf32>
    %cst_86 = arith.constant 1.562500e-02 : f32
    %196 = vector.broadcast %cst_86 : f32 to vector<1x128xf32>
    %197 = arith.mulf %193, %196 : vector<1x128xf32>
    %198 = arith.mulf %195, %195 : vector<1x128xf32>
    %199 = arith.subf %197, %198 : vector<1x128xf32>
    %cst_87 = arith.constant 0.000000e+00 : f32
    %200 = vector.broadcast %cst_87 : f32 to vector<1x128xf32>
    %201 = arith.maximumf %199, %200 : vector<1x128xf32>
    %202 = vector.broadcast %195 : vector<1x128xf32> to vector<64x128xf32>
    %203 = arith.subf %184, %202 : vector<64x128xf32>
    %cst_88 = arith.constant 9.99999974E-6 : f32
    %204 = vector.broadcast %cst_88 : f32 to vector<1x128xf32>
    %205 = arith.addf %201, %204 : vector<1x128xf32>
    %206 = math.rsqrt %205 : vector<1x128xf32>
    %207 = vector.broadcast %206 : vector<1x128xf32> to vector<64x128xf32>
    %208 = arith.mulf %203, %207 : vector<64x128xf32>
    %209 = vector.shape_cast %186 : vector<2x128xf32> to vector<2x1x128xf32>
    %210 = vector.shape_cast %208 : vector<64x128xf32> to vector<2x32x128xf32>
    %211 = vector.broadcast %209 : vector<2x1x128xf32> to vector<2x32x128xf32>
    %212 = arith.mulf %211, %210 : vector<2x32x128xf32>
    %213 = vector.shape_cast %188 : vector<2x128xf32> to vector<2x1x128xf32>
    %214 = vector.broadcast %213 : vector<2x1x128xf32> to vector<2x32x128xf32>
    %215 = arith.addf %212, %214 : vector<2x32x128xf32>
    %216 = vector.shape_cast %215 : vector<2x32x128xf32> to vector<64x128xf32>
    %cst_89 = arith.constant 0.000000e+00 : f32
    %217 = vector.broadcast %cst_89 : f32 to vector<64x128xf32>
    %218 = arith.maximumf %216, %217 : vector<64x128xf32>
    %c2_90 = arith.constant 2 : index
    %c0_91 = arith.constant 0 : index
    %c0_92 = arith.constant 0 : index
    %219 = vector.load %arg5[%c2_90, %c0_91, %c0_92] : memref<5x128x128xf32, #tpu.memory_space<vmem>>, vector<1x128x128xf32>
    %220 = vector.shape_cast %219 : vector<1x128x128xf32> to vector<128x128xf32>
    %c2_93 = arith.constant 2 : index
    %c0_94 = arith.constant 0 : index
    %c0_95 = arith.constant 0 : index
    %221 = vector.load %arg6[%c2_93, %c0_94, %c0_95] : memref<5x1x128xf32, #tpu.memory_space<vmem>>, vector<1x1x128xf32>
    %222 = vector.shape_cast %221 : vector<1x1x128xf32> to vector<1x128xf32>
    %cst_96 = arith.constant dense<0.000000e+00> : vector<64x128xf32>
    %223 = tpu.matmul %218, %220, %cst_96 {dimension_numbers = #tpu.dot_dimension_numbers<[1], [0], [0], [1], [0, 0, 1, 1], [], []>} : vector<64x128xf32>, vector<128x128xf32>, vector<64x128xf32> -> vector<64x128xf32>
    %224 = vector.broadcast %222 : vector<1x128xf32> to vector<64x128xf32>
    %225 = arith.addf %223, %224 : vector<64x128xf32>
    %c10 = arith.constant 10 : index
    %c0_97 = arith.constant 0 : index
    %c0_98 = arith.constant 0 : index
    %226 = vector.load %arg2[%c10, %c0_97, %c0_98] : memref<22x2x128xf32, #tpu.memory_space<vmem>>, vector<1x2x128xf32>
    %227 = vector.shape_cast %226 : vector<1x2x128xf32> to vector<2x128xf32>
    %c11 = arith.constant 11 : index
    %c0_99 = arith.constant 0 : index
    %c0_100 = arith.constant 0 : index
    %228 = vector.load %arg2[%c11, %c0_99, %c0_100] : memref<22x2x128xf32, #tpu.memory_space<vmem>>, vector<1x2x128xf32>
    %229 = vector.shape_cast %228 : vector<1x2x128xf32> to vector<2x128xf32>
    %cst_101 = arith.constant dense<0.000000e+00> : vector<128xf32>
    %230 = vector.multi_reduction <add>, %225, %cst_101 [0] : vector<64x128xf32> to vector<128xf32>
    %231 = vector.shape_cast %230 : vector<128xf32> to vector<1x128xf32>
    %232 = arith.mulf %225, %225 : vector<64x128xf32>
    %cst_102 = arith.constant dense<0.000000e+00> : vector<128xf32>
    %233 = vector.multi_reduction <add>, %232, %cst_102 [0] : vector<64x128xf32> to vector<128xf32>
    %234 = vector.shape_cast %233 : vector<128xf32> to vector<1x128xf32>
    %cst_103 = arith.constant 1.562500e-02 : f32
    %235 = vector.broadcast %cst_103 : f32 to vector<1x128xf32>
    %236 = arith.mulf %231, %235 : vector<1x128xf32>
    %cst_104 = arith.constant 1.562500e-02 : f32
    %237 = vector.broadcast %cst_104 : f32 to vector<1x128xf32>
    %238 = arith.mulf %234, %237 : vector<1x128xf32>
    %239 = arith.mulf %236, %236 : vector<1x128xf32>
    %240 = arith.subf %238, %239 : vector<1x128xf32>
    %cst_105 = arith.constant 0.000000e+00 : f32
    %241 = vector.broadcast %cst_105 : f32 to vector<1x128xf32>
    %242 = arith.maximumf %240, %241 : vector<1x128xf32>
    %243 = vector.broadcast %236 : vector<1x128xf32> to vector<64x128xf32>
    %244 = arith.subf %225, %243 : vector<64x128xf32>
    %cst_106 = arith.constant 9.99999974E-6 : f32
    %245 = vector.broadcast %cst_106 : f32 to vector<1x128xf32>
    %246 = arith.addf %242, %245 : vector<1x128xf32>
    %247 = math.rsqrt %246 : vector<1x128xf32>
    %248 = vector.broadcast %247 : vector<1x128xf32> to vector<64x128xf32>
    %249 = arith.mulf %244, %248 : vector<64x128xf32>
    %250 = vector.shape_cast %227 : vector<2x128xf32> to vector<2x1x128xf32>
    %251 = vector.shape_cast %249 : vector<64x128xf32> to vector<2x32x128xf32>
    %252 = vector.broadcast %250 : vector<2x1x128xf32> to vector<2x32x128xf32>
    %253 = arith.mulf %252, %251 : vector<2x32x128xf32>
    %254 = vector.shape_cast %229 : vector<2x128xf32> to vector<2x1x128xf32>
    %255 = vector.broadcast %254 : vector<2x1x128xf32> to vector<2x32x128xf32>
    %256 = arith.addf %253, %255 : vector<2x32x128xf32>
    %257 = vector.shape_cast %256 : vector<2x32x128xf32> to vector<64x128xf32>
    %cst_107 = arith.constant 0.000000e+00 : f32
    %258 = vector.broadcast %cst_107 : f32 to vector<64x128xf32>
    %259 = arith.maximumf %257, %258 : vector<64x128xf32>
    %c2_108 = arith.constant 2 : index
    %c0_109 = arith.constant 0 : index
    %c0_110 = arith.constant 0 : index
    %260 = vector.load %arg7[%c2_108, %c0_109, %c0_110] : memref<5x128x128xf32, #tpu.memory_space<vmem>>, vector<1x128x128xf32>
    %261 = vector.shape_cast %260 : vector<1x128x128xf32> to vector<128x128xf32>
    %c2_111 = arith.constant 2 : index
    %c0_112 = arith.constant 0 : index
    %c0_113 = arith.constant 0 : index
    %262 = vector.load %arg8[%c2_111, %c0_112, %c0_113] : memref<5x1x128xf32, #tpu.memory_space<vmem>>, vector<1x1x128xf32>
    %263 = vector.shape_cast %262 : vector<1x1x128xf32> to vector<1x128xf32>
    %cst_114 = arith.constant dense<0.000000e+00> : vector<64x128xf32>
    %264 = tpu.matmul %259, %261, %cst_114 {dimension_numbers = #tpu.dot_dimension_numbers<[1], [0], [0], [1], [0, 0, 1, 1], [], []>} : vector<64x128xf32>, vector<128x128xf32>, vector<64x128xf32> -> vector<64x128xf32>
    %265 = vector.broadcast %263 : vector<1x128xf32> to vector<64x128xf32>
    %266 = arith.addf %264, %265 : vector<64x128xf32>
    %267 = arith.addf %184, %266 : vector<64x128xf32>
    %c12 = arith.constant 12 : index
    %c0_115 = arith.constant 0 : index
    %c0_116 = arith.constant 0 : index
    %268 = vector.load %arg2[%c12, %c0_115, %c0_116] : memref<22x2x128xf32, #tpu.memory_space<vmem>>, vector<1x2x128xf32>
    %269 = vector.shape_cast %268 : vector<1x2x128xf32> to vector<2x128xf32>
    %c13 = arith.constant 13 : index
    %c0_117 = arith.constant 0 : index
    %c0_118 = arith.constant 0 : index
    %270 = vector.load %arg2[%c13, %c0_117, %c0_118] : memref<22x2x128xf32, #tpu.memory_space<vmem>>, vector<1x2x128xf32>
    %271 = vector.shape_cast %270 : vector<1x2x128xf32> to vector<2x128xf32>
    %cst_119 = arith.constant dense<0.000000e+00> : vector<128xf32>
    %272 = vector.multi_reduction <add>, %267, %cst_119 [0] : vector<64x128xf32> to vector<128xf32>
    %273 = vector.shape_cast %272 : vector<128xf32> to vector<1x128xf32>
    %274 = arith.mulf %267, %267 : vector<64x128xf32>
    %cst_120 = arith.constant dense<0.000000e+00> : vector<128xf32>
    %275 = vector.multi_reduction <add>, %274, %cst_120 [0] : vector<64x128xf32> to vector<128xf32>
    %276 = vector.shape_cast %275 : vector<128xf32> to vector<1x128xf32>
    %cst_121 = arith.constant 1.562500e-02 : f32
    %277 = vector.broadcast %cst_121 : f32 to vector<1x128xf32>
    %278 = arith.mulf %273, %277 : vector<1x128xf32>
    %cst_122 = arith.constant 1.562500e-02 : f32
    %279 = vector.broadcast %cst_122 : f32 to vector<1x128xf32>
    %280 = arith.mulf %276, %279 : vector<1x128xf32>
    %281 = arith.mulf %278, %278 : vector<1x128xf32>
    %282 = arith.subf %280, %281 : vector<1x128xf32>
    %cst_123 = arith.constant 0.000000e+00 : f32
    %283 = vector.broadcast %cst_123 : f32 to vector<1x128xf32>
    %284 = arith.maximumf %282, %283 : vector<1x128xf32>
    %285 = vector.broadcast %278 : vector<1x128xf32> to vector<64x128xf32>
    %286 = arith.subf %267, %285 : vector<64x128xf32>
    %cst_124 = arith.constant 9.99999974E-6 : f32
    %287 = vector.broadcast %cst_124 : f32 to vector<1x128xf32>
    %288 = arith.addf %284, %287 : vector<1x128xf32>
    %289 = math.rsqrt %288 : vector<1x128xf32>
    %290 = vector.broadcast %289 : vector<1x128xf32> to vector<64x128xf32>
    %291 = arith.mulf %286, %290 : vector<64x128xf32>
    %292 = vector.shape_cast %269 : vector<2x128xf32> to vector<2x1x128xf32>
    %293 = vector.shape_cast %291 : vector<64x128xf32> to vector<2x32x128xf32>
    %294 = vector.broadcast %292 : vector<2x1x128xf32> to vector<2x32x128xf32>
    %295 = arith.mulf %294, %293 : vector<2x32x128xf32>
    %296 = vector.shape_cast %271 : vector<2x128xf32> to vector<2x1x128xf32>
    %297 = vector.broadcast %296 : vector<2x1x128xf32> to vector<2x32x128xf32>
    %298 = arith.addf %295, %297 : vector<2x32x128xf32>
    %299 = vector.shape_cast %298 : vector<2x32x128xf32> to vector<64x128xf32>
    %cst_125 = arith.constant 0.000000e+00 : f32
    %300 = vector.broadcast %cst_125 : f32 to vector<64x128xf32>
    %301 = arith.maximumf %299, %300 : vector<64x128xf32>
    %c3_126 = arith.constant 3 : index
    %c0_127 = arith.constant 0 : index
    %c0_128 = arith.constant 0 : index
    %302 = vector.load %arg5[%c3_126, %c0_127, %c0_128] : memref<5x128x128xf32, #tpu.memory_space<vmem>>, vector<1x128x128xf32>
    %303 = vector.shape_cast %302 : vector<1x128x128xf32> to vector<128x128xf32>
    %c3_129 = arith.constant 3 : index
    %c0_130 = arith.constant 0 : index
    %c0_131 = arith.constant 0 : index
    %304 = vector.load %arg6[%c3_129, %c0_130, %c0_131] : memref<5x1x128xf32, #tpu.memory_space<vmem>>, vector<1x1x128xf32>
    %305 = vector.shape_cast %304 : vector<1x1x128xf32> to vector<1x128xf32>
    %cst_132 = arith.constant dense<0.000000e+00> : vector<64x128xf32>
    %306 = tpu.matmul %301, %303, %cst_132 {dimension_numbers = #tpu.dot_dimension_numbers<[1], [0], [0], [1], [0, 0, 1, 1], [], []>} : vector<64x128xf32>, vector<128x128xf32>, vector<64x128xf32> -> vector<64x128xf32>
    %307 = vector.broadcast %305 : vector<1x128xf32> to vector<64x128xf32>
    %308 = arith.addf %306, %307 : vector<64x128xf32>
    %c14 = arith.constant 14 : index
    %c0_133 = arith.constant 0 : index
    %c0_134 = arith.constant 0 : index
    %309 = vector.load %arg2[%c14, %c0_133, %c0_134] : memref<22x2x128xf32, #tpu.memory_space<vmem>>, vector<1x2x128xf32>
    %310 = vector.shape_cast %309 : vector<1x2x128xf32> to vector<2x128xf32>
    %c15 = arith.constant 15 : index
    %c0_135 = arith.constant 0 : index
    %c0_136 = arith.constant 0 : index
    %311 = vector.load %arg2[%c15, %c0_135, %c0_136] : memref<22x2x128xf32, #tpu.memory_space<vmem>>, vector<1x2x128xf32>
    %312 = vector.shape_cast %311 : vector<1x2x128xf32> to vector<2x128xf32>
    %cst_137 = arith.constant dense<0.000000e+00> : vector<128xf32>
    %313 = vector.multi_reduction <add>, %308, %cst_137 [0] : vector<64x128xf32> to vector<128xf32>
    %314 = vector.shape_cast %313 : vector<128xf32> to vector<1x128xf32>
    %315 = arith.mulf %308, %308 : vector<64x128xf32>
    %cst_138 = arith.constant dense<0.000000e+00> : vector<128xf32>
    %316 = vector.multi_reduction <add>, %315, %cst_138 [0] : vector<64x128xf32> to vector<128xf32>
    %317 = vector.shape_cast %316 : vector<128xf32> to vector<1x128xf32>
    %cst_139 = arith.constant 1.562500e-02 : f32
    %318 = vector.broadcast %cst_139 : f32 to vector<1x128xf32>
    %319 = arith.mulf %314, %318 : vector<1x128xf32>
    %cst_140 = arith.constant 1.562500e-02 : f32
    %320 = vector.broadcast %cst_140 : f32 to vector<1x128xf32>
    %321 = arith.mulf %317, %320 : vector<1x128xf32>
    %322 = arith.mulf %319, %319 : vector<1x128xf32>
    %323 = arith.subf %321, %322 : vector<1x128xf32>
    %cst_141 = arith.constant 0.000000e+00 : f32
    %324 = vector.broadcast %cst_141 : f32 to vector<1x128xf32>
    %325 = arith.maximumf %323, %324 : vector<1x128xf32>
    %326 = vector.broadcast %319 : vector<1x128xf32> to vector<64x128xf32>
    %327 = arith.subf %308, %326 : vector<64x128xf32>
    %cst_142 = arith.constant 9.99999974E-6 : f32
    %328 = vector.broadcast %cst_142 : f32 to vector<1x128xf32>
    %329 = arith.addf %325, %328 : vector<1x128xf32>
    %330 = math.rsqrt %329 : vector<1x128xf32>
    %331 = vector.broadcast %330 : vector<1x128xf32> to vector<64x128xf32>
    %332 = arith.mulf %327, %331 : vector<64x128xf32>
    %333 = vector.shape_cast %310 : vector<2x128xf32> to vector<2x1x128xf32>
    %334 = vector.shape_cast %332 : vector<64x128xf32> to vector<2x32x128xf32>
    %335 = vector.broadcast %333 : vector<2x1x128xf32> to vector<2x32x128xf32>
    %336 = arith.mulf %335, %334 : vector<2x32x128xf32>
    %337 = vector.shape_cast %312 : vector<2x128xf32> to vector<2x1x128xf32>
    %338 = vector.broadcast %337 : vector<2x1x128xf32> to vector<2x32x128xf32>
    %339 = arith.addf %336, %338 : vector<2x32x128xf32>
    %340 = vector.shape_cast %339 : vector<2x32x128xf32> to vector<64x128xf32>
    %cst_143 = arith.constant 0.000000e+00 : f32
    %341 = vector.broadcast %cst_143 : f32 to vector<64x128xf32>
    %342 = arith.maximumf %340, %341 : vector<64x128xf32>
    %c3_144 = arith.constant 3 : index
    %c0_145 = arith.constant 0 : index
    %c0_146 = arith.constant 0 : index
    %343 = vector.load %arg7[%c3_144, %c0_145, %c0_146] : memref<5x128x128xf32, #tpu.memory_space<vmem>>, vector<1x128x128xf32>
    %344 = vector.shape_cast %343 : vector<1x128x128xf32> to vector<128x128xf32>
    %c3_147 = arith.constant 3 : index
    %c0_148 = arith.constant 0 : index
    %c0_149 = arith.constant 0 : index
    %345 = vector.load %arg8[%c3_147, %c0_148, %c0_149] : memref<5x1x128xf32, #tpu.memory_space<vmem>>, vector<1x1x128xf32>
    %346 = vector.shape_cast %345 : vector<1x1x128xf32> to vector<1x128xf32>
    %cst_150 = arith.constant dense<0.000000e+00> : vector<64x128xf32>
    %347 = tpu.matmul %342, %344, %cst_150 {dimension_numbers = #tpu.dot_dimension_numbers<[1], [0], [0], [1], [0, 0, 1, 1], [], []>} : vector<64x128xf32>, vector<128x128xf32>, vector<64x128xf32> -> vector<64x128xf32>
    %348 = vector.broadcast %346 : vector<1x128xf32> to vector<64x128xf32>
    %349 = arith.addf %347, %348 : vector<64x128xf32>
    %350 = arith.addf %267, %349 : vector<64x128xf32>
    %c16 = arith.constant 16 : index
    %c0_151 = arith.constant 0 : index
    %c0_152 = arith.constant 0 : index
    %351 = vector.load %arg2[%c16, %c0_151, %c0_152] : memref<22x2x128xf32, #tpu.memory_space<vmem>>, vector<1x2x128xf32>
    %352 = vector.shape_cast %351 : vector<1x2x128xf32> to vector<2x128xf32>
    %c17 = arith.constant 17 : index
    %c0_153 = arith.constant 0 : index
    %c0_154 = arith.constant 0 : index
    %353 = vector.load %arg2[%c17, %c0_153, %c0_154] : memref<22x2x128xf32, #tpu.memory_space<vmem>>, vector<1x2x128xf32>
    %354 = vector.shape_cast %353 : vector<1x2x128xf32> to vector<2x128xf32>
    %cst_155 = arith.constant dense<0.000000e+00> : vector<128xf32>
    %355 = vector.multi_reduction <add>, %350, %cst_155 [0] : vector<64x128xf32> to vector<128xf32>
    %356 = vector.shape_cast %355 : vector<128xf32> to vector<1x128xf32>
    %357 = arith.mulf %350, %350 : vector<64x128xf32>
    %cst_156 = arith.constant dense<0.000000e+00> : vector<128xf32>
    %358 = vector.multi_reduction <add>, %357, %cst_156 [0] : vector<64x128xf32> to vector<128xf32>
    %359 = vector.shape_cast %358 : vector<128xf32> to vector<1x128xf32>
    %cst_157 = arith.constant 1.562500e-02 : f32
    %360 = vector.broadcast %cst_157 : f32 to vector<1x128xf32>
    %361 = arith.mulf %356, %360 : vector<1x128xf32>
    %cst_158 = arith.constant 1.562500e-02 : f32
    %362 = vector.broadcast %cst_158 : f32 to vector<1x128xf32>
    %363 = arith.mulf %359, %362 : vector<1x128xf32>
    %364 = arith.mulf %361, %361 : vector<1x128xf32>
    %365 = arith.subf %363, %364 : vector<1x128xf32>
    %cst_159 = arith.constant 0.000000e+00 : f32
    %366 = vector.broadcast %cst_159 : f32 to vector<1x128xf32>
    %367 = arith.maximumf %365, %366 : vector<1x128xf32>
    %368 = vector.broadcast %361 : vector<1x128xf32> to vector<64x128xf32>
    %369 = arith.subf %350, %368 : vector<64x128xf32>
    %cst_160 = arith.constant 9.99999974E-6 : f32
    %370 = vector.broadcast %cst_160 : f32 to vector<1x128xf32>
    %371 = arith.addf %367, %370 : vector<1x128xf32>
    %372 = math.rsqrt %371 : vector<1x128xf32>
    %373 = vector.broadcast %372 : vector<1x128xf32> to vector<64x128xf32>
    %374 = arith.mulf %369, %373 : vector<64x128xf32>
    %375 = vector.shape_cast %352 : vector<2x128xf32> to vector<2x1x128xf32>
    %376 = vector.shape_cast %374 : vector<64x128xf32> to vector<2x32x128xf32>
    %377 = vector.broadcast %375 : vector<2x1x128xf32> to vector<2x32x128xf32>
    %378 = arith.mulf %377, %376 : vector<2x32x128xf32>
    %379 = vector.shape_cast %354 : vector<2x128xf32> to vector<2x1x128xf32>
    %380 = vector.broadcast %379 : vector<2x1x128xf32> to vector<2x32x128xf32>
    %381 = arith.addf %378, %380 : vector<2x32x128xf32>
    %382 = vector.shape_cast %381 : vector<2x32x128xf32> to vector<64x128xf32>
    %cst_161 = arith.constant 0.000000e+00 : f32
    %383 = vector.broadcast %cst_161 : f32 to vector<64x128xf32>
    %384 = arith.maximumf %382, %383 : vector<64x128xf32>
    %c4_162 = arith.constant 4 : index
    %c0_163 = arith.constant 0 : index
    %c0_164 = arith.constant 0 : index
    %385 = vector.load %arg5[%c4_162, %c0_163, %c0_164] : memref<5x128x128xf32, #tpu.memory_space<vmem>>, vector<1x128x128xf32>
    %386 = vector.shape_cast %385 : vector<1x128x128xf32> to vector<128x128xf32>
    %c4_165 = arith.constant 4 : index
    %c0_166 = arith.constant 0 : index
    %c0_167 = arith.constant 0 : index
    %387 = vector.load %arg6[%c4_165, %c0_166, %c0_167] : memref<5x1x128xf32, #tpu.memory_space<vmem>>, vector<1x1x128xf32>
    %388 = vector.shape_cast %387 : vector<1x1x128xf32> to vector<1x128xf32>
    %cst_168 = arith.constant dense<0.000000e+00> : vector<64x128xf32>
    %389 = tpu.matmul %384, %386, %cst_168 {dimension_numbers = #tpu.dot_dimension_numbers<[1], [0], [0], [1], [0, 0, 1, 1], [], []>} : vector<64x128xf32>, vector<128x128xf32>, vector<64x128xf32> -> vector<64x128xf32>
    %390 = vector.broadcast %388 : vector<1x128xf32> to vector<64x128xf32>
    %391 = arith.addf %389, %390 : vector<64x128xf32>
    %c18 = arith.constant 18 : index
    %c0_169 = arith.constant 0 : index
    %c0_170 = arith.constant 0 : index
    %392 = vector.load %arg2[%c18, %c0_169, %c0_170] : memref<22x2x128xf32, #tpu.memory_space<vmem>>, vector<1x2x128xf32>
    %393 = vector.shape_cast %392 : vector<1x2x128xf32> to vector<2x128xf32>
    %c19 = arith.constant 19 : index
    %c0_171 = arith.constant 0 : index
    %c0_172 = arith.constant 0 : index
    %394 = vector.load %arg2[%c19, %c0_171, %c0_172] : memref<22x2x128xf32, #tpu.memory_space<vmem>>, vector<1x2x128xf32>
    %395 = vector.shape_cast %394 : vector<1x2x128xf32> to vector<2x128xf32>
    %cst_173 = arith.constant dense<0.000000e+00> : vector<128xf32>
    %396 = vector.multi_reduction <add>, %391, %cst_173 [0] : vector<64x128xf32> to vector<128xf32>
    %397 = vector.shape_cast %396 : vector<128xf32> to vector<1x128xf32>
    %398 = arith.mulf %391, %391 : vector<64x128xf32>
    %cst_174 = arith.constant dense<0.000000e+00> : vector<128xf32>
    %399 = vector.multi_reduction <add>, %398, %cst_174 [0] : vector<64x128xf32> to vector<128xf32>
    %400 = vector.shape_cast %399 : vector<128xf32> to vector<1x128xf32>
    %cst_175 = arith.constant 1.562500e-02 : f32
    %401 = vector.broadcast %cst_175 : f32 to vector<1x128xf32>
    %402 = arith.mulf %397, %401 : vector<1x128xf32>
    %cst_176 = arith.constant 1.562500e-02 : f32
    %403 = vector.broadcast %cst_176 : f32 to vector<1x128xf32>
    %404 = arith.mulf %400, %403 : vector<1x128xf32>
    %405 = arith.mulf %402, %402 : vector<1x128xf32>
    %406 = arith.subf %404, %405 : vector<1x128xf32>
    %cst_177 = arith.constant 0.000000e+00 : f32
    %407 = vector.broadcast %cst_177 : f32 to vector<1x128xf32>
    %408 = arith.maximumf %406, %407 : vector<1x128xf32>
    %409 = vector.broadcast %402 : vector<1x128xf32> to vector<64x128xf32>
    %410 = arith.subf %391, %409 : vector<64x128xf32>
    %cst_178 = arith.constant 9.99999974E-6 : f32
    %411 = vector.broadcast %cst_178 : f32 to vector<1x128xf32>
    %412 = arith.addf %408, %411 : vector<1x128xf32>
    %413 = math.rsqrt %412 : vector<1x128xf32>
    %414 = vector.broadcast %413 : vector<1x128xf32> to vector<64x128xf32>
    %415 = arith.mulf %410, %414 : vector<64x128xf32>
    %416 = vector.shape_cast %393 : vector<2x128xf32> to vector<2x1x128xf32>
    %417 = vector.shape_cast %415 : vector<64x128xf32> to vector<2x32x128xf32>
    %418 = vector.broadcast %416 : vector<2x1x128xf32> to vector<2x32x128xf32>
    %419 = arith.mulf %418, %417 : vector<2x32x128xf32>
    %420 = vector.shape_cast %395 : vector<2x128xf32> to vector<2x1x128xf32>
    %421 = vector.broadcast %420 : vector<2x1x128xf32> to vector<2x32x128xf32>
    %422 = arith.addf %419, %421 : vector<2x32x128xf32>
    %423 = vector.shape_cast %422 : vector<2x32x128xf32> to vector<64x128xf32>
    %cst_179 = arith.constant 0.000000e+00 : f32
    %424 = vector.broadcast %cst_179 : f32 to vector<64x128xf32>
    %425 = arith.maximumf %423, %424 : vector<64x128xf32>
    %c4_180 = arith.constant 4 : index
    %c0_181 = arith.constant 0 : index
    %c0_182 = arith.constant 0 : index
    %426 = vector.load %arg7[%c4_180, %c0_181, %c0_182] : memref<5x128x128xf32, #tpu.memory_space<vmem>>, vector<1x128x128xf32>
    %427 = vector.shape_cast %426 : vector<1x128x128xf32> to vector<128x128xf32>
    %c4_183 = arith.constant 4 : index
    %c0_184 = arith.constant 0 : index
    %c0_185 = arith.constant 0 : index
    %428 = vector.load %arg8[%c4_183, %c0_184, %c0_185] : memref<5x1x128xf32, #tpu.memory_space<vmem>>, vector<1x1x128xf32>
    %429 = vector.shape_cast %428 : vector<1x1x128xf32> to vector<1x128xf32>
    %cst_186 = arith.constant dense<0.000000e+00> : vector<64x128xf32>
    %430 = tpu.matmul %425, %427, %cst_186 {dimension_numbers = #tpu.dot_dimension_numbers<[1], [0], [0], [1], [0, 0, 1, 1], [], []>} : vector<64x128xf32>, vector<128x128xf32>, vector<64x128xf32> -> vector<64x128xf32>
    %431 = vector.broadcast %429 : vector<1x128xf32> to vector<64x128xf32>
    %432 = arith.addf %430, %431 : vector<64x128xf32>
    %433 = arith.addf %350, %432 : vector<64x128xf32>
    %c20 = arith.constant 20 : index
    %c0_187 = arith.constant 0 : index
    %c0_188 = arith.constant 0 : index
    %434 = vector.load %arg2[%c20, %c0_187, %c0_188] : memref<22x2x128xf32, #tpu.memory_space<vmem>>, vector<1x2x128xf32>
    %435 = vector.shape_cast %434 : vector<1x2x128xf32> to vector<2x128xf32>
    %c21 = arith.constant 21 : index
    %c0_189 = arith.constant 0 : index
    %c0_190 = arith.constant 0 : index
    %436 = vector.load %arg2[%c21, %c0_189, %c0_190] : memref<22x2x128xf32, #tpu.memory_space<vmem>>, vector<1x2x128xf32>
    %437 = vector.shape_cast %436 : vector<1x2x128xf32> to vector<2x128xf32>
    %cst_191 = arith.constant dense<0.000000e+00> : vector<128xf32>
    %438 = vector.multi_reduction <add>, %433, %cst_191 [0] : vector<64x128xf32> to vector<128xf32>
    %439 = vector.shape_cast %438 : vector<128xf32> to vector<1x128xf32>
    %440 = arith.mulf %433, %433 : vector<64x128xf32>
    %cst_192 = arith.constant dense<0.000000e+00> : vector<128xf32>
    %441 = vector.multi_reduction <add>, %440, %cst_192 [0] : vector<64x128xf32> to vector<128xf32>
    %442 = vector.shape_cast %441 : vector<128xf32> to vector<1x128xf32>
    %cst_193 = arith.constant 1.562500e-02 : f32
    %443 = vector.broadcast %cst_193 : f32 to vector<1x128xf32>
    %444 = arith.mulf %439, %443 : vector<1x128xf32>
    %cst_194 = arith.constant 1.562500e-02 : f32
    %445 = vector.broadcast %cst_194 : f32 to vector<1x128xf32>
    %446 = arith.mulf %442, %445 : vector<1x128xf32>
    %447 = arith.mulf %444, %444 : vector<1x128xf32>
    %448 = arith.subf %446, %447 : vector<1x128xf32>
    %cst_195 = arith.constant 0.000000e+00 : f32
    %449 = vector.broadcast %cst_195 : f32 to vector<1x128xf32>
    %450 = arith.maximumf %448, %449 : vector<1x128xf32>
    %451 = vector.broadcast %444 : vector<1x128xf32> to vector<64x128xf32>
    %452 = arith.subf %433, %451 : vector<64x128xf32>
    %cst_196 = arith.constant 9.99999974E-6 : f32
    %453 = vector.broadcast %cst_196 : f32 to vector<1x128xf32>
    %454 = arith.addf %450, %453 : vector<1x128xf32>
    %455 = math.rsqrt %454 : vector<1x128xf32>
    %456 = vector.broadcast %455 : vector<1x128xf32> to vector<64x128xf32>
    %457 = arith.mulf %452, %456 : vector<64x128xf32>
    %458 = vector.shape_cast %435 : vector<2x128xf32> to vector<2x1x128xf32>
    %459 = vector.shape_cast %457 : vector<64x128xf32> to vector<2x32x128xf32>
    %460 = vector.broadcast %458 : vector<2x1x128xf32> to vector<2x32x128xf32>
    %461 = arith.mulf %460, %459 : vector<2x32x128xf32>
    %462 = vector.shape_cast %437 : vector<2x128xf32> to vector<2x1x128xf32>
    %463 = vector.broadcast %462 : vector<2x1x128xf32> to vector<2x32x128xf32>
    %464 = arith.addf %461, %463 : vector<2x32x128xf32>
    %465 = vector.shape_cast %464 : vector<2x32x128xf32> to vector<64x128xf32>
    %cst_197 = arith.constant 0.000000e+00 : f32
    %466 = vector.broadcast %cst_197 : f32 to vector<64x128xf32>
    %467 = arith.maximumf %465, %466 : vector<64x128xf32>
    %c0_198 = arith.constant 0 : index
    %c0_199 = arith.constant 0 : index
    %468 = vector.load %arg9[%c0_198, %c0_199] : memref<128x128xf32, #tpu.memory_space<vmem>>, vector<128x128xf32>
    %c0_200 = arith.constant 0 : index
    %c0_201 = arith.constant 0 : index
    %469 = vector.load %arg10[%c0_200, %c0_201] : memref<1x128xf32, #tpu.memory_space<vmem>>, vector<1x128xf32>
    %cst_202 = arith.constant dense<0.000000e+00> : vector<64x128xf32>
    %470 = tpu.matmul %467, %468, %cst_202 {dimension_numbers = #tpu.dot_dimension_numbers<[1], [0], [0], [1], [0, 0, 1, 1], [], []>} : vector<64x128xf32>, vector<128x128xf32>, vector<64x128xf32> -> vector<64x128xf32>
    %471 = vector.broadcast %469 : vector<1x128xf32> to vector<64x128xf32>
    %472 = arith.addf %470, %471 : vector<64x128xf32>
    %c0_203 = arith.constant 0 : index
    %c0_204 = arith.constant 0 : index
    %473 = vector.load %arg11[%c0_203, %c0_204] : memref<64x128xf32, #tpu.memory_space<vmem>>, vector<64x128xf32>
    tpu.vector_store %arg11[%c0_203, %c0_204], %472 {strides = array<i32>} : memref<64x128xf32, #tpu.memory_space<vmem>>, vector<64x128xf32>,
    return
  }
}

</mosaic_0001>

<llo_original>
// kernel: decoder_cbn_forward.1
$region0: #{decoder_cbn_forward.1}
  #allocation0 [shape = 'u32[]', space=smem, size = 0x4, offset = 0x4, fixed_abs, tag = 'smem constant byte address 0x4 - core index']
  #allocation1 [shape = 'u32[144,128]{1,0:T(1,128)}', space=vmem, size = 0x12000, scoped, tag = 'internal scratch']
  %s0 = inlined_call_operand.vmem [shape: f32[64,2], index: 0, kind: input, shape index: {}]
  %s1 = inlined_call_operand.vmem [shape: f32[64,1], index: 1, kind: input, shape index: {}]
  %s2 = inlined_call_operand.vmem [shape: f32[22,2,128], index: 2, kind: input, shape index: {}]
  %s3 = inlined_call_operand.vmem [shape: f32[2,128], index: 3, kind: input, shape index: {}]
  %s4 = inlined_call_operand.vmem [shape: f32[1,128], index: 4, kind: input, shape index: {}]
  %s5 = inlined_call_operand.vmem [shape: f32[5,128,128], index: 5, kind: input, shape index: {}]
  %s6 = inlined_call_operand.vmem [shape: f32[5,1,128], index: 6, kind: input, shape index: {}]
  %s7 = inlined_call_operand.vmem [shape: f32[5,128,128], index: 7, kind: input, shape index: {}]
  %s8 = inlined_call_operand.vmem [shape: f32[5,1,128], index: 8, kind: input, shape index: {}]
  %s9 = inlined_call_operand.vmem [shape: f32[128,128], index: 9, kind: input, shape index: {}]
  %s10 = inlined_call_operand.vmem [shape: f32[1,128], index: 10, kind: input, shape index: {}]
  %s11 = inlined_call_operand.vmem [shape: f32[64,128], index: 11, kind: output, shape index: {}]
  %s12 = sld [smem:[#allocation0]]
  $region54: #{decoder_cbn_forward.1} parent=0
    _
  %s14 = ssub.s32 1, %s12
  %s15 = scalar_select 0, %s14, %s12
  // Predicated region
  $region2: #{decoder_cbn_forward.1} parent=0 // pred_check
    _
  $region3: #{decoder_cbn_forward.1} parent=0 // pred_check_branch
    %17 = sbr.rel (0) target = $region5
  $region4: #{decoder_cbn_forward.1} parent=0 // pred_region
    _
  $region5: #{decoder_cbn_forward.1} parent=0 // pred_fallthru
    _
  // Predicated region
  $region6: #{decoder_cbn_forward.1} parent=0 // pred_check
    _
  $region7: #{decoder_cbn_forward.1} parent=0 // pred_check_branch
    %19 = sbr.rel (0) target = $region9
  $region8: #{decoder_cbn_forward.1} parent=0 // pred_region
    _
  $region9: #{decoder_cbn_forward.1} parent=0 // pred_fallthru
    _
  // Predicated region
  $region10: #{decoder_cbn_forward.1} parent=0 // pred_check
    _
  $region11: #{decoder_cbn_forward.1} parent=0 // pred_check_branch
    %21 = sbr.rel (0) target = $region13
  $region12: #{decoder_cbn_forward.1} parent=0 // pred_region
    _
  $region13: #{decoder_cbn_forward.1} parent=0 // pred_fallthru
    _
  // Predicated region
  $region14: #{decoder_cbn_forward.1} parent=0 // pred_check
    _
  $region15: #{decoder_cbn_forward.1} parent=0 // pred_check_branch
    %23 = sbr.rel (0) target = $region17
  $region16: #{decoder_cbn_forward.1} parent=0 // pred_region
    _
  $region17: #{decoder_cbn_forward.1} parent=0 // pred_fallthru
    _
  // Predicated region
  $region18: #{decoder_cbn_forward.1} parent=0 // pred_check
    _
  $region19: #{decoder_cbn_forward.1} parent=0 // pred_check_branch
    %25 = sbr.rel (0) target = $region21
  $region20: #{decoder_cbn_forward.1} parent=0 // pred_region
    _
  $region21: #{decoder_cbn_forward.1} parent=0 // pred_fallthru
    _
  // Predicated region
  $region22: #{decoder_cbn_forward.1} parent=0 // pred_check
    _
  $region23: #{decoder_cbn_forward.1} parent=0 // pred_check_branch
    %27 = sbr.rel (0) target = $region25
  $region24: #{decoder_cbn_forward.1} parent=0 // pred_region
    _
  $region25: #{decoder_cbn_forward.1} parent=0 // pred_fallthru
    _
  // Predicated region
  $region26: #{decoder_cbn_forward.1} parent=0 // pred_check
    _
  $region27: #{decoder_cbn_forward.1} parent=0 // pred_check_branch
    %29 = sbr.rel (0) target = $region29
  $region28: #{decoder_cbn_forward.1} parent=0 // pred_region
    _
  $region29: #{decoder_cbn_forward.1} parent=0 // pred_fallthru
    _
  // Predicated region
  $region30: #{decoder_cbn_forward.1} parent=0 // pred_check
    _
  $region31: #{decoder_cbn_forward.1} parent=0 // pred_check_branch
    %31 = sbr.rel (0) target = $region33
  $region32: #{decoder_cbn_forward.1} parent=0 // pred_region
    _
  $region33: #{decoder_cbn_forward.1} parent=0 // pred_fallthru
    _
  // Predicated region
  $region34: #{decoder_cbn_forward.1} parent=0 // pred_check
    _
  $region35: #{decoder_cbn_forward.1} parent=0 // pred_check_branch
    %33 = sbr.rel (0) target = $region37
  $region36: #{decoder_cbn_forward.1} parent=0 // pred_region
    _
  $region37: #{decoder_cbn_forward.1} parent=0 // pred_fallthru
    _
  // Predicated region
  $region38: #{decoder_cbn_forward.1} parent=0 // pred_check
    _
  $region39: #{decoder_cbn_forward.1} parent=0 // pred_check_branch
    %35 = sbr.rel (0) target = $region41
  $region40: #{decoder_cbn_forward.1} parent=0 // pred_region
    _
  $region41: #{decoder_cbn_forward.1} parent=0 // pred_fallthru
    _
  // Predicated region
  $region42: #{decoder_cbn_forward.1} parent=0 // pred_check
    _
  $region43: #{decoder_cbn_forward.1} parent=0 // pred_check_branch
    %37 = sbr.rel (0) target = $region45
  $region44: #{decoder_cbn_forward.1} parent=0 // pred_region
    _
  $region45: #{decoder_cbn_forward.1} parent=0 // pred_fallthru
    _
  %v38 = vld [vmem:[%s0] sm:$0xff]
  %v39 = vld [vmem:[%s0 + $0x8] sm:$0xff]
  %v40 = vld [vmem:[%s0 + $0x10] sm:$0xff]
  %v41 = vld [vmem:[%s0 + $0x18] sm:$0xff]
  %v42 = vld [vmem:[%s0 + $0x20] sm:$0xff]
  %v43 = vld [vmem:[%s0 + $0x28] sm:$0xff]
  %v44 = vld [vmem:[%s0 + $0x30] sm:$0xff]
  %v45 = vld [vmem:[%s0 + $0x38] sm:$0xff]
  %v46 = vld [vmem:[%s3] sm:$0x3]
  %48 = vset.pattern.permute.xlu0 0
  %49 = vperm.xlu0 %48, %v38
  %v50 = vpop.permute.xlu0 %49
  %53 = vset.pattern.permute.xlu0 0
  %54 = vperm.xlu0 %53, %v39
  %v55 = vpop.permute.xlu0 %54
  %58 = vset.pattern.permute.xlu0 0
  %59 = vperm.xlu0 %58, %v40
  %v60 = vpop.permute.xlu0 %59
  %63 = vset.pattern.permute.xlu0 0
  %64 = vperm.xlu0 %63, %v41
  %v65 = vpop.permute.xlu0 %64
  %68 = vset.pattern.permute.xlu0 0
  %69 = vperm.xlu0 %68, %v42
  %v70 = vpop.permute.xlu0 %69
  %73 = vset.pattern.permute.xlu0 0
  %74 = vperm.xlu0 %73, %v43
  %v75 = vpop.permute.xlu0 %74
  %78 = vset.pattern.permute.xlu0 0
  %79 = vperm.xlu0 %78, %v44
  %v80 = vpop.permute.xlu0 %79
  %83 = vset.pattern.permute.xlu0 0
  %84 = vperm.xlu0 %83, %v45
  %v85 = vpop.permute.xlu0 %84
  %v87 = vlaneseq
  %v88 = vshrl.u32 %v87, 7
  %v89 = vsub.s32 0, %v88
  %v90 = vrot.slane %v46, %v89
  %v91 = vmul.f32 %v50, %v90
  %v92 = vmul.f32 %v55, %v90
  %v93 = vmul.f32 %v60, %v90
  %v94 = vmul.f32 %v65, %v90
  %v95 = vmul.f32 %v70, %v90
  %v96 = vmul.f32 %v75, %v90
  %v97 = vmul.f32 %v80, %v90
  %v98 = vmul.f32 %v85, %v90
  %99 = vset.pattern.permute.xlu0 1
  %100 = vperm.xlu0 %99, %v38
  %v101 = vpop.permute.xlu0 %100
  %103 = vset.pattern.permute.xlu0 1
  %104 = vperm.xlu0 %103, %v39
  %v105 = vpop.permute.xlu0 %104
  %107 = vset.pattern.permute.xlu0 1
  %108 = vperm.xlu0 %107, %v40
  %v109 = vpop.permute.xlu0 %108
  %111 = vset.pattern.permute.xlu0 1
  %112 = vperm.xlu0 %111, %v41
  %v113 = vpop.permute.xlu0 %112
  %115 = vset.pattern.permute.xlu0 1
  %116 = vperm.xlu0 %115, %v42
  %v117 = vpop.permute.xlu0 %116
  %119 = vset.pattern.permute.xlu0 1
  %120 = vperm.xlu0 %119, %v43
  %v121 = vpop.permute.xlu0 %120
  %123 = vset.pattern.permute.xlu0 1
  %124 = vperm.xlu0 %123, %v44
  %v125 = vpop.permute.xlu0 %124
  %127 = vset.pattern.permute.xlu0 1
  %128 = vperm.xlu0 %127, %v45
  %v129 = vpop.permute.xlu0 %128
  %v131 = vlaneseq
  %v132 = vshrl.u32 %v131, 7
  %v133 = vsub.s32 1, %v132
  %v134 = vrot.slane %v46, %v133
  %v135 = vmul.f32 %v101, %v134
  %v136 = vmul.f32 %v105, %v134
  %v137 = vmul.f32 %v109, %v134
  %v138 = vmul.f32 %v113, %v134
  %v139 = vmul.f32 %v117, %v134
  %v140 = vmul.f32 %v121, %v134
  %v141 = vmul.f32 %v125, %v134
  %v142 = vmul.f32 %v129, %v134
  %v143 = vadd.f32 %v91, %v135
  %v144 = vadd.f32 %v92, %v136
  %v145 = vadd.f32 %v93, %v137
  %v146 = vadd.f32 %v94, %v138
  %v147 = vadd.f32 %v95, %v139
  %v148 = vadd.f32 %v96, %v140
  %v149 = vadd.f32 %v97, %v141
  %v150 = vadd.f32 %v98, %v142
  %v151 = vld [vmem:[%s4] sm:$0x1]
  %v153 = vlaneseq
  %v154 = vshrl.u32 %v153, 7
  %v155 = vsub.s32 0, %v154
  %v156 = vrot.slane %v151, %v155
  %v158 = vadd.f32 %v143, %v156
  %v159 = vadd.f32 %v144, %v156
  %v160 = vadd.f32 %v145, %v156
  %v161 = vadd.f32 %v146, %v156
  %v162 = vadd.f32 %v147, %v156
  %v163 = vadd.f32 %v148, %v156
  %v164 = vadd.f32 %v149, %v156
  %v165 = vadd.f32 %v150, %v156
  %v166 = vld [vmem:[%s1] sm:$0xff]
  %v167 = vld [vmem:[%s1 + $0x8] sm:$0xff]
  %v168 = vld [vmem:[%s1 + $0x10] sm:$0xff]
  %v169 = vld [vmem:[%s1 + $0x18] sm:$0xff]
  %v170 = vld [vmem:[%s1 + $0x20] sm:$0xff]
  %v171 = vld [vmem:[%s1 + $0x28] sm:$0xff]
  %v172 = vld [vmem:[%s1 + $0x30] sm:$0xff]
  %v173 = vld [vmem:[%s1 + $0x38] sm:$0xff]
  %175 = vset.pattern.permute.xlu0 0
  %176 = vperm.xlu0 %175, %v166
  %v177 = vpop.permute.xlu0 %176
  %180 = vset.pattern.permute.xlu0 0
  %181 = vperm.xlu0 %180, %v167
  %v182 = vpop.permute.xlu0 %181
  %185 = vset.pattern.permute.xlu0 0
  %186 = vperm.xlu0 %185, %v168
  %v187 = vpop.permute.xlu0 %186
  %190 = vset.pattern.permute.xlu0 0
  %191 = vperm.xlu0 %190, %v169
  %v192 = vpop.permute.xlu0 %191
  %195 = vset.pattern.permute.xlu0 0
  %196 = vperm.xlu0 %195, %v170
  %v197 = vpop.permute.xlu0 %196
  %200 = vset.pattern.permute.xlu0 0
  %201 = vperm.xlu0 %200, %v171
  %v202 = vpop.permute.xlu0 %201
  %205 = vset.pattern.permute.xlu0 0
  %206 = vperm.xlu0 %205, %v172
  %v207 = vpop.permute.xlu0 %206
  %210 = vset.pattern.permute.xlu0 0
  %211 = vperm.xlu0 %210, %v173
  %v212 = vpop.permute.xlu0 %211
  %v214 = vadd.f32 %v158, %v177
  %v215 = vadd.f32 %v159, %v182
  %v216 = vadd.f32 %v160, %v187
  %v217 = vadd.f32 %v161, %v192
  %v218 = vadd.f32 %v162, %v197
  %v219 = vadd.f32 %v163, %v202
  %v220 = vadd.f32 %v164, %v207
  %v221 = vadd.f32 %v165, %v212
  %v222 = vld [vmem:[%s2] sm:$0x3]
  %s223 = scalar_lea.vmem %s2, 2
  %v224 = vld [vmem:[%s223] sm:$0x3]
  %v225 = vadd.f32 %v214, %v215
  %v226 = vadd.f32 %v225, %v216
  %v227 = vadd.f32 %v226, %v217
  %v228 = vadd.f32 %v227, %v218
  %v229 = vadd.f32 %v228, %v219
  %v230 = vadd.f32 %v229, %v220
  %v231 = vadd.f32 %v230, %v221
  %v232 = vrot.slane %v231, 4
  %v233 = vadd.f32 %v231, %v232
  %v234 = vrot.slane %v233, 2
  %v235 = vadd.f32 %v233, %v234
  %v236 = vrot.slane %v235, 1
  %v237 = vadd.f32 %v235, %v236
  %v238 = vmul.f32 %v214, %v214
  %v239 = vmul.f32 %v215, %v215
  %v240 = vmul.f32 %v216, %v216
  %v241 = vmul.f32 %v217, %v217
  %v242 = vmul.f32 %v218, %v218
  %v243 = vmul.f32 %v219, %v219
  %v244 = vmul.f32 %v220, %v220
  %v245 = vmul.f32 %v221, %v221
  %v246 = vadd.f32 %v238, %v239
  %v247 = vadd.f32 %v246, %v240
  %v248 = vadd.f32 %v247, %v241
  %v249 = vadd.f32 %v248, %v242
  %v250 = vadd.f32 %v249, %v243
  %v251 = vadd.f32 %v250, %v244
  %v252 = vadd.f32 %v251, %v245
  %v253 = vrot.slane %v252, 4
  %v254 = vadd.f32 %v252, %v253
  %v255 = vrot.slane %v254, 2
  %v256 = vadd.f32 %v254, %v255
  %v257 = vrot.slane %v256, 1
  %v258 = vadd.f32 %v256, %v257
  %v259 = vmul.f32 %v237, 0.015625
  %v260 = vmul.f32 %v258, 0.015625
  %v261 = vmul.f32 %v259, %v259
  %v262 = vsub.f32 %v260, %v261
  %v263 = vmax.f32 %v262, 0.0
  %v264 = vsub.f32 %v214, %v259
  %v265 = vsub.f32 %v215, %v259
  %v266 = vsub.f32 %v216, %v259
  %v267 = vsub.f32 %v217, %v259
  %v268 = vsub.f32 %v218, %v259
  %v269 = vsub.f32 %v219, %v259
  %v270 = vsub.f32 %v220, %v259
  %v271 = vsub.f32 %v221, %v259
  %v272 = vadd.f32 %v263, 1e-05
  %v273 = vrsqrt.pop %v272
  %v274 = vmul.f32 %v264, %v273
  %v275 = vmul.f32 %v265, %v273
  %v276 = vmul.f32 %v266, %v273
  %v277 = vmul.f32 %v267, %v273
  %v278 = vmul.f32 %v268, %v273
  %v279 = vmul.f32 %v269, %v273
  %v280 = vmul.f32 %v270, %v273
  %v281 = vmul.f32 %v271, %v273
  %v284 = vunpack.c.l.s4 1966171168
  %v285 = vunpack.c.0.s8 %v284
  %v286 = vlaneseq
  %v287 = vshrl.u32 %v286, 7
  %v288 = vsub.s32 %v285, %v287
  %v289 = vrot.slane %v222, %v288
  %v290 = vcombine.high %v289, %v289
  %v292 = vunpack.c.l.s4 1966171168
  %v293 = vunpack.c.0.s8 %v292
  %v294 = vlaneseq
  %v295 = vshrl.u32 %v294, 7
  %v296 = vsub.s32 %v293, %v295
  %v297 = vrot.slane %v289, %v296
  %v299 = vunpack.c.l.s4 1966171168
  %v300 = vunpack.c.0.s8 %v299
  %v301 = vlaneseq
  %v302 = vshrl.u32 %v301, 7
  %v303 = vsub.s32 %v300, %v302
  %v304 = vrot.slane %v290, %v303
  %v305 = vlaneseq
  %v306 = vshrl.u32 %v305, 7
  %v307 = vsub.s32 0, %v306
  %v308 = vrot.slane %v297, %v307
  %v309 = vlaneseq
  %v310 = vshrl.u32 %v309, 7
  %v311 = vsub.s32 0, %v310
  %v312 = vrot.slane %v304, %v311
  %v315 = vmul.f32 %v308, %v274
  %v316 = vmul.f32 %v308, %v275
  %v317 = vmul.f32 %v308, %v276
  %v318 = vmul.f32 %v308, %v277
  %v319 = vmul.f32 %v312, %v278
  %v320 = vmul.f32 %v312, %v279
  %v321 = vmul.f32 %v312, %v280
  %v322 = vmul.f32 %v312, %v281
  %v325 = vunpack.c.l.s4 1966171168
  %v326 = vunpack.c.0.s8 %v325
  %v327 = vlaneseq
  %v328 = vshrl.u32 %v327, 7
  %v329 = vsub.s32 %v326, %v328
  %v330 = vrot.slane %v224, %v329
  %v331 = vcombine.high %v330, %v330
  %v333 = vunpack.c.l.s4 1966171168
  %v334 = vunpack.c.0.s8 %v333
  %v335 = vlaneseq
  %v336 = vshrl.u32 %v335, 7
  %v337 = vsub.s32 %v334, %v336
  %v338 = vrot.slane %v330, %v337
  %v340 = vunpack.c.l.s4 1966171168
  %v341 = vunpack.c.0.s8 %v340
  %v342 = vlaneseq
  %v343 = vshrl.u32 %v342, 7
  %v344 = vsub.s32 %v341, %v343
  %v345 = vrot.slane %v331, %v344
  %v346 = vlaneseq
  %v347 = vshrl.u32 %v346, 7
  %v348 = vsub.s32 0, %v347
  %v349 = vrot.slane %v338, %v348
  %v350 = vlaneseq
  %v351 = vshrl.u32 %v350, 7
  %v352 = vsub.s32 0, %v351
  %v353 = vrot.slane %v345, %v352
  %v356 = vadd.f32 %v315, %v349
  %v357 = vadd.f32 %v316, %v349
  %v358 = vadd.f32 %v317, %v349
  %v359 = vadd.f32 %v318, %v349
  %v360 = vadd.f32 %v319, %v353
  %v361 = vadd.f32 %v320, %v353
  %v362 = vadd.f32 %v321, %v353
  %v363 = vadd.f32 %v322, %v353
  %v364 = vmax.f32 %v356, 0.0
  %v365 = vmax.f32 %v357, 0.0
  %v366 = vmax.f32 %v358, 0.0
  %v367 = vmax.f32 %v359, 0.0
  %v368 = vmax.f32 %v360, 0.0
  %v369 = vmax.f32 %v361, 0.0
  %v370 = vmax.f32 %v362, 0.0
  %v371 = vmax.f32 %v363, 0.0
  %v372 = vld [vmem:[%s5] sm:$0xff]
  %v373 = vld [vmem:[%s5 + $0x8] sm:$0xff]
  %v374 = vld [vmem:[%s5 + $0x10] sm:$0xff]
  %v375 = vld [vmem:[%s5 + $0x18] sm:$0xff]
  %v376 = vld [vmem:[%s5 + $0x20] sm:$0xff]
  %v377 = vld [vmem:[%s5 + $0x28] sm:$0xff]
  %v378 = vld [vmem:[%s5 + $0x30] sm:$0xff]
  %v379 = vld [vmem:[%s5 + $0x38] sm:$0xff]
  %v380 = vld [vmem:[%s5 + $0x40] sm:$0xff]
  %v381 = vld [vmem:[%s5 + $0x48] sm:$0xff]
  %v382 = vld [vmem:[%s5 + $0x50] sm:$0xff]
  %v383 = vld [vmem:[%s5 + $0x58] sm:$0xff]
  %v384 = vld [vmem:[%s5 + $0x60] sm:$0xff]
  %v385 = vld [vmem:[%s5 + $0x68] sm:$0xff]
  %v386 = vld [vmem:[%s5 + $0x70] sm:$0xff]
  %v387 = vld [vmem:[%s5 + $0x78] sm:$0xff]
  %v388 = vld [vmem:[%s6] sm:$0x1]
  %v390 = vlaneseq
  %v391 = vshrl.u32 %v390, 7
  %v392 = vsub.s32 0, %v391
  %v393 = vrot.slane %v388, %v392
  %395 = vmatprep.subr.mxu0 0.0
  %396 = vmatpush1.msra.mxu0 %v372
  %397 = vmatprep.subr.mxu0 0.0
  %398 = vmatpush1.msra.mxu0 %v373
  %399 = vmatprep.subr.mxu0 0.0
  %400 = vmatpush1.msra.mxu0 %v374
  %401 = vmatprep.subr.mxu0 0.0
  %402 = vmatpush1.msra.mxu0 %v375
  %403 = vmatprep.subr.mxu0 0.0
  %404 = vmatpush1.msra.mxu0 %v376
  %405 = vmatprep.subr.mxu0 0.0
  %406 = vmatpush1.msra.mxu0 %v377
  %407 = vmatprep.subr.mxu0 0.0
  %408 = vmatpush1.msra.mxu0 %v378
  %409 = vmatprep.subr.mxu0 0.0
  %410 = vmatpush1.msra.mxu0 %v379
  %411 = vmatprep.subr.mxu0 0.0
  %412 = vmatpush1.msra.mxu0 %v380
  %413 = vmatprep.subr.mxu0 0.0
  %414 = vmatpush1.msra.mxu0 %v381
  %415 = vmatprep.subr.mxu0 0.0
  %416 = vmatpush1.msra.mxu0 %v382
  %417 = vmatprep.subr.mxu0 0.0
  %418 = vmatpush1.msra.mxu0 %v383
  %419 = vmatprep.subr.mxu0 0.0
  %420 = vmatpush1.msra.mxu0 %v384
  %421 = vmatprep.subr.mxu0 0.0
  %422 = vmatpush1.msra.mxu0 %v385
  %423 = vmatprep.subr.mxu0 0.0
  %424 = vmatpush1.msra.mxu0 %v386
  %425 = vmatprep.subr.mxu0 0.0
  %426 = vmatpush1.msra.mxu0 %v387
  %427 = vmatprep.subr.mxu0 0.0
  %428 = vmatpush1.msra.mxu0 0.0
  %429 = vmatprep.subr.mxu0 0.0
  %430 = vmatpush1.msra.mxu0 0.0
  %431 = vmatprep.subr.mxu0 0.0
  %432 = vmatpush1.msra.mxu0 0.0
  %433 = vmatprep.subr.mxu0 0.0
  %434 = vmatpush1.msra.mxu0 0.0
  %435 = vmatprep.subr.mxu0 0.0
  %436 = vmatpush1.msra.mxu0 0.0
  %437 = vmatprep.subr.mxu0 0.0
  %438 = vmatpush1.msra.mxu0 0.0
  %439 = vmatprep.subr.mxu0 0.0
  %440 = vmatpush1.msra.mxu0 0.0
  %441 = vmatprep.subr.mxu0 0.0
  %442 = vmatpush1.msra.mxu0 0.0
  %443 = vmatprep.subr.mxu0 0.0
  %444 = vmatpush1.msra.mxu0 0.0
  %445 = vmatprep.subr.mxu0 0.0
  %446 = vmatpush1.msra.mxu0 0.0
  %447 = vmatprep.subr.mxu0 0.0
  %448 = vmatpush1.msra.mxu0 0.0
  %449 = vmatprep.subr.mxu0 0.0
  %450 = vmatpush1.msra.mxu0 0.0
  %451 = vmatprep.subr.mxu0 0.0
  %452 = vmatpush1.msra.mxu0 0.0
  %453 = vmatprep.subr.mxu0 0.0
  %454 = vmatpush1.msra.mxu0 0.0
  %455 = vmatprep.subr.mxu0 0.0
  %456 = vmatpush1.msra.mxu0 0.0
  %457 = vmatprep.subr.mxu0 0.0
  %458 = vmatpush1.msra.mxu0 0.0
  %459 = vmatprep.mubr.f32.mxu0 0.0
  %460 = vmatmul.mubr.f32.gmra.mrb[0].mxu0 %v364
  %v461 = vpop.f32.mrb[0].mxu0
  %v462 = vadd.f32 %v393, %v461
  %v463 = vpop.f32.mrb[0].mxu0
  %464 = vmatprep.mubr.f32.mxu0 0.0
  %465 = vmatmul.mubr.f32.gmra.mrb[0].mxu0 %v365
  %v466 = vpop.f32.mrb[0].mxu0
  %v467 = vadd.f32 %v393, %v466
  %v468 = vpop.f32.mrb[0].mxu0
  %469 = vmatprep.mubr.f32.mxu0 0.0
  %470 = vmatmul.mubr.f32.gmra.mrb[0].mxu0 %v366
  %v471 = vpop.f32.mrb[0].mxu0
  %v472 = vadd.f32 %v393, %v471
  %v473 = vpop.f32.mrb[0].mxu0
  %474 = vmatprep.mubr.f32.mxu0 0.0
  %475 = vmatmul.mubr.f32.gmra.mrb[0].mxu0 %v367
  %v476 = vpop.f32.mrb[0].mxu0
  %v477 = vadd.f32 %v393, %v476
  %v478 = vpop.f32.mrb[0].mxu0
  %479 = vmatprep.mubr.f32.mxu0 0.0
  %480 = vmatmul.mubr.f32.gmra.mrb[0].mxu0 %v368
  %v481 = vpop.f32.mrb[0].mxu0
  %v482 = vadd.f32 %v393, %v481
  %v483 = vpop.f32.mrb[0].mxu0
  %484 = vmatprep.mubr.f32.mxu0 0.0
  %485 = vmatmul.mubr.f32.gmra.mrb[0].mxu0 %v369
  %v486 = vpop.f32.mrb[0].mxu0
  %v487 = vadd.f32 %v393, %v486
  %v488 = vpop.f32.mrb[0].mxu0
  %489 = vmatprep.mubr.f32.mxu0 0.0
  %490 = vmatmul.mubr.f32.gmra.mrb[0].mxu0 %v370
  %v491 = vpop.f32.mrb[0].mxu0
  %v492 = vadd.f32 %v393, %v491
  %v493 = vpop.f32.mrb[0].mxu0
  %494 = vmatprep.mubr.f32.mxu0 0.0
  %495 = vmatmul.mubr.f32.gmra.mrb[0].mxu0 %v371
  %v496 = vpop.f32.mrb[0].mxu0
  %v497 = vadd.f32 %v393, %v496
  %v498 = vpop.f32.mrb[0].mxu0
  %499 = vdwg.mxu0
  %s500 = scalar_lea.vmem %s2, 4
  %v501 = vld [vmem:[%s500] sm:$0x3]
  %s502 = scalar_lea.vmem %s2, 6
  %v503 = vld [vmem:[%s502] sm:$0x3]
  %v504 = vadd.f32 %v462, %v467
  %v505 = vadd.f32 %v504, %v472
  %v506 = vadd.f32 %v505, %v477
  %v507 = vadd.f32 %v506, %v482
  %v508 = vadd.f32 %v507, %v487
  %v509 = vadd.f32 %v508, %v492
  %v510 = vadd.f32 %v509, %v497
  %v511 = vrot.slane %v510, 4
  %v512 = vadd.f32 %v510, %v511
  %v513 = vrot.slane %v512, 2
  %v514 = vadd.f32 %v512, %v513
  %v515 = vrot.slane %v514, 1
  %v516 = vadd.f32 %v514, %v515
  %v517 = vmul.f32 %v462, %v462
  %v518 = vmul.f32 %v467, %v467
  %v519 = vmul.f32 %v472, %v472
  %v520 = vmul.f32 %v477, %v477
  %v521 = vmul.f32 %v482, %v482
  %v522 = vmul.f32 %v487, %v487
  %v523 = vmul.f32 %v492, %v492
  %v524 = vmul.f32 %v497, %v497
  %v525 = vadd.f32 %v517, %v518
  %v526 = vadd.f32 %v525, %v519
  %v527 = vadd.f32 %v526, %v520
  %v528 = vadd.f32 %v527, %v521
  %v529 = vadd.f32 %v528, %v522
  %v530 = vadd.f32 %v529, %v523
  %v531 = vadd.f32 %v530, %v524
  %v532 = vrot.slane %v531, 4
  %v533 = vadd.f32 %v531, %v532
  %v534 = vrot.slane %v533, 2
  %v535 = vadd.f32 %v533, %v534
  %v536 = vrot.slane %v535, 1
  %v537 = vadd.f32 %v535, %v536
  %v538 = vmul.f32 %v516, 0.015625
  %v539 = vmul.f32 %v537, 0.015625
  %v540 = vmul.f32 %v538, %v538
  %v541 = vsub.f32 %v539, %v540
  %v542 = vmax.f32 %v541, 0.0
  %v543 = vsub.f32 %v462, %v538
  %v544 = vsub.f32 %v467, %v538
  %v545 = vsub.f32 %v472, %v538
  %v546 = vsub.f32 %v477, %v538
  %v547 = vsub.f32 %v482, %v538
  %v548 = vsub.f32 %v487, %v538
  %v549 = vsub.f32 %v492, %v538
  %v550 = vsub.f32 %v497, %v538
  %v551 = vadd.f32 %v542, 1e-05
  %v552 = vrsqrt.pop %v551
  %v553 = vmul.f32 %v543, %v552
  %v554 = vmul.f32 %v544, %v552
  %v555 = vmul.f32 %v545, %v552
  %v556 = vmul.f32 %v546, %v552
  %v557 = vmul.f32 %v547, %v552
  %v558 = vmul.f32 %v548, %v552
  %v559 = vmul.f32 %v549, %v552
  %v560 = vmul.f32 %v550, %v552
  %v563 = vunpack.c.l.s4 1966171168
  %v564 = vunpack.c.0.s8 %v563
  %v565 = vlaneseq
  %v566 = vshrl.u32 %v565, 7
  %v567 = vsub.s32 %v564, %v566
  %v568 = vrot.slane %v501, %v567
  %v569 = vcombine.high %v568, %v568
  %v571 = vunpack.c.l.s4 1966171168
  %v572 = vunpack.c.0.s8 %v571
  %v573 = vlaneseq
  %v574 = vshrl.u32 %v573, 7
  %v575 = vsub.s32 %v572, %v574
  %v576 = vrot.slane %v568, %v575
  %v578 = vunpack.c.l.s4 1966171168
  %v579 = vunpack.c.0.s8 %v578
  %v580 = vlaneseq
  %v581 = vshrl.u32 %v580, 7
  %v582 = vsub.s32 %v579, %v581
  %v583 = vrot.slane %v569, %v582
  %v584 = vlaneseq
  %v585 = vshrl.u32 %v584, 7
  %v586 = vsub.s32 0, %v585
  %v587 = vrot.slane %v576, %v586
  %v588 = vlaneseq
  %v589 = vshrl.u32 %v588, 7
  %v590 = vsub.s32 0, %v589
  %v591 = vrot.slane %v583, %v590
  %v594 = vmul.f32 %v587, %v553
  %v595 = vmul.f32 %v587, %v554
  %v596 = vmul.f32 %v587, %v555
  %v597 = vmul.f32 %v587, %v556
  %v598 = vmul.f32 %v591, %v557
  %v599 = vmul.f32 %v591, %v558
  %v600 = vmul.f32 %v591, %v559
  %v601 = vmul.f32 %v591, %v560
  %v604 = vunpack.c.l.s4 1966171168
  %v605 = vunpack.c.0.s8 %v604
  %v606 = vlaneseq
  %v607 = vshrl.u32 %v606, 7
  %v608 = vsub.s32 %v605, %v607
  %v609 = vrot.slane %v503, %v608
  %v610 = vcombine.high %v609, %v609
  %v612 = vunpack.c.l.s4 1966171168
  %v613 = vunpack.c.0.s8 %v612
  %v614 = vlaneseq
  %v615 = vshrl.u32 %v614, 7
  %v616 = vsub.s32 %v613, %v615
  %v617 = vrot.slane %v609, %v616
  %v619 = vunpack.c.l.s4 1966171168
  %v620 = vunpack.c.0.s8 %v619
  %v621 = vlaneseq
  %v622 = vshrl.u32 %v621, 7
  %v623 = vsub.s32 %v620, %v622
  %v624 = vrot.slane %v610, %v623
  %v625 = vlaneseq
  %v626 = vshrl.u32 %v625, 7
  %v627 = vsub.s32 0, %v626
  %v628 = vrot.slane %v617, %v627
  %v629 = vlaneseq
  %v630 = vshrl.u32 %v629, 7
  %v631 = vsub.s32 0, %v630
  %v632 = vrot.slane %v624, %v631
  %v635 = vadd.f32 %v594, %v628
  %v636 = vadd.f32 %v595, %v628
  %v637 = vadd.f32 %v596, %v628
  %v638 = vadd.f32 %v597, %v628
  %v639 = vadd.f32 %v598, %v632
  %v640 = vadd.f32 %v599, %v632
  %v641 = vadd.f32 %v600, %v632
  %v642 = vadd.f32 %v601, %v632
  %v643 = vmax.f32 %v635, 0.0
  %v644 = vmax.f32 %v636, 0.0
  %v645 = vmax.f32 %v637, 0.0
  %v646 = vmax.f32 %v638, 0.0
  %v647 = vmax.f32 %v639, 0.0
  %v648 = vmax.f32 %v640, 0.0
  %v649 = vmax.f32 %v641, 0.0
  %v650 = vmax.f32 %v642, 0.0
  %v651 = vld [vmem:[%s7] sm:$0xff]
  %v652 = vld [vmem:[%s7 + $0x8] sm:$0xff]
  %v653 = vld [vmem:[%s7 + $0x10] sm:$0xff]
  %v654 = vld [vmem:[%s7 + $0x18] sm:$0xff]
  %v655 = vld [vmem:[%s7 + $0x20] sm:$0xff]
  %v656 = vld [vmem:[%s7 + $0x28] sm:$0xff]
  %v657 = vld [vmem:[%s7 + $0x30] sm:$0xff]
  %v658 = vld [vmem:[%s7 + $0x38] sm:$0xff]
  %v659 = vld [vmem:[%s7 + $0x40] sm:$0xff]
  %v660 = vld [vmem:[%s7 + $0x48] sm:$0xff]
  %v661 = vld [vmem:[%s7 + $0x50] sm:$0xff]
  %v662 = vld [vmem:[%s7 + $0x58] sm:$0xff]
  %v663 = vld [vmem:[%s7 + $0x60] sm:$0xff]
  %v664 = vld [vmem:[%s7 + $0x68] sm:$0xff]
  %v665 = vld [vmem:[%s7 + $0x70] sm:$0xff]
  %v666 = vld [vmem:[%s7 + $0x78] sm:$0xff]
  %v667 = vld [vmem:[%s8] sm:$0x1]
  %v669 = vlaneseq
  %v670 = vshrl.u32 %v669, 7
  %v671 = vsub.s32 0, %v670
  %v672 = vrot.slane %v667, %v671
  %674 = vmatprep.subr.mxu0 0.0
  %675 = vmatpush1.msra.mxu0 %v651
  %676 = vmatprep.subr.mxu0 0.0
  %677 = vmatpush1.msra.mxu0 %v652
  %678 = vmatprep.subr.mxu0 0.0
  %679 = vmatpush1.msra.mxu0 %v653
  %680 = vmatprep.subr.mxu0 0.0
  %681 = vmatpush1.msra.mxu0 %v654
  %682 = vmatprep.subr.mxu0 0.0
  %683 = vmatpush1.msra.mxu0 %v655
  %684 = vmatprep.subr.mxu0 0.0
  %685 = vmatpush1.msra.mxu0 %v656
  %686 = vmatprep.subr.mxu0 0.0
  %687 = vmatpush1.msra.mxu0 %v657
  %688 = vmatprep.subr.mxu0 0.0
  %689 = vmatpush1.msra.mxu0 %v658
  %690 = vmatprep.subr.mxu0 0.0
  %691 = vmatpush1.msra.mxu0 %v659
  %692 = vmatprep.subr.mxu0 0.0
  %693 = vmatpush1.msra.mxu0 %v660
  %694 = vmatprep.subr.mxu0 0.0
  %695 = vmatpush1.msra.mxu0 %v661
  %696 = vmatprep.subr.mxu0 0.0
  %697 = vmatpush1.msra.mxu0 %v662
  %698 = vmatprep.subr.mxu0 0.0
  %699 = vmatpush1.msra.mxu0 %v663
  %700 = vmatprep.subr.mxu0 0.0
  %701 = vmatpush1.msra.mxu0 %v664
  %702 = vmatprep.subr.mxu0 0.0
  %703 = vmatpush1.msra.mxu0 %v665
  %704 = vmatprep.subr.mxu0 0.0
  %705 = vmatpush1.msra.mxu0 %v666
  %706 = vmatprep.subr.mxu0 0.0
  %707 = vmatpush1.msra.mxu0 0.0
  %708 = vmatprep.subr.mxu0 0.0
  %709 = vmatpush1.msra.mxu0 0.0
  %710 = vmatprep.subr.mxu0 0.0
  %711 = vmatpush1.msra.mxu0 0.0
  %712 = vmatprep.subr.mxu0 0.0
  %713 = vmatpush1.msra.mxu0 0.0
  %714 = vmatprep.subr.mxu0 0.0
  %715 = vmatpush1.msra.mxu0 0.0
  %716 = vmatprep.subr.mxu0 0.0
  %717 = vmatpush1.msra.mxu0 0.0
  %718 = vmatprep.subr.mxu0 0.0
  %719 = vmatpush1.msra.mxu0 0.0
  %720 = vmatprep.subr.mxu0 0.0
  %721 = vmatpush1.msra.mxu0 0.0
  %722 = vmatprep.subr.mxu0 0.0
  %723 = vmatpush1.msra.mxu0 0.0
  %724 = vmatprep.subr.mxu0 0.0
  %725 = vmatpush1.msra.mxu0 0.0
  %726 = vmatprep.subr.mxu0 0.0
  %727 = vmatpush1.msra.mxu0 0.0
  %728 = vmatprep.subr.mxu0 0.0
  %729 = vmatpush1.msra.mxu0 0.0
  %730 = vmatprep.subr.mxu0 0.0
  %731 = vmatpush1.msra.mxu0 0.0
  %732 = vmatprep.subr.mxu0 0.0
  %733 = vmatpush1.msra.mxu0 0.0
  %734 = vmatprep.subr.mxu0 0.0
  %735 = vmatpush1.msra.mxu0 0.0
  %736 = vmatprep.subr.mxu0 0.0
  %737 = vmatpush1.msra.mxu0 0.0
  %738 = vmatprep.mubr.f32.mxu0 0.0
  %739 = vmatmul.mubr.f32.gmra.mrb[0].mxu0 %v643
  %v740 = vpop.f32.mrb[0].mxu0
  %v741 = vadd.f32 %v672, %v740
  %v742 = vpop.f32.mrb[0].mxu0
  %743 = vmatprep.mubr.f32.mxu0 0.0
  %744 = vmatmul.mubr.f32.gmra.mrb[0].mxu0 %v644
  %v745 = vpop.f32.mrb[0].mxu0
  %v746 = vadd.f32 %v672, %v745
  %v747 = vpop.f32.mrb[0].mxu0
  %748 = vmatprep.mubr.f32.mxu0 0.0
  %749 = vmatmul.mubr.f32.gmra.mrb[0].mxu0 %v645
  %v750 = vpop.f32.mrb[0].mxu0
  %v751 = vadd.f32 %v672, %v750
  %v752 = vpop.f32.mrb[0].mxu0
  %753 = vmatprep.mubr.f32.mxu0 0.0
  %754 = vmatmul.mubr.f32.gmra.mrb[0].mxu0 %v646
  %v755 = vpop.f32.mrb[0].mxu0
  %v756 = vadd.f32 %v672, %v755
  %v757 = vpop.f32.mrb[0].mxu0
  %758 = vmatprep.mubr.f32.mxu0 0.0
  %759 = vmatmul.mubr.f32.gmra.mrb[0].mxu0 %v647
  %v760 = vpop.f32.mrb[0].mxu0
  %v761 = vadd.f32 %v672, %v760
  %v762 = vpop.f32.mrb[0].mxu0
  %763 = vmatprep.mubr.f32.mxu0 0.0
  %764 = vmatmul.mubr.f32.gmra.mrb[0].mxu0 %v648
  %v765 = vpop.f32.mrb[0].mxu0
  %v766 = vadd.f32 %v672, %v765
  %v767 = vpop.f32.mrb[0].mxu0
  %768 = vmatprep.mubr.f32.mxu0 0.0
  %769 = vmatmul.mubr.f32.gmra.mrb[0].mxu0 %v649
  %v770 = vpop.f32.mrb[0].mxu0
  %v771 = vadd.f32 %v672, %v770
  %v772 = vpop.f32.mrb[0].mxu0
  %773 = vmatprep.mubr.f32.mxu0 0.0
  %774 = vmatmul.mubr.f32.gmra.mrb[0].mxu0 %v650
  %v775 = vpop.f32.mrb[0].mxu0
  %v776 = vadd.f32 %v672, %v775
  %v777 = vpop.f32.mrb[0].mxu0
  %778 = vdwg.mxu0
  %v779 = vadd.f32 %v214, %v741
  %v780 = vadd.f32 %v215, %v746
  %v781 = vadd.f32 %v216, %v751
  %v782 = vadd.f32 %v217, %v756
  %v783 = vadd.f32 %v218, %v761
  %v784 = vadd.f32 %v219, %v766
  %v785 = vadd.f32 %v220, %v771
  %v786 = vadd.f32 %v221, %v776
  %s787 = scalar_lea.vmem %s2, 8
  %v788 = vld [vmem:[%s787] sm:$0x3]
  %s789 = scalar_lea.vmem %s2, 10
  %v790 = vld [vmem:[%s789] sm:$0x3]
  %v791 = vadd.f32 %v779, %v780
  %v792 = vadd.f32 %v791, %v781
  %v793 = vadd.f32 %v792, %v782
  %v794 = vadd.f32 %v793, %v783
  %v795 = vadd.f32 %v794, %v784
  %v796 = vadd.f32 %v795, %v785
  %v797 = vadd.f32 %v796, %v786
  %v798 = vrot.slane %v797, 4
  %v799 = vadd.f32 %v797, %v798
  %v800 = vrot.slane %v799, 2
  %v801 = vadd.f32 %v799, %v800
  %v802 = vrot.slane %v801, 1
  %v803 = vadd.f32 %v801, %v802
  %v804 = vmul.f32 %v779, %v779
  %v805 = vmul.f32 %v780, %v780
  %v806 = vmul.f32 %v781, %v781
  %v807 = vmul.f32 %v782, %v782
  %v808 = vmul.f32 %v783, %v783
  %v809 = vmul.f32 %v784, %v784
  %v810 = vmul.f32 %v785, %v785
  %v811 = vmul.f32 %v786, %v786
  %v812 = vadd.f32 %v804, %v805
  %v813 = vadd.f32 %v812, %v806
  %v814 = vadd.f32 %v813, %v807
  %v815 = vadd.f32 %v814, %v808
  %v816 = vadd.f32 %v815, %v809
  %v817 = vadd.f32 %v816, %v810
  %v818 = vadd.f32 %v817, %v811
  %v819 = vrot.slane %v818, 4
  %v820 = vadd.f32 %v818, %v819
  %v821 = vrot.slane %v820, 2
  %v822 = vadd.f32 %v820, %v821
  %v823 = vrot.slane %v822, 1
  %v824 = vadd.f32 %v822, %v823
  %v825 = vmul.f32 %v803, 0.015625
  %v826 = vmul.f32 %v824, 0.015625
  %v827 = vmul.f32 %v825, %v825
  %v828 = vsub.f32 %v826, %v827
  %v829 = vmax.f32 %v828, 0.0
  %v830 = vsub.f32 %v779, %v825
  %v831 = vsub.f32 %v780, %v825
  %v832 = vsub.f32 %v781, %v825
  %v833 = vsub.f32 %v782, %v825
  %v834 = vsub.f32 %v783, %v825
  %v835 = vsub.f32 %v784, %v825
  %v836 = vsub.f32 %v785, %v825
  %v837 = vsub.f32 %v786, %v825
  %v838 = vadd.f32 %v829, 1e-05
  %v839 = vrsqrt.pop %v838
  %v840 = vmul.f32 %v830, %v839
  %v841 = vmul.f32 %v831, %v839
  %v842 = vmul.f32 %v832, %v839
  %v843 = vmul.f32 %v833, %v839
  %v844 = vmul.f32 %v834, %v839
  %v845 = vmul.f32 %v835, %v839
  %v846 = vmul.f32 %v836, %v839
  %v847 = vmul.f32 %v837, %v839
  %v850 = vunpack.c.l.s4 1966171168
  %v851 = vunpack.c.0.s8 %v850
  %v852 = vlaneseq
  %v853 = vshrl.u32 %v852, 7
  %v854 = vsub.s32 %v851, %v853
  %v855 = vrot.slane %v788, %v854
  %v856 = vcombine.high %v855, %v855
  %v858 = vunpack.c.l.s4 1966171168
  %v859 = vunpack.c.0.s8 %v858
  %v860 = vlaneseq
  %v861 = vshrl.u32 %v860, 7
  %v862 = vsub.s32 %v859, %v861
  %v863 = vrot.slane %v855, %v862
  %v865 = vunpack.c.l.s4 1966171168
  %v866 = vunpack.c.0.s8 %v865
  %v867 = vlaneseq
  %v868 = vshrl.u32 %v867, 7
  %v869 = vsub.s32 %v866, %v868
  %v870 = vrot.slane %v856, %v869
  %v871 = vlaneseq
  %v872 = vshrl.u32 %v871, 7
  %v873 = vsub.s32 0, %v872
  %v874 = vrot.slane %v863, %v873
  %v875 = vlaneseq
  %v876 = vshrl.u32 %v875, 7
  %v877 = vsub.s32 0, %v876
  %v878 = vrot.slane %v870, %v877
  %v881 = vmul.f32 %v874, %v840
  %v882 = vmul.f32 %v874, %v841
  %v883 = vmul.f32 %v874, %v842
  %v884 = vmul.f32 %v874, %v843
  %v885 = vmul.f32 %v878, %v844
  %v886 = vmul.f32 %v878, %v845
  %v887 = vmul.f32 %v878, %v846
  %v888 = vmul.f32 %v878, %v847
  %v891 = vunpack.c.l.s4 1966171168
  %v892 = vunpack.c.0.s8 %v891
  %v893 = vlaneseq
  %v894 = vshrl.u32 %v893, 7
  %v895 = vsub.s32 %v892, %v894
  %v896 = vrot.slane %v790, %v895
  %v897 = vcombine.high %v896, %v896
  %v899 = vunpack.c.l.s4 1966171168
  %v900 = vunpack.c.0.s8 %v899
  %v901 = vlaneseq
  %v902 = vshrl.u32 %v901, 7
  %v903 = vsub.s32 %v900, %v902
  %v904 = vrot.slane %v896, %v903
  %v906 = vunpack.c.l.s4 1966171168
  %v907 = vunpack.c.0.s8 %v906
  %v908 = vlaneseq
  %v909 = vshrl.u32 %v908, 7
  %v910 = vsub.s32 %v907, %v909
  %v911 = vrot.slane %v897, %v910
  %v912 = vlaneseq
  %v913 = vshrl.u32 %v912, 7
  %v914 = vsub.s32 0, %v913
  %v915 = vrot.slane %v904, %v914
  %v916 = vlaneseq
  %v917 = vshrl.u32 %v916, 7
  %v918 = vsub.s32 0, %v917
  %v919 = vrot.slane %v911, %v918
  %v922 = vadd.f32 %v881, %v915
  %v923 = vadd.f32 %v882, %v915
  %v924 = vadd.f32 %v883, %v915
  %v925 = vadd.f32 %v884, %v915
  %v926 = vadd.f32 %v885, %v919
  %v927 = vadd.f32 %v886, %v919
  %v928 = vadd.f32 %v887, %v919
  %v929 = vadd.f32 %v888, %v919
  %v930 = vmax.f32 %v922, 0.0
  %v931 = vmax.f32 %v923, 0.0
  %v932 = vmax.f32 %v924, 0.0
  %v933 = vmax.f32 %v925, 0.0
  %v934 = vmax.f32 %v926, 0.0
  %v935 = vmax.f32 %v927, 0.0
  %v936 = vmax.f32 %v928, 0.0
  %v937 = vmax.f32 %v929, 0.0
  %s938 = scalar_lea.vmem %s5, 128
  %v939 = vld [vmem:[%s938] sm:$0xff]
  %v940 = vld [vmem:[%s938 + $0x8] sm:$0xff]
  %v941 = vld [vmem:[%s938 + $0x10] sm:$0xff]
  %v942 = vld [vmem:[%s938 + $0x18] sm:$0xff]
  %v943 = vld [vmem:[%s938 + $0x20] sm:$0xff]
  %v944 = vld [vmem:[%s938 + $0x28] sm:$0xff]
  %v945 = vld [vmem:[%s938 + $0x30] sm:$0xff]
  %v946 = vld [vmem:[%s938 + $0x38] sm:$0xff]
  %v947 = vld [vmem:[%s938 + $0x40] sm:$0xff]
  %v948 = vld [vmem:[%s938 + $0x48] sm:$0xff]
  %v949 = vld [vmem:[%s938 + $0x50] sm:$0xff]
  %v950 = vld [vmem:[%s938 + $0x58] sm:$0xff]
  %v951 = vld [vmem:[%s938 + $0x60] sm:$0xff]
  %v952 = vld [vmem:[%s938 + $0x68] sm:$0xff]
  %v953 = vld [vmem:[%s938 + $0x70] sm:$0xff]
  %v954 = vld [vmem:[%s938 + $0x78] sm:$0xff]
  %s955 = scalar_lea.vmem %s6, 1
  %v956 = vld [vmem:[%s955] sm:$0x1]
  %v958 = vlaneseq
  %v959 = vshrl.u32 %v958, 7
  %v960 = vsub.s32 0, %v959
  %v961 = vrot.slane %v956, %v960
  %963 = vmatprep.subr.mxu0 0.0
  %964 = vmatpush1.msra.mxu0 %v939
  %965 = vmatprep.subr.mxu0 0.0
  %966 = vmatpush1.msra.mxu0 %v940
  %967 = vmatprep.subr.mxu0 0.0
  %968 = vmatpush1.msra.mxu0 %v941
  %969 = vmatprep.subr.mxu0 0.0
  %970 = vmatpush1.msra.mxu0 %v942
  %971 = vmatprep.subr.mxu0 0.0
  %972 = vmatpush1.msra.mxu0 %v943
  %973 = vmatprep.subr.mxu0 0.0
  %974 = vmatpush1.msra.mxu0 %v944
  %975 = vmatprep.subr.mxu0 0.0
  %976 = vmatpush1.msra.mxu0 %v945
  %977 = vmatprep.subr.mxu0 0.0
  %978 = vmatpush1.msra.mxu0 %v946
  %979 = vmatprep.subr.mxu0 0.0
  %980 = vmatpush1.msra.mxu0 %v947
  %981 = vmatprep.subr.mxu0 0.0
  %982 = vmatpush1.msra.mxu0 %v948
  %983 = vmatprep.subr.mxu0 0.0
  %984 = vmatpush1.msra.mxu0 %v949
  %985 = vmatprep.subr.mxu0 0.0
  %986 = vmatpush1.msra.mxu0 %v950
  %987 = vmatprep.subr.mxu0 0.0
  %988 = vmatpush1.msra.mxu0 %v951
  %989 = vmatprep.subr.mxu0 0.0
  %990 = vmatpush1.msra.mxu0 %v952
  %991 = vmatprep.subr.mxu0 0.0
  %992 = vmatpush1.msra.mxu0 %v953
  %993 = vmatprep.subr.mxu0 0.0
  %994 = vmatpush1.msra.mxu0 %v954
  %995 = vmatprep.subr.mxu0 0.0
  %996 = vmatpush1.msra.mxu0 0.0
  %997 = vmatprep.subr.mxu0 0.0
  %998 = vmatpush1.msra.mxu0 0.0
  %999 = vmatprep.subr.mxu0 0.0
  %1000 = vmatpush1.msra.mxu0 0.0
  %1001 = vmatprep.subr.mxu0 0.0
  %1002 = vmatpush1.msra.mxu0 0.0
  %1003 = vmatprep.subr.mxu0 0.0
  %1004 = vmatpush1.msra.mxu0 0.0
  %1005 = vmatprep.subr.mxu0 0.0
  %1006 = vmatpush1.msra.mxu0 0.0
  %1007 = vmatprep.subr.mxu0 0.0
  %1008 = vmatpush1.msra.mxu0 0.0
  %1009 = vmatprep.subr.mxu0 0.0
  %1010 = vmatpush1.msra.mxu0 0.0
  %1011 = vmatprep.subr.mxu0 0.0
  %1012 = vmatpush1.msra.mxu0 0.0
  %1013 = vmatprep.subr.mxu0 0.0
  %1014 = vmatpush1.msra.mxu0 0.0
  %1015 = vmatprep.subr.mxu0 0.0
  %1016 = vmatpush1.msra.mxu0 0.0
  %1017 = vmatprep.subr.mxu0 0.0
  %1018 = vmatpush1.msra.mxu0 0.0
  %1019 = vmatprep.subr.mxu0 0.0
  %1020 = vmatpush1.msra.mxu0 0.0
  %1021 = vmatprep.subr.mxu0 0.0
  %1022 = vmatpush1.msra.mxu0 0.0
  %1023 = vmatprep.subr.mxu0 0.0
  %1024 = vmatpush1.msra.mxu0 0.0
  %1025 = vmatprep.subr.mxu0 0.0
  %1026 = vmatpush1.msra.mxu0 0.0
  %1027 = vmatprep.mubr.f32.mxu0 0.0
  %1028 = vmatmul.mubr.f32.gmra.mrb[0].mxu0 %v930
  %v1029 = vpop.f32.mrb[0].mxu0
  %v1030 = vadd.f32 %v961, %v1029
  %v1031 = vpop.f32.mrb[0].mxu0
  %1032 = vmatprep.mubr.f32.mxu0 0.0
  %1033 = vmatmul.mubr.f32.gmra.mrb[0].mxu0 %v931
  %v1034 = vpop.f32.mrb[0].mxu0
  %v1035 = vadd.f32 %v961, %v1034
  %v1036 = vpop.f32.mrb[0].mxu0
  %1037 = vmatprep.mubr.f32.mxu0 0.0
  %1038 = vmatmul.mubr.f32.gmra.mrb[0].mxu0 %v932
  %v1039 = vpop.f32.mrb[0].mxu0
  %v1040 = vadd.f32 %v961, %v1039
  %v1041 = vpop.f32.mrb[0].mxu0
  %1042 = vmatprep.mubr.f32.mxu0 0.0
  %1043 = vmatmul.mubr.f32.gmra.mrb[0].mxu0 %v933
  %v1044 = vpop.f32.mrb[0].mxu0
  %v1045 = vadd.f32 %v961, %v1044
  %v1046 = vpop.f32.mrb[0].mxu0
  %1047 = vmatprep.mubr.f32.mxu0 0.0
  %1048 = vmatmul.mubr.f32.gmra.mrb[0].mxu0 %v934
  %v1049 = vpop.f32.mrb[0].mxu0
  %v1050 = vadd.f32 %v961, %v1049
  %v1051 = vpop.f32.mrb[0].mxu0
  %1052 = vmatprep.mubr.f32.mxu0 0.0
  %1053 = vmatmul.mubr.f32.gmra.mrb[0].mxu0 %v935
  %v1054 = vpop.f32.mrb[0].mxu0
  %v1055 = vadd.f32 %v961, %v1054
  %v1056 = vpop.f32.mrb[0].mxu0
  %1057 = vmatprep.mubr.f32.mxu0 0.0
  %1058 = vmatmul.mubr.f32.gmra.mrb[0].mxu0 %v936
  %v1059 = vpop.f32.mrb[0].mxu0
  %v1060 = vadd.f32 %v961, %v1059
  %v1061 = vpop.f32.mrb[0].mxu0
  %1062 = vmatprep.mubr.f32.mxu0 0.0
  %1063 = vmatmul.mubr.f32.gmra.mrb[0].mxu0 %v937
  %v1064 = vpop.f32.mrb[0].mxu0
  %v1065 = vadd.f32 %v961, %v1064
  %v1066 = vpop.f32.mrb[0].mxu0
  %1067 = vdwg.mxu0
  %s1068 = scalar_lea.vmem %s2, 12
  %v1069 = vld [vmem:[%s1068] sm:$0x3]
  %s1070 = scalar_lea.vmem %s2, 14
  %v1071 = vld [vmem:[%s1070] sm:$0x3]
  %v1072 = vadd.f32 %v1030, %v1035
  %v1073 = vadd.f32 %v1072, %v1040
  %v1074 = vadd.f32 %v1073, %v1045
  %v1075 = vadd.f32 %v1074, %v1050
  %v1076 = vadd.f32 %v1075, %v1055
  %v1077 = vadd.f32 %v1076, %v1060
  %v1078 = vadd.f32 %v1077, %v1065
  %v1079 = vrot.slane %v1078, 4
  %v1080 = vadd.f32 %v1078, %v1079
  %v1081 = vrot.slane %v1080, 2
  %v1082 = vadd.f32 %v1080, %v1081
  %v1083 = vrot.slane %v1082, 1
  %v1084 = vadd.f32 %v1082, %v1083
  %v1085 = vmul.f32 %v1030, %v1030
  %v1086 = vmul.f32 %v1035, %v1035
  %v1087 = vmul.f32 %v1040, %v1040
  %v1088 = vmul.f32 %v1045, %v1045
  %v1089 = vmul.f32 %v1050, %v1050
  %v1090 = vmul.f32 %v1055, %v1055
  %v1091 = vmul.f32 %v1060, %v1060
  %v1092 = vmul.f32 %v1065, %v1065
  %v1093 = vadd.f32 %v1085, %v1086
  %v1094 = vadd.f32 %v1093, %v1087
  %v1095 = vadd.f32 %v1094, %v1088
  %v1096 = vadd.f32 %v1095, %v1089
  %v1097 = vadd.f32 %v1096, %v1090
  %v1098 = vadd.f32 %v1097, %v1091
  %v1099 = vadd.f32 %v1098, %v1092
  %v1100 = vrot.slane %v1099, 4
  %v1101 = vadd.f32 %v1099, %v1100
  %v1102 = vrot.slane %v1101, 2
  %v1103 = vadd.f32 %v1101, %v1102
  %v1104 = vrot.slane %v1103, 1
  %v1105 = vadd.f32 %v1103, %v1104
  %v1106 = vmul.f32 %v1084, 0.015625
  %v1107 = vmul.f32 %v1105, 0.015625
  %v1108 = vmul.f32 %v1106, %v1106
  %v1109 = vsub.f32 %v1107, %v1108
  %v1110 = vmax.f32 %v1109, 0.0
  %v1111 = vsub.f32 %v1030, %v1106
  %v1112 = vsub.f32 %v1035, %v1106
  %v1113 = vsub.f32 %v1040, %v1106
  %v1114 = vsub.f32 %v1045, %v1106
  %v1115 = vsub.f32 %v1050, %v1106
  %v1116 = vsub.f32 %v1055, %v1106
  %v1117 = vsub.f32 %v1060, %v1106
  %v1118 = vsub.f32 %v1065, %v1106
  %v1119 = vadd.f32 %v1110, 1e-05
  %v1120 = vrsqrt.pop %v1119
  %v1121 = vmul.f32 %v1111, %v1120
  %v1122 = vmul.f32 %v1112, %v1120
  %v1123 = vmul.f32 %v1113, %v1120
  %v1124 = vmul.f32 %v1114, %v1120
  %v1125 = vmul.f32 %v1115, %v1120
  %v1126 = vmul.f32 %v1116, %v1120
  %v1127 = vmul.f32 %v1117, %v1120
  %v1128 = vmul.f32 %v1118, %v1120
  %v1131 = vunpack.c.l.s4 1966171168
  %v1132 = vunpack.c.0.s8 %v1131
  %v1133 = vlaneseq
  %v1134 = vshrl.u32 %v1133, 7
  %v1135 = vsub.s32 %v1132, %v1134
  %v1136 = vrot.slane %v1069, %v1135
  %v1137 = vcombine.high %v1136, %v1136
  %v1139 = vunpack.c.l.s4 1966171168
  %v1140 = vunpack.c.0.s8 %v1139
  %v1141 = vlaneseq
  %v1142 = vshrl.u32 %v1141, 7
  %v1143 = vsub.s32 %v1140, %v1142
  %v1144 = vrot.slane %v1136, %v1143
  %v1146 = vunpack.c.l.s4 1966171168
  %v1147 = vunpack.c.0.s8 %v1146
  %v1148 = vlaneseq
  %v1149 = vshrl.u32 %v1148, 7
  %v1150 = vsub.s32 %v1147, %v1149
  %v1151 = vrot.slane %v1137, %v1150
  %v1152 = vlaneseq
  %v1153 = vshrl.u32 %v1152, 7
  %v1154 = vsub.s32 0, %v1153
  %v1155 = vrot.slane %v1144, %v1154
  %v1156 = vlaneseq
  %v1157 = vshrl.u32 %v1156, 7
  %v1158 = vsub.s32 0, %v1157
  %v1159 = vrot.slane %v1151, %v1158
  %v1162 = vmul.f32 %v1155, %v1121
  %v1163 = vmul.f32 %v1155, %v1122
  %v1164 = vmul.f32 %v1155, %v1123
  %v1165 = vmul.f32 %v1155, %v1124
  %v1166 = vmul.f32 %v1159, %v1125
  %v1167 = vmul.f32 %v1159, %v1126
  %v1168 = vmul.f32 %v1159, %v1127
  %v1169 = vmul.f32 %v1159, %v1128
  %v1172 = vunpack.c.l.s4 1966171168
  %v1173 = vunpack.c.0.s8 %v1172
  %v1174 = vlaneseq
  %v1175 = vshrl.u32 %v1174, 7
  %v1176 = vsub.s32 %v1173, %v1175
  %v1177 = vrot.slane %v1071, %v1176
  %v1178 = vcombine.high %v1177, %v1177
  %v1180 = vunpack.c.l.s4 1966171168
  %v1181 = vunpack.c.0.s8 %v1180
  %v1182 = vlaneseq
  %v1183 = vshrl.u32 %v1182, 7
  %v1184 = vsub.s32 %v1181, %v1183
  %v1185 = vrot.slane %v1177, %v1184
  %v1187 = vunpack.c.l.s4 1966171168
  %v1188 = vunpack.c.0.s8 %v1187
  %v1189 = vlaneseq
  %v1190 = vshrl.u32 %v1189, 7
  %v1191 = vsub.s32 %v1188, %v1190
  %v1192 = vrot.slane %v1178, %v1191
  %v1193 = vlaneseq
  %v1194 = vshrl.u32 %v1193, 7
  %v1195 = vsub.s32 0, %v1194
  %v1196 = vrot.slane %v1185, %v1195
  %v1197 = vlaneseq
  %v1198 = vshrl.u32 %v1197, 7
  %v1199 = vsub.s32 0, %v1198
  %v1200 = vrot.slane %v1192, %v1199
  %v1203 = vadd.f32 %v1162, %v1196
  %v1204 = vadd.f32 %v1163, %v1196
  %v1205 = vadd.f32 %v1164, %v1196
  %v1206 = vadd.f32 %v1165, %v1196
  %v1207 = vadd.f32 %v1166, %v1200
  %v1208 = vadd.f32 %v1167, %v1200
  %v1209 = vadd.f32 %v1168, %v1200
  %v1210 = vadd.f32 %v1169, %v1200
  %v1211 = vmax.f32 %v1203, 0.0
  %v1212 = vmax.f32 %v1204, 0.0
  %v1213 = vmax.f32 %v1205, 0.0
  %v1214 = vmax.f32 %v1206, 0.0
  %v1215 = vmax.f32 %v1207, 0.0
  %v1216 = vmax.f32 %v1208, 0.0
  %v1217 = vmax.f32 %v1209, 0.0
  %v1218 = vmax.f32 %v1210, 0.0
  %s1219 = scalar_lea.vmem %s7, 128
  %v1220 = vld [vmem:[%s1219] sm:$0xff]
  %v1221 = vld [vmem:[%s1219 + $0x8] sm:$0xff]
  %v1222 = vld [vmem:[%s1219 + $0x10] sm:$0xff]
  %v1223 = vld [vmem:[%s1219 + $0x18] sm:$0xff]
  %v1224 = vld [vmem:[%s1219 + $0x20] sm:$0xff]
  %v1225 = vld [vmem:[%s1219 + $0x28] sm:$0xff]
  %v1226 = vld [vmem:[%s1219 + $0x30] sm:$0xff]
  %v1227 = vld [vmem:[%s1219 + $0x38] sm:$0xff]
  %v1228 = vld [vmem:[%s1219 + $0x40] sm:$0xff]
  %v1229 = vld [vmem:[%s1219 + $0x48] sm:$0xff]
  %v1230 = vld [vmem:[%s1219 + $0x50] sm:$0xff]
  %v1231 = vld [vmem:[%s1219 + $0x58] sm:$0xff]
  %v1232 = vld [vmem:[%s1219 + $0x60] sm:$0xff]
  %v1233 = vld [vmem:[%s1219 + $0x68] sm:$0xff]
  %v1234 = vld [vmem:[%s1219 + $0x70] sm:$0xff]
  %v1235 = vld [vmem:[%s1219 + $0x78] sm:$0xff]
  %s1236 = scalar_lea.vmem %s8, 1
  %v1237 = vld [vmem:[%s1236] sm:$0x1]
  %v1239 = vlaneseq
  %v1240 = vshrl.u32 %v1239, 7
  %v1241 = vsub.s32 0, %v1240
  %v1242 = vrot.slane %v1237, %v1241
  %1244 = vmatprep.subr.mxu0 0.0
  %1245 = vmatpush1.msra.mxu0 %v1220
  %1246 = vmatprep.subr.mxu0 0.0
  %1247 = vmatpush1.msra.mxu0 %v1221
  %1248 = vmatprep.subr.mxu0 0.0
  %1249 = vmatpush1.msra.mxu0 %v1222
  %1250 = vmatprep.subr.mxu0 0.0
  %1251 = vmatpush1.msra.mxu0 %v1223
  %1252 = vmatprep.subr.mxu0 0.0
  %1253 = vmatpush1.msra.mxu0 %v1224
  %1254 = vmatprep.subr.mxu0 0.0
  %1255 = vmatpush1.msra.mxu0 %v1225
  %1256 = vmatprep.subr.mxu0 0.0
  %1257 = vmatpush1.msra.mxu0 %v1226
  %1258 = vmatprep.subr.mxu0 0.0
  %1259 = vmatpush1.msra.mxu0 %v1227
  %1260 = vmatprep.subr.mxu0 0.0
  %1261 = vmatpush1.msra.mxu0 %v1228
  %1262 = vmatprep.subr.mxu0 0.0
  %1263 = vmatpush1.msra.mxu0 %v1229
  %1264 = vmatprep.subr.mxu0 0.0
  %1265 = vmatpush1.msra.mxu0 %v1230
  %1266 = vmatprep.subr.mxu0 0.0
  %1267 = vmatpush1.msra.mxu0 %v1231
  %1268 = vmatprep.subr.mxu0 0.0
  %1269 = vmatpush1.msra.mxu0 %v1232
  %1270 = vmatprep.subr.mxu0 0.0
  %1271 = vmatpush1.msra.mxu0 %v1233
  %1272 = vmatprep.subr.mxu0 0.0
  %1273 = vmatpush1.msra.mxu0 %v1234
  %1274 = vmatprep.subr.mxu0 0.0
  %1275 = vmatpush1.msra.mxu0 %v1235
  %1276 = vmatprep.subr.mxu0 0.0
  %1277 = vmatpush1.msra.mxu0 0.0
  %1278 = vmatprep.subr.mxu0 0.0
  %1279 = vmatpush1.msra.mxu0 0.0
  %1280 = vmatprep.subr.mxu0 0.0
  %1281 = vmatpush1.msra.mxu0 0.0
  %1282 = vmatprep.subr.mxu0 0.0
  %1283 = vmatpush1.msra.mxu0 0.0
  %1284 = vmatprep.subr.mxu0 0.0
  %1285 = vmatpush1.msra.mxu0 0.0
  %1286 = vmatprep.subr.mxu0 0.0
  %1287 = vmatpush1.msra.mxu0 0.0
  %1288 = vmatprep.subr.mxu0 0.0
  %1289 = vmatpush1.msra.mxu0 0.0
  %1290 = vmatprep.subr.mxu0 0.0
  %1291 = vmatpush1.msra.mxu0 0.0
  %1292 = vmatprep.subr.mxu0 0.0
  %1293 = vmatpush1.msra.mxu0 0.0
  %1294 = vmatprep.subr.mxu0 0.0
  %1295 = vmatpush1.msra.mxu0 0.0
  %1296 = vmatprep.subr.mxu0 0.0
  %1297 = vmatpush1.msra.mxu0 0.0
  %1298 = vmatprep.subr.mxu0 0.0
  %1299 = vmatpush1.msra.mxu0 0.0
  %1300 = vmatprep.subr.mxu0 0.0
  %1301 = vmatpush1.msra.mxu0 0.0
  %1302 = vmatprep.subr.mxu0 0.0
  %1303 = vmatpush1.msra.mxu0 0.0
  %1304 = vmatprep.subr.mxu0 0.0
  %1305 = vmatpush1.msra.mxu0 0.0
  %1306 = vmatprep.subr.mxu0 0.0
  %1307 = vmatpush1.msra.mxu0 0.0
  %1308 = vmatprep.mubr.f32.mxu0 0.0
  %1309 = vmatmul.mubr.f32.gmra.mrb[0].mxu0 %v1211
  %v1310 = vpop.f32.mrb[0].mxu0
  %v1311 = vadd.f32 %v1242, %v1310
  %v1312 = vpop.f32.mrb[0].mxu0
  %1313 = vmatprep.mubr.f32.mxu0 0.0
  %1314 = vmatmul.mubr.f32.gmra.mrb[0].mxu0 %v1212
  %v1315 = vpop.f32.mrb[0].mxu0
  %v1316 = vadd.f32 %v1242, %v1315
  %v1317 = vpop.f32.mrb[0].mxu0
  %1318 = vmatprep.mubr.f32.mxu0 0.0
  %1319 = vmatmul.mubr.f32.gmra.mrb[0].mxu0 %v1213
  %v1320 = vpop.f32.mrb[0].mxu0
  %v1321 = vadd.f32 %v1242, %v1320
  %v1322 = vpop.f32.mrb[0].mxu0
  %1323 = vmatprep.mubr.f32.mxu0 0.0
  %1324 = vmatmul.mubr.f32.gmra.mrb[0].mxu0 %v1214
  %v1325 = vpop.f32.mrb[0].mxu0
  %v1326 = vadd.f32 %v1242, %v1325
  %v1327 = vpop.f32.mrb[0].mxu0
  %1328 = vmatprep.mubr.f32.mxu0 0.0
  %1329 = vmatmul.mubr.f32.gmra.mrb[0].mxu0 %v1215
  %v1330 = vpop.f32.mrb[0].mxu0
  %v1331 = vadd.f32 %v1242, %v1330
  %v1332 = vpop.f32.mrb[0].mxu0
  %1333 = vmatprep.mubr.f32.mxu0 0.0
  %1334 = vmatmul.mubr.f32.gmra.mrb[0].mxu0 %v1216
  %v1335 = vpop.f32.mrb[0].mxu0
  %v1336 = vadd.f32 %v1242, %v1335
  %v1337 = vpop.f32.mrb[0].mxu0
  %1338 = vmatprep.mubr.f32.mxu0 0.0
  %1339 = vmatmul.mubr.f32.gmra.mrb[0].mxu0 %v1217
  %v1340 = vpop.f32.mrb[0].mxu0
  %v1341 = vadd.f32 %v1242, %v1340
  %v1342 = vpop.f32.mrb[0].mxu0
  %1343 = vmatprep.mubr.f32.mxu0 0.0
  %1344 = vmatmul.mubr.f32.gmra.mrb[0].mxu0 %v1218
  %v1345 = vpop.f32.mrb[0].mxu0
  %v1346 = vadd.f32 %v1242, %v1345
  %v1347 = vpop.f32.mrb[0].mxu0
  %1348 = vdwg.mxu0
  %v1349 = vadd.f32 %v779, %v1311
  %v1350 = vadd.f32 %v780, %v1316
  %v1351 = vadd.f32 %v781, %v1321
  %v1352 = vadd.f32 %v782, %v1326
  %v1353 = vadd.f32 %v783, %v1331
  %v1354 = vadd.f32 %v784, %v1336
  %v1355 = vadd.f32 %v785, %v1341
  %v1356 = vadd.f32 %v786, %v1346
  %s1357 = scalar_lea.vmem %s2, 16
  %v1358 = vld [vmem:[%s1357] sm:$0x3]
  %s1359 = scalar_lea.vmem %s2, 18
  %v1360 = vld [vmem:[%s1359] sm:$0x3]
  %v1361 = vadd.f32 %v1349, %v1350
  %v1362 = vadd.f32 %v1361, %v1351
  %v1363 = vadd.f32 %v1362, %v1352
  %v1364 = vadd.f32 %v1363, %v1353
  %v1365 = vadd.f32 %v1364, %v1354
  %v1366 = vadd.f32 %v1365, %v1355
  %v1367 = vadd.f32 %v1366, %v1356
  %v1368 = vrot.slane %v1367, 4
  %v1369 = vadd.f32 %v1367, %v1368
  %v1370 = vrot.slane %v1369, 2
  %v1371 = vadd.f32 %v1369, %v1370
  %v1372 = vrot.slane %v1371, 1
  %v1373 = vadd.f32 %v1371, %v1372
  %v1374 = vmul.f32 %v1349, %v1349
  %v1375 = vmul.f32 %v1350, %v1350
  %v1376 = vmul.f32 %v1351, %v1351
  %v1377 = vmul.f32 %v1352, %v1352
  %v1378 = vmul.f32 %v1353, %v1353
  %v1379 = vmul.f32 %v1354, %v1354
  %v1380 = vmul.f32 %v1355, %v1355
  %v1381 = vmul.f32 %v1356, %v1356
  %v1382 = vadd.f32 %v1374, %v1375
  %v1383 = vadd.f32 %v1382, %v1376
  %v1384 = vadd.f32 %v1383, %v1377
  %v1385 = vadd.f32 %v1384, %v1378
  %v1386 = vadd.f32 %v1385, %v1379
  %v1387 = vadd.f32 %v1386, %v1380
  %v1388 = vadd.f32 %v1387, %v1381
  %v1389 = vrot.slane %v1388, 4
  %v1390 = vadd.f32 %v1388, %v1389
  %v1391 = vrot.slane %v1390, 2
  %v1392 = vadd.f32 %v1390, %v1391
  %v1393 = vrot.slane %v1392, 1
  %v1394 = vadd.f32 %v1392, %v1393
  %v1395 = vmul.f32 %v1373, 0.015625
  %v1396 = vmul.f32 %v1394, 0.015625
  %v1397 = vmul.f32 %v1395, %v1395
  %v1398 = vsub.f32 %v1396, %v1397
  %v1399 = vmax.f32 %v1398, 0.0
  %v1400 = vsub.f32 %v1349, %v1395
  %v1401 = vsub.f32 %v1350, %v1395
  %v1402 = vsub.f32 %v1351, %v1395
  %v1403 = vsub.f32 %v1352, %v1395
  %v1404 = vsub.f32 %v1353, %v1395
  %v1405 = vsub.f32 %v1354, %v1395
  %v1406 = vsub.f32 %v1355, %v1395
  %v1407 = vsub.f32 %v1356, %v1395
  %v1408 = vadd.f32 %v1399, 1e-05
  %v1409 = vrsqrt.pop %v1408
  %v1410 = vmul.f32 %v1400, %v1409
  %v1411 = vmul.f32 %v1401, %v1409
  %v1412 = vmul.f32 %v1402, %v1409
  %v1413 = vmul.f32 %v1403, %v1409
  %v1414 = vmul.f32 %v1404, %v1409
  %v1415 = vmul.f32 %v1405, %v1409
  %v1416 = vmul.f32 %v1406, %v1409
  %v1417 = vmul.f32 %v1407, %v1409
  %v1420 = vunpack.c.l.s4 1966171168
  %v1421 = vunpack.c.0.s8 %v1420
  %v1422 = vlaneseq
  %v1423 = vshrl.u32 %v1422, 7
  %v1424 = vsub.s32 %v1421, %v1423
  %v1425 = vrot.slane %v1358, %v1424
  %v1426 = vcombine.high %v1425, %v1425
  %v1428 = vunpack.c.l.s4 1966171168
  %v1429 = vunpack.c.0.s8 %v1428
  %v1430 = vlaneseq
  %v1431 = vshrl.u32 %v1430, 7
  %v1432 = vsub.s32 %v1429, %v1431
  %v1433 = vrot.slane %v1425, %v1432
  %v1435 = vunpack.c.l.s4 1966171168
  %v1436 = vunpack.c.0.s8 %v1435
  %v1437 = vlaneseq
  %v1438 = vshrl.u32 %v1437, 7
  %v1439 = vsub.s32 %v1436, %v1438
  %v1440 = vrot.slane %v1426, %v1439
  %v1441 = vlaneseq
  %v1442 = vshrl.u32 %v1441, 7
  %v1443 = vsub.s32 0, %v1442
  %v1444 = vrot.slane %v1433, %v1443
  %v1445 = vlaneseq
  %v1446 = vshrl.u32 %v1445, 7
  %v1447 = vsub.s32 0, %v1446
  %v1448 = vrot.slane %v1440, %v1447
  %v1451 = vmul.f32 %v1444, %v1410
  %v1452 = vmul.f32 %v1444, %v1411
  %v1453 = vmul.f32 %v1444, %v1412
  %v1454 = vmul.f32 %v1444, %v1413
  %v1455 = vmul.f32 %v1448, %v1414
  %v1456 = vmul.f32 %v1448, %v1415
  %v1457 = vmul.f32 %v1448, %v1416
  %v1458 = vmul.f32 %v1448, %v1417
  %v1461 = vunpack.c.l.s4 1966171168
  %v1462 = vunpack.c.0.s8 %v1461
  %v1463 = vlaneseq
  %v1464 = vshrl.u32 %v1463, 7
  %v1465 = vsub.s32 %v1462, %v1464
  %v1466 = vrot.slane %v1360, %v1465
  %v1467 = vcombine.high %v1466, %v1466
  %v1469 = vunpack.c.l.s4 1966171168
  %v1470 = vunpack.c.0.s8 %v1469
  %v1471 = vlaneseq
  %v1472 = vshrl.u32 %v1471, 7
  %v1473 = vsub.s32 %v1470, %v1472
  %v1474 = vrot.slane %v1466, %v1473
  %v1476 = vunpack.c.l.s4 1966171168
  %v1477 = vunpack.c.0.s8 %v1476
  %v1478 = vlaneseq
  %v1479 = vshrl.u32 %v1478, 7
  %v1480 = vsub.s32 %v1477, %v1479
  %v1481 = vrot.slane %v1467, %v1480
  %v1482 = vlaneseq
  %v1483 = vshrl.u32 %v1482, 7
  %v1484 = vsub.s32 0, %v1483
  %v1485 = vrot.slane %v1474, %v1484
  %v1486 = vlaneseq
  %v1487 = vshrl.u32 %v1486, 7
  %v1488 = vsub.s32 0, %v1487
  %v1489 = vrot.slane %v1481, %v1488
  %v1492 = vadd.f32 %v1451, %v1485
  %v1493 = vadd.f32 %v1452, %v1485
  %v1494 = vadd.f32 %v1453, %v1485
  %v1495 = vadd.f32 %v1454, %v1485
  %v1496 = vadd.f32 %v1455, %v1489
  %v1497 = vadd.f32 %v1456, %v1489
  %v1498 = vadd.f32 %v1457, %v1489
  %v1499 = vadd.f32 %v1458, %v1489
  %v1500 = vmax.f32 %v1492, 0.0
  %v1501 = vmax.f32 %v1493, 0.0
  %v1502 = vmax.f32 %v1494, 0.0
  %v1503 = vmax.f32 %v1495, 0.0
  %v1504 = vmax.f32 %v1496, 0.0
  %v1505 = vmax.f32 %v1497, 0.0
  %v1506 = vmax.f32 %v1498, 0.0
  %v1507 = vmax.f32 %v1499, 0.0
  %s1508 = scalar_lea.vmem %s5, 256
  %v1509 = vld [vmem:[%s1508] sm:$0xff]
  %v1510 = vld [vmem:[%s1508 + $0x8] sm:$0xff]
  %v1511 = vld [vmem:[%s1508 + $0x10] sm:$0xff]
  %v1512 = vld [vmem:[%s1508 + $0x18] sm:$0xff]
  %v1513 = vld [vmem:[%s1508 + $0x20] sm:$0xff]
  %v1514 = vld [vmem:[%s1508 + $0x28] sm:$0xff]
  %v1515 = vld [vmem:[%s1508 + $0x30] sm:$0xff]
  %v1516 = vld [vmem:[%s1508 + $0x38] sm:$0xff]
  %v1517 = vld [vmem:[%s1508 + $0x40] sm:$0xff]
  %v1518 = vld [vmem:[%s1508 + $0x48] sm:$0xff]
  %v1519 = vld [vmem:[%s1508 + $0x50] sm:$0xff]
  %v1520 = vld [vmem:[%s1508 + $0x58] sm:$0xff]
  %v1521 = vld [vmem:[%s1508 + $0x60] sm:$0xff]
  %v1522 = vld [vmem:[%s1508 + $0x68] sm:$0xff]
  %v1523 = vld [vmem:[%s1508 + $0x70] sm:$0xff]
  %v1524 = vld [vmem:[%s1508 + $0x78] sm:$0xff]
  %s1525 = scalar_lea.vmem %s6, 2
  %v1526 = vld [vmem:[%s1525] sm:$0x1]
  %v1528 = vlaneseq
  %v1529 = vshrl.u32 %v1528, 7
  %v1530 = vsub.s32 0, %v1529
  %v1531 = vrot.slane %v1526, %v1530
  %1533 = vmatprep.subr.mxu0 0.0
  %1534 = vmatpush1.msra.mxu0 %v1509
  %1535 = vmatprep.subr.mxu0 0.0
  %1536 = vmatpush1.msra.mxu0 %v1510
  %1537 = vmatprep.subr.mxu0 0.0
  %1538 = vmatpush1.msra.mxu0 %v1511
  %1539 = vmatprep.subr.mxu0 0.0
  %1540 = vmatpush1.msra.mxu0 %v1512
  %1541 = vmatprep.subr.mxu0 0.0
  %1542 = vmatpush1.msra.mxu0 %v1513
  %1543 = vmatprep.subr.mxu0 0.0
  %1544 = vmatpush1.msra.mxu0 %v1514
  %1545 = vmatprep.subr.mxu0 0.0
  %1546 = vmatpush1.msra.mxu0 %v1515
  %1547 = vmatprep.subr.mxu0 0.0
  %1548 = vmatpush1.msra.mxu0 %v1516
  %1549 = vmatprep.subr.mxu0 0.0
  %1550 = vmatpush1.msra.mxu0 %v1517
  %1551 = vmatprep.subr.mxu0 0.0
  %1552 = vmatpush1.msra.mxu0 %v1518
  %1553 = vmatprep.subr.mxu0 0.0
  %1554 = vmatpush1.msra.mxu0 %v1519
  %1555 = vmatprep.subr.mxu0 0.0
  %1556 = vmatpush1.msra.mxu0 %v1520
  %1557 = vmatprep.subr.mxu0 0.0
  %1558 = vmatpush1.msra.mxu0 %v1521
  %1559 = vmatprep.subr.mxu0 0.0
  %1560 = vmatpush1.msra.mxu0 %v1522
  %1561 = vmatprep.subr.mxu0 0.0
  %1562 = vmatpush1.msra.mxu0 %v1523
  %1563 = vmatprep.subr.mxu0 0.0
  %1564 = vmatpush1.msra.mxu0 %v1524
  %1565 = vmatprep.subr.mxu0 0.0
  %1566 = vmatpush1.msra.mxu0 0.0
  %1567 = vmatprep.subr.mxu0 0.0
  %1568 = vmatpush1.msra.mxu0 0.0
  %1569 = vmatprep.subr.mxu0 0.0
  %1570 = vmatpush1.msra.mxu0 0.0
  %1571 = vmatprep.subr.mxu0 0.0
  %1572 = vmatpush1.msra.mxu0 0.0
  %1573 = vmatprep.subr.mxu0 0.0
  %1574 = vmatpush1.msra.mxu0 0.0
  %1575 = vmatprep.subr.mxu0 0.0
  %1576 = vmatpush1.msra.mxu0 0.0
  %1577 = vmatprep.subr.mxu0 0.0
  %1578 = vmatpush1.msra.mxu0 0.0
  %1579 = vmatprep.subr.mxu0 0.0
  %1580 = vmatpush1.msra.mxu0 0.0
  %1581 = vmatprep.subr.mxu0 0.0
  %1582 = vmatpush1.msra.mxu0 0.0
  %1583 = vmatprep.subr.mxu0 0.0
  %1584 = vmatpush1.msra.mxu0 0.0
  %1585 = vmatprep.subr.mxu0 0.0
  %1586 = vmatpush1.msra.mxu0 0.0
  %1587 = vmatprep.subr.mxu0 0.0
  %1588 = vmatpush1.msra.mxu0 0.0
  %1589 = vmatprep.subr.mxu0 0.0
  %1590 = vmatpush1.msra.mxu0 0.0
  %1591 = vmatprep.subr.mxu0 0.0
  %1592 = vmatpush1.msra.mxu0 0.0
  %1593 = vmatprep.subr.mxu0 0.0
  %1594 = vmatpush1.msra.mxu0 0.0
  %1595 = vmatprep.subr.mxu0 0.0
  %1596 = vmatpush1.msra.mxu0 0.0
  %1597 = vmatprep.mubr.f32.mxu0 0.0
  %1598 = vmatmul.mubr.f32.gmra.mrb[0].mxu0 %v1500
  %v1599 = vpop.f32.mrb[0].mxu0
  %v1600 = vadd.f32 %v1531, %v1599
  %v1601 = vpop.f32.mrb[0].mxu0
  %1602 = vmatprep.mubr.f32.mxu0 0.0
  %1603 = vmatmul.mubr.f32.gmra.mrb[0].mxu0 %v1501
  %v1604 = vpop.f32.mrb[0].mxu0
  %v1605 = vadd.f32 %v1531, %v1604
  %v1606 = vpop.f32.mrb[0].mxu0
  %1607 = vmatprep.mubr.f32.mxu0 0.0
  %1608 = vmatmul.mubr.f32.gmra.mrb[0].mxu0 %v1502
  %v1609 = vpop.f32.mrb[0].mxu0
  %v1610 = vadd.f32 %v1531, %v1609
  %v1611 = vpop.f32.mrb[0].mxu0
  %1612 = vmatprep.mubr.f32.mxu0 0.0
  %1613 = vmatmul.mubr.f32.gmra.mrb[0].mxu0 %v1503
  %v1614 = vpop.f32.mrb[0].mxu0
  %v1615 = vadd.f32 %v1531, %v1614
  %v1616 = vpop.f32.mrb[0].mxu0
  %1617 = vmatprep.mubr.f32.mxu0 0.0
  %1618 = vmatmul.mubr.f32.gmra.mrb[0].mxu0 %v1504
  %v1619 = vpop.f32.mrb[0].mxu0
  %v1620 = vadd.f32 %v1531, %v1619
  %v1621 = vpop.f32.mrb[0].mxu0
  %1622 = vmatprep.mubr.f32.mxu0 0.0
  %1623 = vmatmul.mubr.f32.gmra.mrb[0].mxu0 %v1505
  %v1624 = vpop.f32.mrb[0].mxu0
  %v1625 = vadd.f32 %v1531, %v1624
  %v1626 = vpop.f32.mrb[0].mxu0
  %1627 = vmatprep.mubr.f32.mxu0 0.0
  %1628 = vmatmul.mubr.f32.gmra.mrb[0].mxu0 %v1506
  %v1629 = vpop.f32.mrb[0].mxu0
  %v1630 = vadd.f32 %v1531, %v1629
  %v1631 = vpop.f32.mrb[0].mxu0
  %1632 = vmatprep.mubr.f32.mxu0 0.0
  %1633 = vmatmul.mubr.f32.gmra.mrb[0].mxu0 %v1507
  %v1634 = vpop.f32.mrb[0].mxu0
  %v1635 = vadd.f32 %v1531, %v1634
  %v1636 = vpop.f32.mrb[0].mxu0
  %1637 = vdwg.mxu0
  %s1638 = scalar_lea.vmem %s2, 20
  %v1639 = vld [vmem:[%s1638] sm:$0x3]
  %s1640 = scalar_lea.vmem %s2, 22
  %v1641 = vld [vmem:[%s1640] sm:$0x3]
  %v1642 = vadd.f32 %v1600, %v1605
  %v1643 = vadd.f32 %v1642, %v1610
  %v1644 = vadd.f32 %v1643, %v1615
  %v1645 = vadd.f32 %v1644, %v1620
  %v1646 = vadd.f32 %v1645, %v1625
  %v1647 = vadd.f32 %v1646, %v1630
  %v1648 = vadd.f32 %v1647, %v1635
  %v1649 = vrot.slane %v1648, 4
  %v1650 = vadd.f32 %v1648, %v1649
  %v1651 = vrot.slane %v1650, 2
  %v1652 = vadd.f32 %v1650, %v1651
  %v1653 = vrot.slane %v1652, 1
  %v1654 = vadd.f32 %v1652, %v1653
  %v1655 = vmul.f32 %v1600, %v1600
  %v1656 = vmul.f32 %v1605, %v1605
  %v1657 = vmul.f32 %v1610, %v1610
  %v1658 = vmul.f32 %v1615, %v1615
  %v1659 = vmul.f32 %v1620, %v1620
  %v1660 = vmul.f32 %v1625, %v1625
  %v1661 = vmul.f32 %v1630, %v1630
  %v1662 = vmul.f32 %v1635, %v1635
  %v1663 = vadd.f32 %v1655, %v1656
  %v1664 = vadd.f32 %v1663, %v1657
  %v1665 = vadd.f32 %v1664, %v1658
  %v1666 = vadd.f32 %v1665, %v1659
  %v1667 = vadd.f32 %v1666, %v1660
  %v1668 = vadd.f32 %v1667, %v1661
  %v1669 = vadd.f32 %v1668, %v1662
  %v1670 = vrot.slane %v1669, 4
  %v1671 = vadd.f32 %v1669, %v1670
  %v1672 = vrot.slane %v1671, 2
  %v1673 = vadd.f32 %v1671, %v1672
  %v1674 = vrot.slane %v1673, 1
  %v1675 = vadd.f32 %v1673, %v1674
  %v1676 = vmul.f32 %v1654, 0.015625
  %v1677 = vmul.f32 %v1675, 0.015625
  %v1678 = vmul.f32 %v1676, %v1676
  %v1679 = vsub.f32 %v1677, %v1678
  %v1680 = vmax.f32 %v1679, 0.0
  %v1681 = vsub.f32 %v1600, %v1676
  %v1682 = vsub.f32 %v1605, %v1676
  %v1683 = vsub.f32 %v1610, %v1676
  %v1684 = vsub.f32 %v1615, %v1676
  %v1685 = vsub.f32 %v1620, %v1676
  %v1686 = vsub.f32 %v1625, %v1676
  %v1687 = vsub.f32 %v1630, %v1676
  %v1688 = vsub.f32 %v1635, %v1676
  %v1689 = vadd.f32 %v1680, 1e-05
  %v1690 = vrsqrt.pop %v1689
  %v1691 = vmul.f32 %v1681, %v1690
  %v1692 = vmul.f32 %v1682, %v1690
  %v1693 = vmul.f32 %v1683, %v1690
  %v1694 = vmul.f32 %v1684, %v1690
  %v1695 = vmul.f32 %v1685, %v1690
  %v1696 = vmul.f32 %v1686, %v1690
  %v1697 = vmul.f32 %v1687, %v1690
  %v1698 = vmul.f32 %v1688, %v1690
  %v1701 = vunpack.c.l.s4 1966171168
  %v1702 = vunpack.c.0.s8 %v1701
  %v1703 = vlaneseq
  %v1704 = vshrl.u32 %v1703, 7
  %v1705 = vsub.s32 %v1702, %v1704
  %v1706 = vrot.slane %v1639, %v1705
  %v1707 = vcombine.high %v1706, %v1706
  %v1709 = vunpack.c.l.s4 1966171168
  %v1710 = vunpack.c.0.s8 %v1709
  %v1711 = vlaneseq
  %v1712 = vshrl.u32 %v1711, 7
  %v1713 = vsub.s32 %v1710, %v1712
  %v1714 = vrot.slane %v1706, %v1713
  %v1716 = vunpack.c.l.s4 1966171168
  %v1717 = vunpack.c.0.s8 %v1716
  %v1718 = vlaneseq
  %v1719 = vshrl.u32 %v1718, 7
  %v1720 = vsub.s32 %v1717, %v1719
  %v1721 = vrot.slane %v1707, %v1720
  %v1722 = vlaneseq
  %v1723 = vshrl.u32 %v1722, 7
  %v1724 = vsub.s32 0, %v1723
  %v1725 = vrot.slane %v1714, %v1724
  %v1726 = vlaneseq
  %v1727 = vshrl.u32 %v1726, 7
  %v1728 = vsub.s32 0, %v1727
  %v1729 = vrot.slane %v1721, %v1728
  %v1732 = vmul.f32 %v1725, %v1691
  %v1733 = vmul.f32 %v1725, %v1692
  %v1734 = vmul.f32 %v1725, %v1693
  %v1735 = vmul.f32 %v1725, %v1694
  %v1736 = vmul.f32 %v1729, %v1695
  %v1737 = vmul.f32 %v1729, %v1696
  %v1738 = vmul.f32 %v1729, %v1697
  %v1739 = vmul.f32 %v1729, %v1698
  %v1742 = vunpack.c.l.s4 1966171168
  %v1743 = vunpack.c.0.s8 %v1742
  %v1744 = vlaneseq
  %v1745 = vshrl.u32 %v1744, 7
  %v1746 = vsub.s32 %v1743, %v1745
  %v1747 = vrot.slane %v1641, %v1746
  %v1748 = vcombine.high %v1747, %v1747
  %v1750 = vunpack.c.l.s4 1966171168
  %v1751 = vunpack.c.0.s8 %v1750
  %v1752 = vlaneseq
  %v1753 = vshrl.u32 %v1752, 7
  %v1754 = vsub.s32 %v1751, %v1753
  %v1755 = vrot.slane %v1747, %v1754
  %v1757 = vunpack.c.l.s4 1966171168
  %v1758 = vunpack.c.0.s8 %v1757
  %v1759 = vlaneseq
  %v1760 = vshrl.u32 %v1759, 7
  %v1761 = vsub.s32 %v1758, %v1760
  %v1762 = vrot.slane %v1748, %v1761
  %v1763 = vlaneseq
  %v1764 = vshrl.u32 %v1763, 7
  %v1765 = vsub.s32 0, %v1764
  %v1766 = vrot.slane %v1755, %v1765
  %v1767 = vlaneseq
  %v1768 = vshrl.u32 %v1767, 7
  %v1769 = vsub.s32 0, %v1768
  %v1770 = vrot.slane %v1762, %v1769
  %v1773 = vadd.f32 %v1732, %v1766
  %v1774 = vadd.f32 %v1733, %v1766
  %v1775 = vadd.f32 %v1734, %v1766
  %v1776 = vadd.f32 %v1735, %v1766
  %v1777 = vadd.f32 %v1736, %v1770
  %v1778 = vadd.f32 %v1737, %v1770
  %v1779 = vadd.f32 %v1738, %v1770
  %v1780 = vadd.f32 %v1739, %v1770
  %v1781 = vmax.f32 %v1773, 0.0
  %v1782 = vmax.f32 %v1774, 0.0
  %v1783 = vmax.f32 %v1775, 0.0
  %v1784 = vmax.f32 %v1776, 0.0
  %v1785 = vmax.f32 %v1777, 0.0
  %v1786 = vmax.f32 %v1778, 0.0
  %v1787 = vmax.f32 %v1779, 0.0
  %v1788 = vmax.f32 %v1780, 0.0
  %s1789 = scalar_lea.vmem %s7, 256
  %v1790 = vld [vmem:[%s1789] sm:$0xff]
  %v1791 = vld [vmem:[%s1789 + $0x8] sm:$0xff]
  %v1792 = vld [vmem:[%s1789 + $0x10] sm:$0xff]
  %v1793 = vld [vmem:[%s1789 + $0x18] sm:$0xff]
  %v1794 = vld [vmem:[%s1789 + $0x20] sm:$0xff]
  %v1795 = vld [vmem:[%s1789 + $0x28] sm:$0xff]
  %v1796 = vld [vmem:[%s1789 + $0x30] sm:$0xff]
  %v1797 = vld [vmem:[%s1789 + $0x38] sm:$0xff]
  %v1798 = vld [vmem:[%s1789 + $0x40] sm:$0xff]
  %v1799 = vld [vmem:[%s1789 + $0x48] sm:$0xff]
  %v1800 = vld [vmem:[%s1789 + $0x50] sm:$0xff]
  %v1801 = vld [vmem:[%s1789 + $0x58] sm:$0xff]
  %v1802 = vld [vmem:[%s1789 + $0x60] sm:$0xff]
  %v1803 = vld [vmem:[%s1789 + $0x68] sm:$0xff]
  %v1804 = vld [vmem:[%s1789 + $0x70] sm:$0xff]
  %v1805 = vld [vmem:[%s1789 + $0x78] sm:$0xff]
  %s1806 = scalar_lea.vmem %s8, 2
  %v1807 = vld [vmem:[%s1806] sm:$0x1]
  %v1809 = vlaneseq
  %v1810 = vshrl.u32 %v1809, 7
  %v1811 = vsub.s32 0, %v1810
  %v1812 = vrot.slane %v1807, %v1811
  %1814 = vmatprep.subr.mxu0 0.0
  %1815 = vmatpush1.msra.mxu0 %v1790
  %1816 = vmatprep.subr.mxu0 0.0
  %1817 = vmatpush1.msra.mxu0 %v1791
  %1818 = vmatprep.subr.mxu0 0.0
  %1819 = vmatpush1.msra.mxu0 %v1792
  %1820 = vmatprep.subr.mxu0 0.0
  %1821 = vmatpush1.msra.mxu0 %v1793
  %1822 = vmatprep.subr.mxu0 0.0
  %1823 = vmatpush1.msra.mxu0 %v1794
  %1824 = vmatprep.subr.mxu0 0.0
  %1825 = vmatpush1.msra.mxu0 %v1795
  %1826 = vmatprep.subr.mxu0 0.0
  %1827 = vmatpush1.msra.mxu0 %v1796
  %1828 = vmatprep.subr.mxu0 0.0
  %1829 = vmatpush1.msra.mxu0 %v1797
  %1830 = vmatprep.subr.mxu0 0.0
  %1831 = vmatpush1.msra.mxu0 %v1798
  %1832 = vmatprep.subr.mxu0 0.0
  %1833 = vmatpush1.msra.mxu0 %v1799
  %1834 = vmatprep.subr.mxu0 0.0
  %1835 = vmatpush1.msra.mxu0 %v1800
  %1836 = vmatprep.subr.mxu0 0.0
  %1837 = vmatpush1.msra.mxu0 %v1801
  %1838 = vmatprep.subr.mxu0 0.0
  %1839 = vmatpush1.msra.mxu0 %v1802
  %1840 = vmatprep.subr.mxu0 0.0
  %1841 = vmatpush1.msra.mxu0 %v1803
  %1842 = vmatprep.subr.mxu0 0.0
  %1843 = vmatpush1.msra.mxu0 %v1804
  %1844 = vmatprep.subr.mxu0 0.0
  %1845 = vmatpush1.msra.mxu0 %v1805
  %1846 = vmatprep.subr.mxu0 0.0
  %1847 = vmatpush1.msra.mxu0 0.0
  %1848 = vmatprep.subr.mxu0 0.0
  %1849 = vmatpush1.msra.mxu0 0.0
  %1850 = vmatprep.subr.mxu0 0.0
  %1851 = vmatpush1.msra.mxu0 0.0
  %1852 = vmatprep.subr.mxu0 0.0
  %1853 = vmatpush1.msra.mxu0 0.0
  %1854 = vmatprep.subr.mxu0 0.0
  %1855 = vmatpush1.msra.mxu0 0.0
  %1856 = vmatprep.subr.mxu0 0.0
  %1857 = vmatpush1.msra.mxu0 0.0
  %1858 = vmatprep.subr.mxu0 0.0
  %1859 = vmatpush1.msra.mxu0 0.0
  %1860 = vmatprep.subr.mxu0 0.0
  %1861 = vmatpush1.msra.mxu0 0.0
  %1862 = vmatprep.subr.mxu0 0.0
  %1863 = vmatpush1.msra.mxu0 0.0
  %1864 = vmatprep.subr.mxu0 0.0
  %1865 = vmatpush1.msra.mxu0 0.0
  %1866 = vmatprep.subr.mxu0 0.0
  %1867 = vmatpush1.msra.mxu0 0.0
  %1868 = vmatprep.subr.mxu0 0.0
  %1869 = vmatpush1.msra.mxu0 0.0
  %1870 = vmatprep.subr.mxu0 0.0
  %1871 = vmatpush1.msra.mxu0 0.0
  %1872 = vmatprep.subr.mxu0 0.0
  %1873 = vmatpush1.msra.mxu0 0.0
  %1874 = vmatprep.subr.mxu0 0.0
  %1875 = vmatpush1.msra.mxu0 0.0
  %1876 = vmatprep.subr.mxu0 0.0
  %1877 = vmatpush1.msra.mxu0 0.0
  %1878 = vmatprep.mubr.f32.mxu0 0.0
  %1879 = vmatmul.mubr.f32.gmra.mrb[0].mxu0 %v1781
  %v1880 = vpop.f32.mrb[0].mxu0
  %v1881 = vadd.f32 %v1812, %v1880
  %v1882 = vpop.f32.mrb[0].mxu0
  %1883 = vmatprep.mubr.f32.mxu0 0.0
  %1884 = vmatmul.mubr.f32.gmra.mrb[0].mxu0 %v1782
  %v1885 = vpop.f32.mrb[0].mxu0
  %v1886 = vadd.f32 %v1812, %v1885
  %v1887 = vpop.f32.mrb[0].mxu0
  %1888 = vmatprep.mubr.f32.mxu0 0.0
  %1889 = vmatmul.mubr.f32.gmra.mrb[0].mxu0 %v1783
  %v1890 = vpop.f32.mrb[0].mxu0
  %v1891 = vadd.f32 %v1812, %v1890
  %v1892 = vpop.f32.mrb[0].mxu0
  %1893 = vmatprep.mubr.f32.mxu0 0.0
  %1894 = vmatmul.mubr.f32.gmra.mrb[0].mxu0 %v1784
  %v1895 = vpop.f32.mrb[0].mxu0
  %v1896 = vadd.f32 %v1812, %v1895
  %v1897 = vpop.f32.mrb[0].mxu0
  %1898 = vmatprep.mubr.f32.mxu0 0.0
  %1899 = vmatmul.mubr.f32.gmra.mrb[0].mxu0 %v1785
  %v1900 = vpop.f32.mrb[0].mxu0
  %v1901 = vadd.f32 %v1812, %v1900
  %v1902 = vpop.f32.mrb[0].mxu0
  %1903 = vmatprep.mubr.f32.mxu0 0.0
  %1904 = vmatmul.mubr.f32.gmra.mrb[0].mxu0 %v1786
  %v1905 = vpop.f32.mrb[0].mxu0
  %v1906 = vadd.f32 %v1812, %v1905
  %v1907 = vpop.f32.mrb[0].mxu0
  %1908 = vmatprep.mubr.f32.mxu0 0.0
  %1909 = vmatmul.mubr.f32.gmra.mrb[0].mxu0 %v1787
  %v1910 = vpop.f32.mrb[0].mxu0
  %v1911 = vadd.f32 %v1812, %v1910
  %v1912 = vpop.f32.mrb[0].mxu0
  %1913 = vmatprep.mubr.f32.mxu0 0.0
  %1914 = vmatmul.mubr.f32.gmra.mrb[0].mxu0 %v1788
  %v1915 = vpop.f32.mrb[0].mxu0
  %v1916 = vadd.f32 %v1812, %v1915
  %v1917 = vpop.f32.mrb[0].mxu0
  %1918 = vdwg.mxu0
  %v1919 = vadd.f32 %v1349, %v1881
  %v1920 = vadd.f32 %v1350, %v1886
  %v1921 = vadd.f32 %v1351, %v1891
  %v1922 = vadd.f32 %v1352, %v1896
  %v1923 = vadd.f32 %v1353, %v1901
  %v1924 = vadd.f32 %v1354, %v1906
  %v1925 = vadd.f32 %v1355, %v1911
  %v1926 = vadd.f32 %v1356, %v1916
  %s1927 = scalar_lea.vmem %s2, 24
  %v1928 = vld [vmem:[%s1927] sm:$0x3]
  %s1929 = scalar_lea.vmem %s2, 26
  %v1930 = vld [vmem:[%s1929] sm:$0x3]
  %v1931 = vadd.f32 %v1919, %v1920
  %v1932 = vadd.f32 %v1931, %v1921
  %v1933 = vadd.f32 %v1932, %v1922
  %v1934 = vadd.f32 %v1933, %v1923
  %v1935 = vadd.f32 %v1934, %v1924
  %v1936 = vadd.f32 %v1935, %v1925
  %v1937 = vadd.f32 %v1936, %v1926
  %v1938 = vrot.slane %v1937, 4
  %v1939 = vadd.f32 %v1937, %v1938
  %v1940 = vrot.slane %v1939, 2
  %v1941 = vadd.f32 %v1939, %v1940
  %v1942 = vrot.slane %v1941, 1
  %v1943 = vadd.f32 %v1941, %v1942
  %v1944 = vmul.f32 %v1919, %v1919
  %v1945 = vmul.f32 %v1920, %v1920
  %v1946 = vmul.f32 %v1921, %v1921
  %v1947 = vmul.f32 %v1922, %v1922
  %v1948 = vmul.f32 %v1923, %v1923
  %v1949 = vmul.f32 %v1924, %v1924
  %v1950 = vmul.f32 %v1925, %v1925
  %v1951 = vmul.f32 %v1926, %v1926
  %v1952 = vadd.f32 %v1944, %v1945
  %v1953 = vadd.f32 %v1952, %v1946
  %v1954 = vadd.f32 %v1953, %v1947
  %v1955 = vadd.f32 %v1954, %v1948
  %v1956 = vadd.f32 %v1955, %v1949
  %v1957 = vadd.f32 %v1956, %v1950
  %v1958 = vadd.f32 %v1957, %v1951
  %v1959 = vrot.slane %v1958, 4
  %v1960 = vadd.f32 %v1958, %v1959
  %v1961 = vrot.slane %v1960, 2
  %v1962 = vadd.f32 %v1960, %v1961
  %v1963 = vrot.slane %v1962, 1
  %v1964 = vadd.f32 %v1962, %v1963
  %v1965 = vmul.f32 %v1943, 0.015625
  %v1966 = vmul.f32 %v1964, 0.015625
  %v1967 = vmul.f32 %v1965, %v1965
  %v1968 = vsub.f32 %v1966, %v1967
  %v1969 = vmax.f32 %v1968, 0.0
  %v1970 = vsub.f32 %v1919, %v1965
  %v1971 = vsub.f32 %v1920, %v1965
  %v1972 = vsub.f32 %v1921, %v1965
  %v1973 = vsub.f32 %v1922, %v1965
  %v1974 = vsub.f32 %v1923, %v1965
  %v1975 = vsub.f32 %v1924, %v1965
  %v1976 = vsub.f32 %v1925, %v1965
  %v1977 = vsub.f32 %v1926, %v1965
  %v1978 = vadd.f32 %v1969, 1e-05
  %v1979 = vrsqrt.pop %v1978
  %v1980 = vmul.f32 %v1970, %v1979
  %v1981 = vmul.f32 %v1971, %v1979
  %v1982 = vmul.f32 %v1972, %v1979
  %v1983 = vmul.f32 %v1973, %v1979
  %v1984 = vmul.f32 %v1974, %v1979
  %v1985 = vmul.f32 %v1975, %v1979
  %v1986 = vmul.f32 %v1976, %v1979
  %v1987 = vmul.f32 %v1977, %v1979
  %v1990 = vunpack.c.l.s4 1966171168
  %v1991 = vunpack.c.0.s8 %v1990
  %v1992 = vlaneseq
  %v1993 = vshrl.u32 %v1992, 7
  %v1994 = vsub.s32 %v1991, %v1993
  %v1995 = vrot.slane %v1928, %v1994
  %v1996 = vcombine.high %v1995, %v1995
  %v1998 = vunpack.c.l.s4 1966171168
  %v1999 = vunpack.c.0.s8 %v1998
  %v2000 = vlaneseq
  %v2001 = vshrl.u32 %v2000, 7
  %v2002 = vsub.s32 %v1999, %v2001
  %v2003 = vrot.slane %v1995, %v2002
  %v2005 = vunpack.c.l.s4 1966171168
  %v2006 = vunpack.c.0.s8 %v2005
  %v2007 = vlaneseq
  %v2008 = vshrl.u32 %v2007, 7
  %v2009 = vsub.s32 %v2006, %v2008
  %v2010 = vrot.slane %v1996, %v2009
  %v2011 = vlaneseq
  %v2012 = vshrl.u32 %v2011, 7
  %v2013 = vsub.s32 0, %v2012
  %v2014 = vrot.slane %v2003, %v2013
  %v2015 = vlaneseq
  %v2016 = vshrl.u32 %v2015, 7
  %v2017 = vsub.s32 0, %v2016
  %v2018 = vrot.slane %v2010, %v2017
  %v2021 = vmul.f32 %v2014, %v1980
  %v2022 = vmul.f32 %v2014, %v1981
  %v2023 = vmul.f32 %v2014, %v1982
  %v2024 = vmul.f32 %v2014, %v1983
  %v2025 = vmul.f32 %v2018, %v1984
  %v2026 = vmul.f32 %v2018, %v1985
  %v2027 = vmul.f32 %v2018, %v1986
  %v2028 = vmul.f32 %v2018, %v1987
  %v2031 = vunpack.c.l.s4 1966171168
  %v2032 = vunpack.c.0.s8 %v2031
  %v2033 = vlaneseq
  %v2034 = vshrl.u32 %v2033, 7
  %v2035 = vsub.s32 %v2032, %v2034
  %v2036 = vrot.slane %v1930, %v2035
  %v2037 = vcombine.high %v2036, %v2036
  %v2039 = vunpack.c.l.s4 1966171168
  %v2040 = vunpack.c.0.s8 %v2039
  %v2041 = vlaneseq
  %v2042 = vshrl.u32 %v2041, 7
  %v2043 = vsub.s32 %v2040, %v2042
  %v2044 = vrot.slane %v2036, %v2043
  %v2046 = vunpack.c.l.s4 1966171168
  %v2047 = vunpack.c.0.s8 %v2046
  %v2048 = vlaneseq
  %v2049 = vshrl.u32 %v2048, 7
  %v2050 = vsub.s32 %v2047, %v2049
  %v2051 = vrot.slane %v2037, %v2050
  %v2052 = vlaneseq
  %v2053 = vshrl.u32 %v2052, 7
  %v2054 = vsub.s32 0, %v2053
  %v2055 = vrot.slane %v2044, %v2054
  %v2056 = vlaneseq
  %v2057 = vshrl.u32 %v2056, 7
  %v2058 = vsub.s32 0, %v2057
  %v2059 = vrot.slane %v2051, %v2058
  %v2062 = vadd.f32 %v2021, %v2055
  %v2063 = vadd.f32 %v2022, %v2055
  %v2064 = vadd.f32 %v2023, %v2055
  %v2065 = vadd.f32 %v2024, %v2055
  %v2066 = vadd.f32 %v2025, %v2059
  %v2067 = vadd.f32 %v2026, %v2059
  %v2068 = vadd.f32 %v2027, %v2059
  %v2069 = vadd.f32 %v2028, %v2059
  %v2070 = vmax.f32 %v2062, 0.0
  %v2071 = vmax.f32 %v2063, 0.0
  %v2072 = vmax.f32 %v2064, 0.0
  %v2073 = vmax.f32 %v2065, 0.0
  %v2074 = vmax.f32 %v2066, 0.0
  %v2075 = vmax.f32 %v2067, 0.0
  %v2076 = vmax.f32 %v2068, 0.0
  %v2077 = vmax.f32 %v2069, 0.0
  %s2078 = scalar_lea.vmem %s5, 384
  %v2079 = vld [vmem:[%s2078] sm:$0xff]
  %v2080 = vld [vmem:[%s2078 + $0x8] sm:$0xff]
  %v2081 = vld [vmem:[%s2078 + $0x10] sm:$0xff]
  %v2082 = vld [vmem:[%s2078 + $0x18] sm:$0xff]
  %v2083 = vld [vmem:[%s2078 + $0x20] sm:$0xff]
  %v2084 = vld [vmem:[%s2078 + $0x28] sm:$0xff]
  %v2085 = vld [vmem:[%s2078 + $0x30] sm:$0xff]
  %v2086 = vld [vmem:[%s2078 + $0x38] sm:$0xff]
  %v2087 = vld [vmem:[%s2078 + $0x40] sm:$0xff]
  %v2088 = vld [vmem:[%s2078 + $0x48] sm:$0xff]
  %v2089 = vld [vmem:[%s2078 + $0x50] sm:$0xff]
  %v2090 = vld [vmem:[%s2078 + $0x58] sm:$0xff]
  %v2091 = vld [vmem:[%s2078 + $0x60] sm:$0xff]
  %v2092 = vld [vmem:[%s2078 + $0x68] sm:$0xff]
  %v2093 = vld [vmem:[%s2078 + $0x70] sm:$0xff]
  %v2094 = vld [vmem:[%s2078 + $0x78] sm:$0xff]
  %s2095 = scalar_lea.vmem %s6, 3
  %v2096 = vld [vmem:[%s2095] sm:$0x1]
  %v2098 = vlaneseq
  %v2099 = vshrl.u32 %v2098, 7
  %v2100 = vsub.s32 0, %v2099
  %v2101 = vrot.slane %v2096, %v2100
  %2103 = vmatprep.subr.mxu0 0.0
  %2104 = vmatpush1.msra.mxu0 %v2079
  %2105 = vmatprep.subr.mxu0 0.0
  %2106 = vmatpush1.msra.mxu0 %v2080
  %2107 = vmatprep.subr.mxu0 0.0
  %2108 = vmatpush1.msra.mxu0 %v2081
  %2109 = vmatprep.subr.mxu0 0.0
  %2110 = vmatpush1.msra.mxu0 %v2082
  %2111 = vmatprep.subr.mxu0 0.0
  %2112 = vmatpush1.msra.mxu0 %v2083
  %2113 = vmatprep.subr.mxu0 0.0
  %2114 = vmatpush1.msra.mxu0 %v2084
  %2115 = vmatprep.subr.mxu0 0.0
  %2116 = vmatpush1.msra.mxu0 %v2085
  %2117 = vmatprep.subr.mxu0 0.0
  %2118 = vmatpush1.msra.mxu0 %v2086
  %2119 = vmatprep.subr.mxu0 0.0
  %2120 = vmatpush1.msra.mxu0 %v2087
  %2121 = vmatprep.subr.mxu0 0.0
  %2122 = vmatpush1.msra.mxu0 %v2088
  %2123 = vmatprep.subr.mxu0 0.0
  %2124 = vmatpush1.msra.mxu0 %v2089
  %2125 = vmatprep.subr.mxu0 0.0
  %2126 = vmatpush1.msra.mxu0 %v2090
  %2127 = vmatprep.subr.mxu0 0.0
  %2128 = vmatpush1.msra.mxu0 %v2091
  %2129 = vmatprep.subr.mxu0 0.0
  %2130 = vmatpush1.msra.mxu0 %v2092
  %2131 = vmatprep.subr.mxu0 0.0
  %2132 = vmatpush1.msra.mxu0 %v2093
  %2133 = vmatprep.subr.mxu0 0.0
  %2134 = vmatpush1.msra.mxu0 %v2094
  %2135 = vmatprep.subr.mxu0 0.0
  %2136 = vmatpush1.msra.mxu0 0.0
  %2137 = vmatprep.subr.mxu0 0.0
  %2138 = vmatpush1.msra.mxu0 0.0
  %2139 = vmatprep.subr.mxu0 0.0
  %2140 = vmatpush1.msra.mxu0 0.0
  %2141 = vmatprep.subr.mxu0 0.0
  %2142 = vmatpush1.msra.mxu0 0.0
  %2143 = vmatprep.subr.mxu0 0.0
  %2144 = vmatpush1.msra.mxu0 0.0
  %2145 = vmatprep.subr.mxu0 0.0
  %2146 = vmatpush1.msra.mxu0 0.0
  %2147 = vmatprep.subr.mxu0 0.0
  %2148 = vmatpush1.msra.mxu0 0.0
  %2149 = vmatprep.subr.mxu0 0.0
  %2150 = vmatpush1.msra.mxu0 0.0
  %2151 = vmatprep.subr.mxu0 0.0
  %2152 = vmatpush1.msra.mxu0 0.0
  %2153 = vmatprep.subr.mxu0 0.0
  %2154 = vmatpush1.msra.mxu0 0.0
  %2155 = vmatprep.subr.mxu0 0.0
  %2156 = vmatpush1.msra.mxu0 0.0
  %2157 = vmatprep.subr.mxu0 0.0
  %2158 = vmatpush1.msra.mxu0 0.0
  %2159 = vmatprep.subr.mxu0 0.0
  %2160 = vmatpush1.msra.mxu0 0.0
  %2161 = vmatprep.subr.mxu0 0.0
  %2162 = vmatpush1.msra.mxu0 0.0
  %2163 = vmatprep.subr.mxu0 0.0
  %2164 = vmatpush1.msra.mxu0 0.0
  %2165 = vmatprep.subr.mxu0 0.0
  %2166 = vmatpush1.msra.mxu0 0.0
  %2167 = vmatprep.mubr.f32.mxu0 0.0
  %2168 = vmatmul.mubr.f32.gmra.mrb[0].mxu0 %v2070
  %v2169 = vpop.f32.mrb[0].mxu0
  %v2170 = vadd.f32 %v2101, %v2169
  %v2171 = vpop.f32.mrb[0].mxu0
  %2172 = vmatprep.mubr.f32.mxu0 0.0
  %2173 = vmatmul.mubr.f32.gmra.mrb[0].mxu0 %v2071
  %v2174 = vpop.f32.mrb[0].mxu0
  %v2175 = vadd.f32 %v2101, %v2174
  %v2176 = vpop.f32.mrb[0].mxu0
  %2177 = vmatprep.mubr.f32.mxu0 0.0
  %2178 = vmatmul.mubr.f32.gmra.mrb[0].mxu0 %v2072
  %v2179 = vpop.f32.mrb[0].mxu0
  %v2180 = vadd.f32 %v2101, %v2179
  %v2181 = vpop.f32.mrb[0].mxu0
  %2182 = vmatprep.mubr.f32.mxu0 0.0
  %2183 = vmatmul.mubr.f32.gmra.mrb[0].mxu0 %v2073
  %v2184 = vpop.f32.mrb[0].mxu0
  %v2185 = vadd.f32 %v2101, %v2184
  %v2186 = vpop.f32.mrb[0].mxu0
  %2187 = vmatprep.mubr.f32.mxu0 0.0
  %2188 = vmatmul.mubr.f32.gmra.mrb[0].mxu0 %v2074
  %v2189 = vpop.f32.mrb[0].mxu0
  %v2190 = vadd.f32 %v2101, %v2189
  %v2191 = vpop.f32.mrb[0].mxu0
  %2192 = vmatprep.mubr.f32.mxu0 0.0
  %2193 = vmatmul.mubr.f32.gmra.mrb[0].mxu0 %v2075
  %v2194 = vpop.f32.mrb[0].mxu0
  %v2195 = vadd.f32 %v2101, %v2194
  %v2196 = vpop.f32.mrb[0].mxu0
  %2197 = vmatprep.mubr.f32.mxu0 0.0
  %2198 = vmatmul.mubr.f32.gmra.mrb[0].mxu0 %v2076
  %v2199 = vpop.f32.mrb[0].mxu0
  %v2200 = vadd.f32 %v2101, %v2199
  %v2201 = vpop.f32.mrb[0].mxu0
  %2202 = vmatprep.mubr.f32.mxu0 0.0
  %2203 = vmatmul.mubr.f32.gmra.mrb[0].mxu0 %v2077
  %v2204 = vpop.f32.mrb[0].mxu0
  %v2205 = vadd.f32 %v2101, %v2204
  %v2206 = vpop.f32.mrb[0].mxu0
  %2207 = vdwg.mxu0
  %s2208 = scalar_lea.vmem %s2, 28
  %v2209 = vld [vmem:[%s2208] sm:$0x3]
  %s2210 = scalar_lea.vmem %s2, 30
  %v2211 = vld [vmem:[%s2210] sm:$0x3]
  %v2212 = vadd.f32 %v2170, %v2175
  %v2213 = vadd.f32 %v2212, %v2180
  %v2214 = vadd.f32 %v2213, %v2185
  %v2215 = vadd.f32 %v2214, %v2190
  %v2216 = vadd.f32 %v2215, %v2195
  %v2217 = vadd.f32 %v2216, %v2200
  %v2218 = vadd.f32 %v2217, %v2205
  %v2219 = vrot.slane %v2218, 4
  %v2220 = vadd.f32 %v2218, %v2219
  %v2221 = vrot.slane %v2220, 2
  %v2222 = vadd.f32 %v2220, %v2221
  %v2223 = vrot.slane %v2222, 1
  %v2224 = vadd.f32 %v2222, %v2223
  %v2225 = vmul.f32 %v2170, %v2170
  %v2226 = vmul.f32 %v2175, %v2175
  %v2227 = vmul.f32 %v2180, %v2180
  %v2228 = vmul.f32 %v2185, %v2185
  %v2229 = vmul.f32 %v2190, %v2190
  %v2230 = vmul.f32 %v2195, %v2195
  %v2231 = vmul.f32 %v2200, %v2200
  %v2232 = vmul.f32 %v2205, %v2205
  %v2233 = vadd.f32 %v2225, %v2226
  %v2234 = vadd.f32 %v2233, %v2227
  %v2235 = vadd.f32 %v2234, %v2228
  %v2236 = vadd.f32 %v2235, %v2229
  %v2237 = vadd.f32 %v2236, %v2230
  %v2238 = vadd.f32 %v2237, %v2231
  %v2239 = vadd.f32 %v2238, %v2232
  %v2240 = vrot.slane %v2239, 4
  %v2241 = vadd.f32 %v2239, %v2240
  %v2242 = vrot.slane %v2241, 2
  %v2243 = vadd.f32 %v2241, %v2242
  %v2244 = vrot.slane %v2243, 1
  %v2245 = vadd.f32 %v2243, %v2244
  %v2246 = vmul.f32 %v2224, 0.015625
  %v2247 = vmul.f32 %v2245, 0.015625
  %v2248 = vmul.f32 %v2246, %v2246
  %v2249 = vsub.f32 %v2247, %v2248
  %v2250 = vmax.f32 %v2249, 0.0
  %v2251 = vsub.f32 %v2170, %v2246
  %v2252 = vsub.f32 %v2175, %v2246
  %v2253 = vsub.f32 %v2180, %v2246
  %v2254 = vsub.f32 %v2185, %v2246
  %v2255 = vsub.f32 %v2190, %v2246
  %v2256 = vsub.f32 %v2195, %v2246
  %v2257 = vsub.f32 %v2200, %v2246
  %v2258 = vsub.f32 %v2205, %v2246
  %v2259 = vadd.f32 %v2250, 1e-05
  %v2260 = vrsqrt.pop %v2259
  %v2261 = vmul.f32 %v2251, %v2260
  %v2262 = vmul.f32 %v2252, %v2260
  %v2263 = vmul.f32 %v2253, %v2260
  %v2264 = vmul.f32 %v2254, %v2260
  %v2265 = vmul.f32 %v2255, %v2260
  %v2266 = vmul.f32 %v2256, %v2260
  %v2267 = vmul.f32 %v2257, %v2260
  %v2268 = vmul.f32 %v2258, %v2260
  %v2271 = vunpack.c.l.s4 1966171168
  %v2272 = vunpack.c.0.s8 %v2271
  %v2273 = vlaneseq
  %v2274 = vshrl.u32 %v2273, 7
  %v2275 = vsub.s32 %v2272, %v2274
  %v2276 = vrot.slane %v2209, %v2275
  %v2277 = vcombine.high %v2276, %v2276
  %v2279 = vunpack.c.l.s4 1966171168
  %v2280 = vunpack.c.0.s8 %v2279
  %v2281 = vlaneseq
  %v2282 = vshrl.u32 %v2281, 7
  %v2283 = vsub.s32 %v2280, %v2282
  %v2284 = vrot.slane %v2276, %v2283
  %v2286 = vunpack.c.l.s4 1966171168
  %v2287 = vunpack.c.0.s8 %v2286
  %v2288 = vlaneseq
  %v2289 = vshrl.u32 %v2288, 7
  %v2290 = vsub.s32 %v2287, %v2289
  %v2291 = vrot.slane %v2277, %v2290
  %v2292 = vlaneseq
  %v2293 = vshrl.u32 %v2292, 7
  %v2294 = vsub.s32 0, %v2293
  %v2295 = vrot.slane %v2284, %v2294
  %v2296 = vlaneseq
  %v2297 = vshrl.u32 %v2296, 7
  %v2298 = vsub.s32 0, %v2297
  %v2299 = vrot.slane %v2291, %v2298
  %v2302 = vmul.f32 %v2295, %v2261
  %v2303 = vmul.f32 %v2295, %v2262
  %v2304 = vmul.f32 %v2295, %v2263
  %v2305 = vmul.f32 %v2295, %v2264
  %v2306 = vmul.f32 %v2299, %v2265
  %v2307 = vmul.f32 %v2299, %v2266
  %v2308 = vmul.f32 %v2299, %v2267
  %v2309 = vmul.f32 %v2299, %v2268
  %v2312 = vunpack.c.l.s4 1966171168
  %v2313 = vunpack.c.0.s8 %v2312
  %v2314 = vlaneseq
  %v2315 = vshrl.u32 %v2314, 7
  %v2316 = vsub.s32 %v2313, %v2315
  %v2317 = vrot.slane %v2211, %v2316
  %v2318 = vcombine.high %v2317, %v2317
  %v2320 = vunpack.c.l.s4 1966171168
  %v2321 = vunpack.c.0.s8 %v2320
  %v2322 = vlaneseq
  %v2323 = vshrl.u32 %v2322, 7
  %v2324 = vsub.s32 %v2321, %v2323
  %v2325 = vrot.slane %v2317, %v2324
  %v2327 = vunpack.c.l.s4 1966171168
  %v2328 = vunpack.c.0.s8 %v2327
  %v2329 = vlaneseq
  %v2330 = vshrl.u32 %v2329, 7
  %v2331 = vsub.s32 %v2328, %v2330
  %v2332 = vrot.slane %v2318, %v2331
  %v2333 = vlaneseq
  %v2334 = vshrl.u32 %v2333, 7
  %v2335 = vsub.s32 0, %v2334
  %v2336 = vrot.slane %v2325, %v2335
  %v2337 = vlaneseq
  %v2338 = vshrl.u32 %v2337, 7
  %v2339 = vsub.s32 0, %v2338
  %v2340 = vrot.slane %v2332, %v2339
  %v2343 = vadd.f32 %v2302, %v2336
  %v2344 = vadd.f32 %v2303, %v2336
  %v2345 = vadd.f32 %v2304, %v2336
  %v2346 = vadd.f32 %v2305, %v2336
  %v2347 = vadd.f32 %v2306, %v2340
  %v2348 = vadd.f32 %v2307, %v2340
  %v2349 = vadd.f32 %v2308, %v2340
  %v2350 = vadd.f32 %v2309, %v2340
  %v2351 = vmax.f32 %v2343, 0.0
  %v2352 = vmax.f32 %v2344, 0.0
  %v2353 = vmax.f32 %v2345, 0.0
  %v2354 = vmax.f32 %v2346, 0.0
  %v2355 = vmax.f32 %v2347, 0.0
  %v2356 = vmax.f32 %v2348, 0.0
  %v2357 = vmax.f32 %v2349, 0.0
  %v2358 = vmax.f32 %v2350, 0.0
  %s2359 = scalar_lea.vmem %s7, 384
  %v2360 = vld [vmem:[%s2359] sm:$0xff]
  %v2361 = vld [vmem:[%s2359 + $0x8] sm:$0xff]
  %v2362 = vld [vmem:[%s2359 + $0x10] sm:$0xff]
  %v2363 = vld [vmem:[%s2359 + $0x18] sm:$0xff]
  %v2364 = vld [vmem:[%s2359 + $0x20] sm:$0xff]
  %v2365 = vld [vmem:[%s2359 + $0x28] sm:$0xff]
  %v2366 = vld [vmem:[%s2359 + $0x30] sm:$0xff]
  %v2367 = vld [vmem:[%s2359 + $0x38] sm:$0xff]
  %v2368 = vld [vmem:[%s2359 + $0x40] sm:$0xff]
  %v2369 = vld [vmem:[%s2359 + $0x48] sm:$0xff]
  %v2370 = vld [vmem:[%s2359 + $0x50] sm:$0xff]
  %v2371 = vld [vmem:[%s2359 + $0x58] sm:$0xff]
  %v2372 = vld [vmem:[%s2359 + $0x60] sm:$0xff]
  %v2373 = vld [vmem:[%s2359 + $0x68] sm:$0xff]
  %v2374 = vld [vmem:[%s2359 + $0x70] sm:$0xff]
  %v2375 = vld [vmem:[%s2359 + $0x78] sm:$0xff]
  %s2376 = scalar_lea.vmem %s8, 3
  %v2377 = vld [vmem:[%s2376] sm:$0x1]
  %v2379 = vlaneseq
  %v2380 = vshrl.u32 %v2379, 7
  %v2381 = vsub.s32 0, %v2380
  %v2382 = vrot.slane %v2377, %v2381
  %2384 = vmatprep.subr.mxu0 0.0
  %2385 = vmatpush1.msra.mxu0 %v2360
  %2386 = vmatprep.subr.mxu0 0.0
  %2387 = vmatpush1.msra.mxu0 %v2361
  %2388 = vmatprep.subr.mxu0 0.0
  %2389 = vmatpush1.msra.mxu0 %v2362
  %2390 = vmatprep.subr.mxu0 0.0
  %2391 = vmatpush1.msra.mxu0 %v2363
  %2392 = vmatprep.subr.mxu0 0.0
  %2393 = vmatpush1.msra.mxu0 %v2364
  %2394 = vmatprep.subr.mxu0 0.0
  %2395 = vmatpush1.msra.mxu0 %v2365
  %2396 = vmatprep.subr.mxu0 0.0
  %2397 = vmatpush1.msra.mxu0 %v2366
  %2398 = vmatprep.subr.mxu0 0.0
  %2399 = vmatpush1.msra.mxu0 %v2367
  %2400 = vmatprep.subr.mxu0 0.0
  %2401 = vmatpush1.msra.mxu0 %v2368
  %2402 = vmatprep.subr.mxu0 0.0
  %2403 = vmatpush1.msra.mxu0 %v2369
  %2404 = vmatprep.subr.mxu0 0.0
  %2405 = vmatpush1.msra.mxu0 %v2370
  %2406 = vmatprep.subr.mxu0 0.0
  %2407 = vmatpush1.msra.mxu0 %v2371
  %2408 = vmatprep.subr.mxu0 0.0
  %2409 = vmatpush1.msra.mxu0 %v2372
  %2410 = vmatprep.subr.mxu0 0.0
  %2411 = vmatpush1.msra.mxu0 %v2373
  %2412 = vmatprep.subr.mxu0 0.0
  %2413 = vmatpush1.msra.mxu0 %v2374
  %2414 = vmatprep.subr.mxu0 0.0
  %2415 = vmatpush1.msra.mxu0 %v2375
  %2416 = vmatprep.subr.mxu0 0.0
  %2417 = vmatpush1.msra.mxu0 0.0
  %2418 = vmatprep.subr.mxu0 0.0
  %2419 = vmatpush1.msra.mxu0 0.0
  %2420 = vmatprep.subr.mxu0 0.0
  %2421 = vmatpush1.msra.mxu0 0.0
  %2422 = vmatprep.subr.mxu0 0.0
  %2423 = vmatpush1.msra.mxu0 0.0
  %2424 = vmatprep.subr.mxu0 0.0
  %2425 = vmatpush1.msra.mxu0 0.0
  %2426 = vmatprep.subr.mxu0 0.0
  %2427 = vmatpush1.msra.mxu0 0.0
  %2428 = vmatprep.subr.mxu0 0.0
  %2429 = vmatpush1.msra.mxu0 0.0
  %2430 = vmatprep.subr.mxu0 0.0
  %2431 = vmatpush1.msra.mxu0 0.0
  %2432 = vmatprep.subr.mxu0 0.0
  %2433 = vmatpush1.msra.mxu0 0.0
  %2434 = vmatprep.subr.mxu0 0.0
  %2435 = vmatpush1.msra.mxu0 0.0
  %2436 = vmatprep.subr.mxu0 0.0
  %2437 = vmatpush1.msra.mxu0 0.0
  %2438 = vmatprep.subr.mxu0 0.0
  %2439 = vmatpush1.msra.mxu0 0.0
  %2440 = vmatprep.subr.mxu0 0.0
  %2441 = vmatpush1.msra.mxu0 0.0
  %2442 = vmatprep.subr.mxu0 0.0
  %2443 = vmatpush1.msra.mxu0 0.0
  %2444 = vmatprep.subr.mxu0 0.0
  %2445 = vmatpush1.msra.mxu0 0.0
  %2446 = vmatprep.subr.mxu0 0.0
  %2447 = vmatpush1.msra.mxu0 0.0
  %2448 = vmatprep.mubr.f32.mxu0 0.0
  %2449 = vmatmul.mubr.f32.gmra.mrb[0].mxu0 %v2351
  %v2450 = vpop.f32.mrb[0].mxu0
  %v2451 = vadd.f32 %v2382, %v2450
  %v2452 = vpop.f32.mrb[0].mxu0
  %2453 = vmatprep.mubr.f32.mxu0 0.0
  %2454 = vmatmul.mubr.f32.gmra.mrb[0].mxu0 %v2352
  %v2455 = vpop.f32.mrb[0].mxu0
  %v2456 = vadd.f32 %v2382, %v2455
  %v2457 = vpop.f32.mrb[0].mxu0
  %2458 = vmatprep.mubr.f32.mxu0 0.0
  %2459 = vmatmul.mubr.f32.gmra.mrb[0].mxu0 %v2353
  %v2460 = vpop.f32.mrb[0].mxu0
  %v2461 = vadd.f32 %v2382, %v2460
  %v2462 = vpop.f32.mrb[0].mxu0
  %2463 = vmatprep.mubr.f32.mxu0 0.0
  %2464 = vmatmul.mubr.f32.gmra.mrb[0].mxu0 %v2354
  %v2465 = vpop.f32.mrb[0].mxu0
  %v2466 = vadd.f32 %v2382, %v2465
  %v2467 = vpop.f32.mrb[0].mxu0
  %2468 = vmatprep.mubr.f32.mxu0 0.0
  %2469 = vmatmul.mubr.f32.gmra.mrb[0].mxu0 %v2355
  %v2470 = vpop.f32.mrb[0].mxu0
  %v2471 = vadd.f32 %v2382, %v2470
  %v2472 = vpop.f32.mrb[0].mxu0
  %2473 = vmatprep.mubr.f32.mxu0 0.0
  %2474 = vmatmul.mubr.f32.gmra.mrb[0].mxu0 %v2356
  %v2475 = vpop.f32.mrb[0].mxu0
  %v2476 = vadd.f32 %v2382, %v2475
  %v2477 = vpop.f32.mrb[0].mxu0
  %2478 = vmatprep.mubr.f32.mxu0 0.0
  %2479 = vmatmul.mubr.f32.gmra.mrb[0].mxu0 %v2357
  %v2480 = vpop.f32.mrb[0].mxu0
  %v2481 = vadd.f32 %v2382, %v2480
  %v2482 = vpop.f32.mrb[0].mxu0
  %2483 = vmatprep.mubr.f32.mxu0 0.0
  %2484 = vmatmul.mubr.f32.gmra.mrb[0].mxu0 %v2358
  %v2485 = vpop.f32.mrb[0].mxu0
  %v2486 = vadd.f32 %v2382, %v2485
  %v2487 = vpop.f32.mrb[0].mxu0
  %2488 = vdwg.mxu0
  %v2489 = vadd.f32 %v1919, %v2451
  %v2490 = vadd.f32 %v1920, %v2456
  %v2491 = vadd.f32 %v1921, %v2461
  %v2492 = vadd.f32 %v1922, %v2466
  %v2493 = vadd.f32 %v1923, %v2471
  %v2494 = vadd.f32 %v1924, %v2476
  %v2495 = vadd.f32 %v1925, %v2481
  %v2496 = vadd.f32 %v1926, %v2486
  %s2497 = scalar_lea.vmem %s2, 32
  %v2498 = vld [vmem:[%s2497] sm:$0x3]
  %s2499 = scalar_lea.vmem %s2, 34
  %v2500 = vld [vmem:[%s2499] sm:$0x3]
  %v2501 = vadd.f32 %v2489, %v2490
  %v2502 = vadd.f32 %v2501, %v2491
  %v2503 = vadd.f32 %v2502, %v2492
  %v2504 = vadd.f32 %v2503, %v2493
  %v2505 = vadd.f32 %v2504, %v2494
  %v2506 = vadd.f32 %v2505, %v2495
  %v2507 = vadd.f32 %v2506, %v2496
  %v2508 = vrot.slane %v2507, 4
  %v2509 = vadd.f32 %v2507, %v2508
  %v2510 = vrot.slane %v2509, 2
  %v2511 = vadd.f32 %v2509, %v2510
  %v2512 = vrot.slane %v2511, 1
  %v2513 = vadd.f32 %v2511, %v2512
  %v2514 = vmul.f32 %v2489, %v2489
  %v2515 = vmul.f32 %v2490, %v2490
  %v2516 = vmul.f32 %v2491, %v2491
  %v2517 = vmul.f32 %v2492, %v2492
  %v2518 = vmul.f32 %v2493, %v2493
  %v2519 = vmul.f32 %v2494, %v2494
  %v2520 = vmul.f32 %v2495, %v2495
  %v2521 = vmul.f32 %v2496, %v2496
  %v2522 = vadd.f32 %v2514, %v2515
  %v2523 = vadd.f32 %v2522, %v2516
  %v2524 = vadd.f32 %v2523, %v2517
  %v2525 = vadd.f32 %v2524, %v2518
  %v2526 = vadd.f32 %v2525, %v2519
  %v2527 = vadd.f32 %v2526, %v2520
  %v2528 = vadd.f32 %v2527, %v2521
  %v2529 = vrot.slane %v2528, 4
  %v2530 = vadd.f32 %v2528, %v2529
  %v2531 = vrot.slane %v2530, 2
  %v2532 = vadd.f32 %v2530, %v2531
  %v2533 = vrot.slane %v2532, 1
  %v2534 = vadd.f32 %v2532, %v2533
  %v2535 = vmul.f32 %v2513, 0.015625
  %v2536 = vmul.f32 %v2534, 0.015625
  %v2537 = vmul.f32 %v2535, %v2535
  %v2538 = vsub.f32 %v2536, %v2537
  %v2539 = vmax.f32 %v2538, 0.0
  %v2540 = vsub.f32 %v2489, %v2535
  %v2541 = vsub.f32 %v2490, %v2535
  %v2542 = vsub.f32 %v2491, %v2535
  %v2543 = vsub.f32 %v2492, %v2535
  %v2544 = vsub.f32 %v2493, %v2535
  %v2545 = vsub.f32 %v2494, %v2535
  %v2546 = vsub.f32 %v2495, %v2535
  %v2547 = vsub.f32 %v2496, %v2535
  %v2548 = vadd.f32 %v2539, 1e-05
  %v2549 = vrsqrt.pop %v2548
  %v2550 = vmul.f32 %v2540, %v2549
  %v2551 = vmul.f32 %v2541, %v2549
  %v2552 = vmul.f32 %v2542, %v2549
  %v2553 = vmul.f32 %v2543, %v2549
  %v2554 = vmul.f32 %v2544, %v2549
  %v2555 = vmul.f32 %v2545, %v2549
  %v2556 = vmul.f32 %v2546, %v2549
  %v2557 = vmul.f32 %v2547, %v2549
  %v2560 = vunpack.c.l.s4 1966171168
  %v2561 = vunpack.c.0.s8 %v2560
  %v2562 = vlaneseq
  %v2563 = vshrl.u32 %v2562, 7
  %v2564 = vsub.s32 %v2561, %v2563
  %v2565 = vrot.slane %v2498, %v2564
  %v2566 = vcombine.high %v2565, %v2565
  %v2568 = vunpack.c.l.s4 1966171168
  %v2569 = vunpack.c.0.s8 %v2568
  %v2570 = vlaneseq
  %v2571 = vshrl.u32 %v2570, 7
  %v2572 = vsub.s32 %v2569, %v2571
  %v2573 = vrot.slane %v2565, %v2572
  %v2575 = vunpack.c.l.s4 1966171168
  %v2576 = vunpack.c.0.s8 %v2575
  %v2577 = vlaneseq
  %v2578 = vshrl.u32 %v2577, 7
  %v2579 = vsub.s32 %v2576, %v2578
  %v2580 = vrot.slane %v2566, %v2579
  %v2581 = vlaneseq
  %v2582 = vshrl.u32 %v2581, 7
  %v2583 = vsub.s32 0, %v2582
  %v2584 = vrot.slane %v2573, %v2583
  %v2585 = vlaneseq
  %v2586 = vshrl.u32 %v2585, 7
  %v2587 = vsub.s32 0, %v2586
  %v2588 = vrot.slane %v2580, %v2587
  %v2591 = vmul.f32 %v2584, %v2550
  %v2592 = vmul.f32 %v2584, %v2551
  %v2593 = vmul.f32 %v2584, %v2552
  %v2594 = vmul.f32 %v2584, %v2553
  %v2595 = vmul.f32 %v2588, %v2554
  %v2596 = vmul.f32 %v2588, %v2555
  %v2597 = vmul.f32 %v2588, %v2556
  %v2598 = vmul.f32 %v2588, %v2557
  %v2601 = vunpack.c.l.s4 1966171168
  %v2602 = vunpack.c.0.s8 %v2601
  %v2603 = vlaneseq
  %v2604 = vshrl.u32 %v2603, 7
  %v2605 = vsub.s32 %v2602, %v2604
  %v2606 = vrot.slane %v2500, %v2605
  %v2607 = vcombine.high %v2606, %v2606
  %v2609 = vunpack.c.l.s4 1966171168
  %v2610 = vunpack.c.0.s8 %v2609
  %v2611 = vlaneseq
  %v2612 = vshrl.u32 %v2611, 7
  %v2613 = vsub.s32 %v2610, %v2612
  %v2614 = vrot.slane %v2606, %v2613
  %v2616 = vunpack.c.l.s4 1966171168
  %v2617 = vunpack.c.0.s8 %v2616
  %v2618 = vlaneseq
  %v2619 = vshrl.u32 %v2618, 7
  %v2620 = vsub.s32 %v2617, %v2619
  %v2621 = vrot.slane %v2607, %v2620
  %v2622 = vlaneseq
  %v2623 = vshrl.u32 %v2622, 7
  %v2624 = vsub.s32 0, %v2623
  %v2625 = vrot.slane %v2614, %v2624
  %v2626 = vlaneseq
  %v2627 = vshrl.u32 %v2626, 7
  %v2628 = vsub.s32 0, %v2627
  %v2629 = vrot.slane %v2621, %v2628
  %v2632 = vadd.f32 %v2591, %v2625
  %v2633 = vadd.f32 %v2592, %v2625
  %v2634 = vadd.f32 %v2593, %v2625
  %v2635 = vadd.f32 %v2594, %v2625
  %v2636 = vadd.f32 %v2595, %v2629
  %v2637 = vadd.f32 %v2596, %v2629
  %v2638 = vadd.f32 %v2597, %v2629
  %v2639 = vadd.f32 %v2598, %v2629
  %v2640 = vmax.f32 %v2632, 0.0
  %v2641 = vmax.f32 %v2633, 0.0
  %v2642 = vmax.f32 %v2634, 0.0
  %v2643 = vmax.f32 %v2635, 0.0
  %v2644 = vmax.f32 %v2636, 0.0
  %v2645 = vmax.f32 %v2637, 0.0
  %v2646 = vmax.f32 %v2638, 0.0
  %v2647 = vmax.f32 %v2639, 0.0
  %s2648 = scalar_lea.vmem %s5, 512
  %v2649 = vld [vmem:[%s2648] sm:$0xff]
  %v2650 = vld [vmem:[%s2648 + $0x8] sm:$0xff]
  %v2651 = vld [vmem:[%s2648 + $0x10] sm:$0xff]
  %v2652 = vld [vmem:[%s2648 + $0x18] sm:$0xff]
  %v2653 = vld [vmem:[%s2648 + $0x20] sm:$0xff]
  %v2654 = vld [vmem:[%s2648 + $0x28] sm:$0xff]
  %v2655 = vld [vmem:[%s2648 + $0x30] sm:$0xff]
  %v2656 = vld [vmem:[%s2648 + $0x38] sm:$0xff]
  %v2657 = vld [vmem:[%s2648 + $0x40] sm:$0xff]
  %v2658 = vld [vmem:[%s2648 + $0x48] sm:$0xff]
  %v2659 = vld [vmem:[%s2648 + $0x50] sm:$0xff]
  %v2660 = vld [vmem:[%s2648 + $0x58] sm:$0xff]
  %v2661 = vld [vmem:[%s2648 + $0x60] sm:$0xff]
  %v2662 = vld [vmem:[%s2648 + $0x68] sm:$0xff]
  %v2663 = vld [vmem:[%s2648 + $0x70] sm:$0xff]
  %v2664 = vld [vmem:[%s2648 + $0x78] sm:$0xff]
  %s2665 = scalar_lea.vmem %s6, 4
  %v2666 = vld [vmem:[%s2665] sm:$0x1]
  %v2668 = vlaneseq
  %v2669 = vshrl.u32 %v2668, 7
  %v2670 = vsub.s32 0, %v2669
  %v2671 = vrot.slane %v2666, %v2670
  %2673 = vmatprep.subr.mxu0 0.0
  %2674 = vmatpush1.msra.mxu0 %v2649
  %2675 = vmatprep.subr.mxu0 0.0
  %2676 = vmatpush1.msra.mxu0 %v2650
  %2677 = vmatprep.subr.mxu0 0.0
  %2678 = vmatpush1.msra.mxu0 %v2651
  %2679 = vmatprep.subr.mxu0 0.0
  %2680 = vmatpush1.msra.mxu0 %v2652
  %2681 = vmatprep.subr.mxu0 0.0
  %2682 = vmatpush1.msra.mxu0 %v2653
  %2683 = vmatprep.subr.mxu0 0.0
  %2684 = vmatpush1.msra.mxu0 %v2654
  %2685 = vmatprep.subr.mxu0 0.0
  %2686 = vmatpush1.msra.mxu0 %v2655
  %2687 = vmatprep.subr.mxu0 0.0
  %2688 = vmatpush1.msra.mxu0 %v2656
  %2689 = vmatprep.subr.mxu0 0.0
  %2690 = vmatpush1.msra.mxu0 %v2657
  %2691 = vmatprep.subr.mxu0 0.0
  %2692 = vmatpush1.msra.mxu0 %v2658
  %2693 = vmatprep.subr.mxu0 0.0
  %2694 = vmatpush1.msra.mxu0 %v2659
  %2695 = vmatprep.subr.mxu0 0.0
  %2696 = vmatpush1.msra.mxu0 %v2660
  %2697 = vmatprep.subr.mxu0 0.0
  %2698 = vmatpush1.msra.mxu0 %v2661
  %2699 = vmatprep.subr.mxu0 0.0
  %2700 = vmatpush1.msra.mxu0 %v2662
  %2701 = vmatprep.subr.mxu0 0.0
  %2702 = vmatpush1.msra.mxu0 %v2663
  %2703 = vmatprep.subr.mxu0 0.0
  %2704 = vmatpush1.msra.mxu0 %v2664
  %2705 = vmatprep.subr.mxu0 0.0
  %2706 = vmatpush1.msra.mxu0 0.0
  %2707 = vmatprep.subr.mxu0 0.0
  %2708 = vmatpush1.msra.mxu0 0.0
  %2709 = vmatprep.subr.mxu0 0.0
  %2710 = vmatpush1.msra.mxu0 0.0
  %2711 = vmatprep.subr.mxu0 0.0
  %2712 = vmatpush1.msra.mxu0 0.0
  %2713 = vmatprep.subr.mxu0 0.0
  %2714 = vmatpush1.msra.mxu0 0.0
  %2715 = vmatprep.subr.mxu0 0.0
  %2716 = vmatpush1.msra.mxu0 0.0
  %2717 = vmatprep.subr.mxu0 0.0
  %2718 = vmatpush1.msra.mxu0 0.0
  %2719 = vmatprep.subr.mxu0 0.0
  %2720 = vmatpush1.msra.mxu0 0.0
  %2721 = vmatprep.subr.mxu0 0.0
  %2722 = vmatpush1.msra.mxu0 0.0
  %2723 = vmatprep.subr.mxu0 0.0
  %2724 = vmatpush1.msra.mxu0 0.0
  %2725 = vmatprep.subr.mxu0 0.0
  %2726 = vmatpush1.msra.mxu0 0.0
  %2727 = vmatprep.subr.mxu0 0.0
  %2728 = vmatpush1.msra.mxu0 0.0
  %2729 = vmatprep.subr.mxu0 0.0
  %2730 = vmatpush1.msra.mxu0 0.0
  %2731 = vmatprep.subr.mxu0 0.0
  %2732 = vmatpush1.msra.mxu0 0.0
  %2733 = vmatprep.subr.mxu0 0.0
  %2734 = vmatpush1.msra.mxu0 0.0
  %2735 = vmatprep.subr.mxu0 0.0
  %2736 = vmatpush1.msra.mxu0 0.0
  %2737 = vmatprep.mubr.f32.mxu0 0.0
  %2738 = vmatmul.mubr.f32.gmra.mrb[0].mxu0 %v2640
  %v2739 = vpop.f32.mrb[0].mxu0
  %v2740 = vadd.f32 %v2671, %v2739
  %v2741 = vpop.f32.mrb[0].mxu0
  %2742 = vmatprep.mubr.f32.mxu0 0.0
  %2743 = vmatmul.mubr.f32.gmra.mrb[0].mxu0 %v2641
  %v2744 = vpop.f32.mrb[0].mxu0
  %v2745 = vadd.f32 %v2671, %v2744
  %v2746 = vpop.f32.mrb[0].mxu0
  %2747 = vmatprep.mubr.f32.mxu0 0.0
  %2748 = vmatmul.mubr.f32.gmra.mrb[0].mxu0 %v2642
  %v2749 = vpop.f32.mrb[0].mxu0
  %v2750 = vadd.f32 %v2671, %v2749
  %v2751 = vpop.f32.mrb[0].mxu0
  %2752 = vmatprep.mubr.f32.mxu0 0.0
  %2753 = vmatmul.mubr.f32.gmra.mrb[0].mxu0 %v2643
  %v2754 = vpop.f32.mrb[0].mxu0
  %v2755 = vadd.f32 %v2671, %v2754
  %v2756 = vpop.f32.mrb[0].mxu0
  %2757 = vmatprep.mubr.f32.mxu0 0.0
  %2758 = vmatmul.mubr.f32.gmra.mrb[0].mxu0 %v2644
  %v2759 = vpop.f32.mrb[0].mxu0
  %v2760 = vadd.f32 %v2671, %v2759
  %v2761 = vpop.f32.mrb[0].mxu0
  %2762 = vmatprep.mubr.f32.mxu0 0.0
  %2763 = vmatmul.mubr.f32.gmra.mrb[0].mxu0 %v2645
  %v2764 = vpop.f32.mrb[0].mxu0
  %v2765 = vadd.f32 %v2671, %v2764
  %v2766 = vpop.f32.mrb[0].mxu0
  %2767 = vmatprep.mubr.f32.mxu0 0.0
  %2768 = vmatmul.mubr.f32.gmra.mrb[0].mxu0 %v2646
  %v2769 = vpop.f32.mrb[0].mxu0
  %v2770 = vadd.f32 %v2671, %v2769
  %v2771 = vpop.f32.mrb[0].mxu0
  %2772 = vmatprep.mubr.f32.mxu0 0.0
  %2773 = vmatmul.mubr.f32.gmra.mrb[0].mxu0 %v2647
  %v2774 = vpop.f32.mrb[0].mxu0
  %v2775 = vadd.f32 %v2671, %v2774
  %v2776 = vpop.f32.mrb[0].mxu0
  %2777 = vdwg.mxu0
  %s2778 = scalar_lea.vmem %s2, 36
  %v2779 = vld [vmem:[%s2778] sm:$0x3]
  %s2780 = scalar_lea.vmem %s2, 38
  %v2781 = vld [vmem:[%s2780] sm:$0x3]
  %v2782 = vadd.f32 %v2740, %v2745
  %v2783 = vadd.f32 %v2782, %v2750
  %v2784 = vadd.f32 %v2783, %v2755
  %v2785 = vadd.f32 %v2784, %v2760
  %v2786 = vadd.f32 %v2785, %v2765
  %v2787 = vadd.f32 %v2786, %v2770
  %v2788 = vadd.f32 %v2787, %v2775
  %v2789 = vrot.slane %v2788, 4
  %v2790 = vadd.f32 %v2788, %v2789
  %v2791 = vrot.slane %v2790, 2
  %v2792 = vadd.f32 %v2790, %v2791
  %v2793 = vrot.slane %v2792, 1
  %v2794 = vadd.f32 %v2792, %v2793
  %v2795 = vmul.f32 %v2740, %v2740
  %v2796 = vmul.f32 %v2745, %v2745
  %v2797 = vmul.f32 %v2750, %v2750
  %v2798 = vmul.f32 %v2755, %v2755
  %v2799 = vmul.f32 %v2760, %v2760
  %v2800 = vmul.f32 %v2765, %v2765
  %v2801 = vmul.f32 %v2770, %v2770
  %v2802 = vmul.f32 %v2775, %v2775
  %v2803 = vadd.f32 %v2795, %v2796
  %v2804 = vadd.f32 %v2803, %v2797
  %v2805 = vadd.f32 %v2804, %v2798
  %v2806 = vadd.f32 %v2805, %v2799
  %v2807 = vadd.f32 %v2806, %v2800
  %v2808 = vadd.f32 %v2807, %v2801
  %v2809 = vadd.f32 %v2808, %v2802
  %v2810 = vrot.slane %v2809, 4
  %v2811 = vadd.f32 %v2809, %v2810
  %v2812 = vrot.slane %v2811, 2
  %v2813 = vadd.f32 %v2811, %v2812
  %v2814 = vrot.slane %v2813, 1
  %v2815 = vadd.f32 %v2813, %v2814
  %v2816 = vmul.f32 %v2794, 0.015625
  %v2817 = vmul.f32 %v2815, 0.015625
  %v2818 = vmul.f32 %v2816, %v2816
  %v2819 = vsub.f32 %v2817, %v2818
  %v2820 = vmax.f32 %v2819, 0.0
  %v2821 = vsub.f32 %v2740, %v2816
  %v2822 = vsub.f32 %v2745, %v2816
  %v2823 = vsub.f32 %v2750, %v2816
  %v2824 = vsub.f32 %v2755, %v2816
  %v2825 = vsub.f32 %v2760, %v2816
  %v2826 = vsub.f32 %v2765, %v2816
  %v2827 = vsub.f32 %v2770, %v2816
  %v2828 = vsub.f32 %v2775, %v2816
  %v2829 = vadd.f32 %v2820, 1e-05
  %v2830 = vrsqrt.pop %v2829
  %v2831 = vmul.f32 %v2821, %v2830
  %v2832 = vmul.f32 %v2822, %v2830
  %v2833 = vmul.f32 %v2823, %v2830
  %v2834 = vmul.f32 %v2824, %v2830
  %v2835 = vmul.f32 %v2825, %v2830
  %v2836 = vmul.f32 %v2826, %v2830
  %v2837 = vmul.f32 %v2827, %v2830
  %v2838 = vmul.f32 %v2828, %v2830
  %v2841 = vunpack.c.l.s4 1966171168
  %v2842 = vunpack.c.0.s8 %v2841
  %v2843 = vlaneseq
  %v2844 = vshrl.u32 %v2843, 7
  %v2845 = vsub.s32 %v2842, %v2844
  %v2846 = vrot.slane %v2779, %v2845
  %v2847 = vcombine.high %v2846, %v2846
  %v2849 = vunpack.c.l.s4 1966171168
  %v2850 = vunpack.c.0.s8 %v2849
  %v2851 = vlaneseq
  %v2852 = vshrl.u32 %v2851, 7
  %v2853 = vsub.s32 %v2850, %v2852
  %v2854 = vrot.slane %v2846, %v2853
  %v2856 = vunpack.c.l.s4 1966171168
  %v2857 = vunpack.c.0.s8 %v2856
  %v2858 = vlaneseq
  %v2859 = vshrl.u32 %v2858, 7
  %v2860 = vsub.s32 %v2857, %v2859
  %v2861 = vrot.slane %v2847, %v2860
  %v2862 = vlaneseq
  %v2863 = vshrl.u32 %v2862, 7
  %v2864 = vsub.s32 0, %v2863
  %v2865 = vrot.slane %v2854, %v2864
  %v2866 = vlaneseq
  %v2867 = vshrl.u32 %v2866, 7
  %v2868 = vsub.s32 0, %v2867
  %v2869 = vrot.slane %v2861, %v2868
  %v2872 = vmul.f32 %v2865, %v2831
  %v2873 = vmul.f32 %v2865, %v2832
  %v2874 = vmul.f32 %v2865, %v2833
  %v2875 = vmul.f32 %v2865, %v2834
  %v2876 = vmul.f32 %v2869, %v2835
  %v2877 = vmul.f32 %v2869, %v2836
  %v2878 = vmul.f32 %v2869, %v2837
  %v2879 = vmul.f32 %v2869, %v2838
  %v2882 = vunpack.c.l.s4 1966171168
  %v2883 = vunpack.c.0.s8 %v2882
  %v2884 = vlaneseq
  %v2885 = vshrl.u32 %v2884, 7
  %v2886 = vsub.s32 %v2883, %v2885
  %v2887 = vrot.slane %v2781, %v2886
  %v2888 = vcombine.high %v2887, %v2887
  %v2890 = vunpack.c.l.s4 1966171168
  %v2891 = vunpack.c.0.s8 %v2890
  %v2892 = vlaneseq
  %v2893 = vshrl.u32 %v2892, 7
  %v2894 = vsub.s32 %v2891, %v2893
  %v2895 = vrot.slane %v2887, %v2894
  %v2897 = vunpack.c.l.s4 1966171168
  %v2898 = vunpack.c.0.s8 %v2897
  %v2899 = vlaneseq
  %v2900 = vshrl.u32 %v2899, 7
  %v2901 = vsub.s32 %v2898, %v2900
  %v2902 = vrot.slane %v2888, %v2901
  %v2903 = vlaneseq
  %v2904 = vshrl.u32 %v2903, 7
  %v2905 = vsub.s32 0, %v2904
  %v2906 = vrot.slane %v2895, %v2905
  %v2907 = vlaneseq
  %v2908 = vshrl.u32 %v2907, 7
  %v2909 = vsub.s32 0, %v2908
  %v2910 = vrot.slane %v2902, %v2909
  %v2913 = vadd.f32 %v2872, %v2906
  %v2914 = vadd.f32 %v2873, %v2906
  %v2915 = vadd.f32 %v2874, %v2906
  %v2916 = vadd.f32 %v2875, %v2906
  %v2917 = vadd.f32 %v2876, %v2910
  %v2918 = vadd.f32 %v2877, %v2910
  %v2919 = vadd.f32 %v2878, %v2910
  %v2920 = vadd.f32 %v2879, %v2910
  %v2921 = vmax.f32 %v2913, 0.0
  %v2922 = vmax.f32 %v2914, 0.0
  %v2923 = vmax.f32 %v2915, 0.0
  %v2924 = vmax.f32 %v2916, 0.0
  %v2925 = vmax.f32 %v2917, 0.0
  %v2926 = vmax.f32 %v2918, 0.0
  %v2927 = vmax.f32 %v2919, 0.0
  %v2928 = vmax.f32 %v2920, 0.0
  %s2929 = scalar_lea.vmem %s7, 512
  %v2930 = vld [vmem:[%s2929] sm:$0xff]
  %v2931 = vld [vmem:[%s2929 + $0x8] sm:$0xff]
  %v2932 = vld [vmem:[%s2929 + $0x10] sm:$0xff]
  %v2933 = vld [vmem:[%s2929 + $0x18] sm:$0xff]
  %v2934 = vld [vmem:[%s2929 + $0x20] sm:$0xff]
  %v2935 = vld [vmem:[%s2929 + $0x28] sm:$0xff]
  %v2936 = vld [vmem:[%s2929 + $0x30] sm:$0xff]
  %v2937 = vld [vmem:[%s2929 + $0x38] sm:$0xff]
  %v2938 = vld [vmem:[%s2929 + $0x40] sm:$0xff]
  %v2939 = vld [vmem:[%s2929 + $0x48] sm:$0xff]
  %v2940 = vld [vmem:[%s2929 + $0x50] sm:$0xff]
  %v2941 = vld [vmem:[%s2929 + $0x58] sm:$0xff]
  %v2942 = vld [vmem:[%s2929 + $0x60] sm:$0xff]
  %v2943 = vld [vmem:[%s2929 + $0x68] sm:$0xff]
  %v2944 = vld [vmem:[%s2929 + $0x70] sm:$0xff]
  %v2945 = vld [vmem:[%s2929 + $0x78] sm:$0xff]
  %s2946 = scalar_lea.vmem %s8, 4
  %v2947 = vld [vmem:[%s2946] sm:$0x1]
  %v2949 = vlaneseq
  %v2950 = vshrl.u32 %v2949, 7
  %v2951 = vsub.s32 0, %v2950
  %v2952 = vrot.slane %v2947, %v2951
  %2954 = vmatprep.subr.mxu0 0.0
  %2955 = vmatpush1.msra.mxu0 %v2930
  %2956 = vmatprep.subr.mxu0 0.0
  %2957 = vmatpush1.msra.mxu0 %v2931
  %2958 = vmatprep.subr.mxu0 0.0
  %2959 = vmatpush1.msra.mxu0 %v2932
  %2960 = vmatprep.subr.mxu0 0.0
  %2961 = vmatpush1.msra.mxu0 %v2933
  %2962 = vmatprep.subr.mxu0 0.0
  %2963 = vmatpush1.msra.mxu0 %v2934
  %2964 = vmatprep.subr.mxu0 0.0
  %2965 = vmatpush1.msra.mxu0 %v2935
  %2966 = vmatprep.subr.mxu0 0.0
  %2967 = vmatpush1.msra.mxu0 %v2936
  %2968 = vmatprep.subr.mxu0 0.0
  %2969 = vmatpush1.msra.mxu0 %v2937
  %2970 = vmatprep.subr.mxu0 0.0
  %2971 = vmatpush1.msra.mxu0 %v2938
  %2972 = vmatprep.subr.mxu0 0.0
  %2973 = vmatpush1.msra.mxu0 %v2939
  %2974 = vmatprep.subr.mxu0 0.0
  %2975 = vmatpush1.msra.mxu0 %v2940
  %2976 = vmatprep.subr.mxu0 0.0
  %2977 = vmatpush1.msra.mxu0 %v2941
  %2978 = vmatprep.subr.mxu0 0.0
  %2979 = vmatpush1.msra.mxu0 %v2942
  %2980 = vmatprep.subr.mxu0 0.0
  %2981 = vmatpush1.msra.mxu0 %v2943
  %2982 = vmatprep.subr.mxu0 0.0
  %2983 = vmatpush1.msra.mxu0 %v2944
  %2984 = vmatprep.subr.mxu0 0.0
  %2985 = vmatpush1.msra.mxu0 %v2945
  %2986 = vmatprep.subr.mxu0 0.0
  %2987 = vmatpush1.msra.mxu0 0.0
  %2988 = vmatprep.subr.mxu0 0.0
  %2989 = vmatpush1.msra.mxu0 0.0
  %2990 = vmatprep.subr.mxu0 0.0
  %2991 = vmatpush1.msra.mxu0 0.0
  %2992 = vmatprep.subr.mxu0 0.0
  %2993 = vmatpush1.msra.mxu0 0.0
  %2994 = vmatprep.subr.mxu0 0.0
  %2995 = vmatpush1.msra.mxu0 0.0
  %2996 = vmatprep.subr.mxu0 0.0
  %2997 = vmatpush1.msra.mxu0 0.0
  %2998 = vmatprep.subr.mxu0 0.0
  %2999 = vmatpush1.msra.mxu0 0.0
  %3000 = vmatprep.subr.mxu0 0.0
  %3001 = vmatpush1.msra.mxu0 0.0
  %3002 = vmatprep.subr.mxu0 0.0
  %3003 = vmatpush1.msra.mxu0 0.0
  %3004 = vmatprep.subr.mxu0 0.0
  %3005 = vmatpush1.msra.mxu0 0.0
  %3006 = vmatprep.subr.mxu0 0.0
  %3007 = vmatpush1.msra.mxu0 0.0
  %3008 = vmatprep.subr.mxu0 0.0
  %3009 = vmatpush1.msra.mxu0 0.0
  %3010 = vmatprep.subr.mxu0 0.0
  %3011 = vmatpush1.msra.mxu0 0.0
  %3012 = vmatprep.subr.mxu0 0.0
  %3013 = vmatpush1.msra.mxu0 0.0
  %3014 = vmatprep.subr.mxu0 0.0
  %3015 = vmatpush1.msra.mxu0 0.0
  %3016 = vmatprep.subr.mxu0 0.0
  %3017 = vmatpush1.msra.mxu0 0.0
  %3018 = vmatprep.mubr.f32.mxu0 0.0
  %3019 = vmatmul.mubr.f32.gmra.mrb[0].mxu0 %v2921
  %v3020 = vpop.f32.mrb[0].mxu0
  %v3021 = vadd.f32 %v2952, %v3020
  %v3022 = vpop.f32.mrb[0].mxu0
  %3023 = vmatprep.mubr.f32.mxu0 0.0
  %3024 = vmatmul.mubr.f32.gmra.mrb[0].mxu0 %v2922
  %v3025 = vpop.f32.mrb[0].mxu0
  %v3026 = vadd.f32 %v2952, %v3025
  %v3027 = vpop.f32.mrb[0].mxu0
  %3028 = vmatprep.mubr.f32.mxu0 0.0
  %3029 = vmatmul.mubr.f32.gmra.mrb[0].mxu0 %v2923
  %v3030 = vpop.f32.mrb[0].mxu0
  %v3031 = vadd.f32 %v2952, %v3030
  %v3032 = vpop.f32.mrb[0].mxu0
  %3033 = vmatprep.mubr.f32.mxu0 0.0
  %3034 = vmatmul.mubr.f32.gmra.mrb[0].mxu0 %v2924
  %v3035 = vpop.f32.mrb[0].mxu0
  %v3036 = vadd.f32 %v2952, %v3035
  %v3037 = vpop.f32.mrb[0].mxu0
  %3038 = vmatprep.mubr.f32.mxu0 0.0
  %3039 = vmatmul.mubr.f32.gmra.mrb[0].mxu0 %v2925
  %v3040 = vpop.f32.mrb[0].mxu0
  %v3041 = vadd.f32 %v2952, %v3040
  %v3042 = vpop.f32.mrb[0].mxu0
  %3043 = vmatprep.mubr.f32.mxu0 0.0
  %3044 = vmatmul.mubr.f32.gmra.mrb[0].mxu0 %v2926
  %v3045 = vpop.f32.mrb[0].mxu0
  %v3046 = vadd.f32 %v2952, %v3045
  %v3047 = vpop.f32.mrb[0].mxu0
  %3048 = vmatprep.mubr.f32.mxu0 0.0
  %3049 = vmatmul.mubr.f32.gmra.mrb[0].mxu0 %v2927
  %v3050 = vpop.f32.mrb[0].mxu0
  %v3051 = vadd.f32 %v2952, %v3050
  %v3052 = vpop.f32.mrb[0].mxu0
  %3053 = vmatprep.mubr.f32.mxu0 0.0
  %3054 = vmatmul.mubr.f32.gmra.mrb[0].mxu0 %v2928
  %v3055 = vpop.f32.mrb[0].mxu0
  %v3056 = vadd.f32 %v2952, %v3055
  %v3057 = vpop.f32.mrb[0].mxu0
  %3058 = vdwg.mxu0
  %v3059 = vadd.f32 %v2489, %v3021
  %v3060 = vadd.f32 %v2490, %v3026
  %v3061 = vadd.f32 %v2491, %v3031
  %v3062 = vadd.f32 %v2492, %v3036
  %v3063 = vadd.f32 %v2493, %v3041
  %v3064 = vadd.f32 %v2494, %v3046
  %v3065 = vadd.f32 %v2495, %v3051
  %v3066 = vadd.f32 %v2496, %v3056
  %s3067 = scalar_lea.vmem %s2, 40
  %v3068 = vld [vmem:[%s3067] sm:$0x3]
  %s3069 = scalar_lea.vmem %s2, 42
  %v3070 = vld [vmem:[%s3069] sm:$0x3]
  %v3071 = vadd.f32 %v3059, %v3060
  %v3072 = vadd.f32 %v3071, %v3061
  %v3073 = vadd.f32 %v3072, %v3062
  %v3074 = vadd.f32 %v3073, %v3063
  %v3075 = vadd.f32 %v3074, %v3064
  %v3076 = vadd.f32 %v3075, %v3065
  %v3077 = vadd.f32 %v3076, %v3066
  %v3078 = vrot.slane %v3077, 4
  %v3079 = vadd.f32 %v3077, %v3078
  %v3080 = vrot.slane %v3079, 2
  %v3081 = vadd.f32 %v3079, %v3080
  %v3082 = vrot.slane %v3081, 1
  %v3083 = vadd.f32 %v3081, %v3082
  %v3084 = vmul.f32 %v3059, %v3059
  %v3085 = vmul.f32 %v3060, %v3060
  %v3086 = vmul.f32 %v3061, %v3061
  %v3087 = vmul.f32 %v3062, %v3062
  %v3088 = vmul.f32 %v3063, %v3063
  %v3089 = vmul.f32 %v3064, %v3064
  %v3090 = vmul.f32 %v3065, %v3065
  %v3091 = vmul.f32 %v3066, %v3066
  %v3092 = vadd.f32 %v3084, %v3085
  %v3093 = vadd.f32 %v3092, %v3086
  %v3094 = vadd.f32 %v3093, %v3087
  %v3095 = vadd.f32 %v3094, %v3088
  %v3096 = vadd.f32 %v3095, %v3089
  %v3097 = vadd.f32 %v3096, %v3090
  %v3098 = vadd.f32 %v3097, %v3091
  %v3099 = vrot.slane %v3098, 4
  %v3100 = vadd.f32 %v3098, %v3099
  %v3101 = vrot.slane %v3100, 2
  %v3102 = vadd.f32 %v3100, %v3101
  %v3103 = vrot.slane %v3102, 1
  %v3104 = vadd.f32 %v3102, %v3103
  %v3105 = vmul.f32 %v3083, 0.015625
  %v3106 = vmul.f32 %v3104, 0.015625
  %v3107 = vmul.f32 %v3105, %v3105
  %v3108 = vsub.f32 %v3106, %v3107
  %v3109 = vmax.f32 %v3108, 0.0
  %v3110 = vsub.f32 %v3059, %v3105
  %v3111 = vsub.f32 %v3060, %v3105
  %v3112 = vsub.f32 %v3061, %v3105
  %v3113 = vsub.f32 %v3062, %v3105
  %v3114 = vsub.f32 %v3063, %v3105
  %v3115 = vsub.f32 %v3064, %v3105
  %v3116 = vsub.f32 %v3065, %v3105
  %v3117 = vsub.f32 %v3066, %v3105
  %v3118 = vadd.f32 %v3109, 1e-05
  %v3119 = vrsqrt.pop %v3118
  %v3120 = vmul.f32 %v3110, %v3119
  %v3121 = vmul.f32 %v3111, %v3119
  %v3122 = vmul.f32 %v3112, %v3119
  %v3123 = vmul.f32 %v3113, %v3119
  %v3124 = vmul.f32 %v3114, %v3119
  %v3125 = vmul.f32 %v3115, %v3119
  %v3126 = vmul.f32 %v3116, %v3119
  %v3127 = vmul.f32 %v3117, %v3119
  %v3130 = vunpack.c.l.s4 1966171168
  %v3131 = vunpack.c.0.s8 %v3130
  %v3132 = vlaneseq
  %v3133 = vshrl.u32 %v3132, 7
  %v3134 = vsub.s32 %v3131, %v3133
  %v3135 = vrot.slane %v3068, %v3134
  %v3136 = vcombine.high %v3135, %v3135
  %v3138 = vunpack.c.l.s4 1966171168
  %v3139 = vunpack.c.0.s8 %v3138
  %v3140 = vlaneseq
  %v3141 = vshrl.u32 %v3140, 7
  %v3142 = vsub.s32 %v3139, %v3141
  %v3143 = vrot.slane %v3135, %v3142
  %v3145 = vunpack.c.l.s4 1966171168
  %v3146 = vunpack.c.0.s8 %v3145
  %v3147 = vlaneseq
  %v3148 = vshrl.u32 %v3147, 7
  %v3149 = vsub.s32 %v3146, %v3148
  %v3150 = vrot.slane %v3136, %v3149
  %v3151 = vlaneseq
  %v3152 = vshrl.u32 %v3151, 7
  %v3153 = vsub.s32 0, %v3152
  %v3154 = vrot.slane %v3143, %v3153
  %v3155 = vlaneseq
  %v3156 = vshrl.u32 %v3155, 7
  %v3157 = vsub.s32 0, %v3156
  %v3158 = vrot.slane %v3150, %v3157
  %v3161 = vmul.f32 %v3154, %v3120
  %v3162 = vmul.f32 %v3154, %v3121
  %v3163 = vmul.f32 %v3154, %v3122
  %v3164 = vmul.f32 %v3154, %v3123
  %v3165 = vmul.f32 %v3158, %v3124
  %v3166 = vmul.f32 %v3158, %v3125
  %v3167 = vmul.f32 %v3158, %v3126
  %v3168 = vmul.f32 %v3158, %v3127
  %v3171 = vunpack.c.l.s4 1966171168
  %v3172 = vunpack.c.0.s8 %v3171
  %v3173 = vlaneseq
  %v3174 = vshrl.u32 %v3173, 7
  %v3175 = vsub.s32 %v3172, %v3174
  %v3176 = vrot.slane %v3070, %v3175
  %v3177 = vcombine.high %v3176, %v3176
  %v3179 = vunpack.c.l.s4 1966171168
  %v3180 = vunpack.c.0.s8 %v3179
  %v3181 = vlaneseq
  %v3182 = vshrl.u32 %v3181, 7
  %v3183 = vsub.s32 %v3180, %v3182
  %v3184 = vrot.slane %v3176, %v3183
  %v3186 = vunpack.c.l.s4 1966171168
  %v3187 = vunpack.c.0.s8 %v3186
  %v3188 = vlaneseq
  %v3189 = vshrl.u32 %v3188, 7
  %v3190 = vsub.s32 %v3187, %v3189
  %v3191 = vrot.slane %v3177, %v3190
  %v3192 = vlaneseq
  %v3193 = vshrl.u32 %v3192, 7
  %v3194 = vsub.s32 0, %v3193
  %v3195 = vrot.slane %v3184, %v3194
  %v3196 = vlaneseq
  %v3197 = vshrl.u32 %v3196, 7
  %v3198 = vsub.s32 0, %v3197
  %v3199 = vrot.slane %v3191, %v3198
  %v3202 = vadd.f32 %v3161, %v3195
  %v3203 = vadd.f32 %v3162, %v3195
  %v3204 = vadd.f32 %v3163, %v3195
  %v3205 = vadd.f32 %v3164, %v3195
  %v3206 = vadd.f32 %v3165, %v3199
  %v3207 = vadd.f32 %v3166, %v3199
  %v3208 = vadd.f32 %v3167, %v3199
  %v3209 = vadd.f32 %v3168, %v3199
  %v3210 = vmax.f32 %v3202, 0.0
  %v3211 = vmax.f32 %v3203, 0.0
  %v3212 = vmax.f32 %v3204, 0.0
  %v3213 = vmax.f32 %v3205, 0.0
  %v3214 = vmax.f32 %v3206, 0.0
  %v3215 = vmax.f32 %v3207, 0.0
  %v3216 = vmax.f32 %v3208, 0.0
  %v3217 = vmax.f32 %v3209, 0.0
  %v3218 = vld [vmem:[%s9] sm:$0xff]
  %v3219 = vld [vmem:[%s9 + $0x8] sm:$0xff]
  %v3220 = vld [vmem:[%s9 + $0x10] sm:$0xff]
  %v3221 = vld [vmem:[%s9 + $0x18] sm:$0xff]
  %v3222 = vld [vmem:[%s9 + $0x20] sm:$0xff]
  %v3223 = vld [vmem:[%s9 + $0x28] sm:$0xff]
  %v3224 = vld [vmem:[%s9 + $0x30] sm:$0xff]
  %v3225 = vld [vmem:[%s9 + $0x38] sm:$0xff]
  %v3226 = vld [vmem:[%s9 + $0x40] sm:$0xff]
  %v3227 = vld [vmem:[%s9 + $0x48] sm:$0xff]
  %v3228 = vld [vmem:[%s9 + $0x50] sm:$0xff]
  %v3229 = vld [vmem:[%s9 + $0x58] sm:$0xff]
  %v3230 = vld [vmem:[%s9 + $0x60] sm:$0xff]
  %v3231 = vld [vmem:[%s9 + $0x68] sm:$0xff]
  %v3232 = vld [vmem:[%s9 + $0x70] sm:$0xff]
  %v3233 = vld [vmem:[%s9 + $0x78] sm:$0xff]
  %v3234 = vld [vmem:[%s10] sm:$0x1]
  %v3236 = vlaneseq
  %v3237 = vshrl.u32 %v3236, 7
  %v3238 = vsub.s32 0, %v3237
  %v3239 = vrot.slane %v3234, %v3238
  %3241 = vmatprep.subr.mxu0 0.0
  %3242 = vmatpush1.msra.mxu0 %v3218
  %3243 = vmatprep.subr.mxu0 0.0
  %3244 = vmatpush1.msra.mxu0 %v3219
  %3245 = vmatprep.subr.mxu0 0.0
  %3246 = vmatpush1.msra.mxu0 %v3220
  %3247 = vmatprep.subr.mxu0 0.0
  %3248 = vmatpush1.msra.mxu0 %v3221
  %3249 = vmatprep.subr.mxu0 0.0
  %3250 = vmatpush1.msra.mxu0 %v3222
  %3251 = vmatprep.subr.mxu0 0.0
  %3252 = vmatpush1.msra.mxu0 %v3223
  %3253 = vmatprep.subr.mxu0 0.0
  %3254 = vmatpush1.msra.mxu0 %v3224
  %3255 = vmatprep.subr.mxu0 0.0
  %3256 = vmatpush1.msra.mxu0 %v3225
  %3257 = vmatprep.subr.mxu0 0.0
  %3258 = vmatpush1.msra.mxu0 %v3226
  %3259 = vmatprep.subr.mxu0 0.0
  %3260 = vmatpush1.msra.mxu0 %v3227
  %3261 = vmatprep.subr.mxu0 0.0
  %3262 = vmatpush1.msra.mxu0 %v3228
  %3263 = vmatprep.subr.mxu0 0.0
  %3264 = vmatpush1.msra.mxu0 %v3229
  %3265 = vmatprep.subr.mxu0 0.0
  %3266 = vmatpush1.msra.mxu0 %v3230
  %3267 = vmatprep.subr.mxu0 0.0
  %3268 = vmatpush1.msra.mxu0 %v3231
  %3269 = vmatprep.subr.mxu0 0.0
  %3270 = vmatpush1.msra.mxu0 %v3232
  %3271 = vmatprep.subr.mxu0 0.0
  %3272 = vmatpush1.msra.mxu0 %v3233
  %3273 = vmatprep.subr.mxu0 0.0
  %3274 = vmatpush1.msra.mxu0 0.0
  %3275 = vmatprep.subr.mxu0 0.0
  %3276 = vmatpush1.msra.mxu0 0.0
  %3277 = vmatprep.subr.mxu0 0.0
  %3278 = vmatpush1.msra.mxu0 0.0
  %3279 = vmatprep.subr.mxu0 0.0
  %3280 = vmatpush1.msra.mxu0 0.0
  %3281 = vmatprep.subr.mxu0 0.0
  %3282 = vmatpush1.msra.mxu0 0.0
  %3283 = vmatprep.subr.mxu0 0.0
  %3284 = vmatpush1.msra.mxu0 0.0
  %3285 = vmatprep.subr.mxu0 0.0
  %3286 = vmatpush1.msra.mxu0 0.0
  %3287 = vmatprep.subr.mxu0 0.0
  %3288 = vmatpush1.msra.mxu0 0.0
  %3289 = vmatprep.subr.mxu0 0.0
  %3290 = vmatpush1.msra.mxu0 0.0
  %3291 = vmatprep.subr.mxu0 0.0
  %3292 = vmatpush1.msra.mxu0 0.0
  %3293 = vmatprep.subr.mxu0 0.0
  %3294 = vmatpush1.msra.mxu0 0.0
  %3295 = vmatprep.subr.mxu0 0.0
  %3296 = vmatpush1.msra.mxu0 0.0
  %3297 = vmatprep.subr.mxu0 0.0
  %3298 = vmatpush1.msra.mxu0 0.0
  %3299 = vmatprep.subr.mxu0 0.0
  %3300 = vmatpush1.msra.mxu0 0.0
  %3301 = vmatprep.subr.mxu0 0.0
  %3302 = vmatpush1.msra.mxu0 0.0
  %3303 = vmatprep.subr.mxu0 0.0
  %3304 = vmatpush1.msra.mxu0 0.0
  %3305 = vmatprep.mubr.f32.mxu0 0.0
  %3306 = vmatmul.mubr.f32.gmra.mrb[0].mxu0 %v3210
  %v3307 = vpop.f32.mrb[0].mxu0
  %v3308 = vadd.f32 %v3239, %v3307
  %v3309 = vpop.f32.mrb[0].mxu0
  %3310 = vmatprep.mubr.f32.mxu0 0.0
  %3311 = vmatmul.mubr.f32.gmra.mrb[0].mxu0 %v3211
  %v3312 = vpop.f32.mrb[0].mxu0
  %v3313 = vadd.f32 %v3239, %v3312
  %v3314 = vpop.f32.mrb[0].mxu0
  %3315 = vmatprep.mubr.f32.mxu0 0.0
  %3316 = vmatmul.mubr.f32.gmra.mrb[0].mxu0 %v3212
  %v3317 = vpop.f32.mrb[0].mxu0
  %v3318 = vadd.f32 %v3239, %v3317
  %v3319 = vpop.f32.mrb[0].mxu0
  %3320 = vmatprep.mubr.f32.mxu0 0.0
  %3321 = vmatmul.mubr.f32.gmra.mrb[0].mxu0 %v3213
  %v3322 = vpop.f32.mrb[0].mxu0
  %v3323 = vadd.f32 %v3239, %v3322
  %v3324 = vpop.f32.mrb[0].mxu0
  %3325 = vmatprep.mubr.f32.mxu0 0.0
  %3326 = vmatmul.mubr.f32.gmra.mrb[0].mxu0 %v3214
  %v3327 = vpop.f32.mrb[0].mxu0
  %v3328 = vadd.f32 %v3239, %v3327
  %v3329 = vpop.f32.mrb[0].mxu0
  %3330 = vmatprep.mubr.f32.mxu0 0.0
  %3331 = vmatmul.mubr.f32.gmra.mrb[0].mxu0 %v3215
  %v3332 = vpop.f32.mrb[0].mxu0
  %v3333 = vadd.f32 %v3239, %v3332
  %v3334 = vpop.f32.mrb[0].mxu0
  %3335 = vmatprep.mubr.f32.mxu0 0.0
  %3336 = vmatmul.mubr.f32.gmra.mrb[0].mxu0 %v3216
  %v3337 = vpop.f32.mrb[0].mxu0
  %v3338 = vadd.f32 %v3239, %v3337
  %v3339 = vpop.f32.mrb[0].mxu0
  %3340 = vmatprep.mubr.f32.mxu0 0.0
  %3341 = vmatmul.mubr.f32.gmra.mrb[0].mxu0 %v3217
  %v3342 = vpop.f32.mrb[0].mxu0
  %v3343 = vadd.f32 %v3239, %v3342
  %v3344 = vpop.f32.mrb[0].mxu0
  %3345 = vdwg.mxu0
  %3346 = vst [vmem:[%s11] sm:$0xff] %v3308
  %3347 = vst [vmem:[%s11 + $0x8] sm:$0xff] %v3313
  %3348 = vst [vmem:[%s11 + $0x10] sm:$0xff] %v3318
  %3349 = vst [vmem:[%s11 + $0x18] sm:$0xff] %v3323
  %3350 = vst [vmem:[%s11 + $0x20] sm:$0xff] %v3328
  %3351 = vst [vmem:[%s11 + $0x28] sm:$0xff] %v3333
  %3352 = vst [vmem:[%s11 + $0x30] sm:$0xff] %v3338
  %3353 = vst [vmem:[%s11 + $0x38] sm:$0xff] %v3343
  // Predicated region
  $region46: #{decoder_cbn_forward.1} parent=0 // pred_check
    _
  $region47: #{decoder_cbn_forward.1} parent=0 // pred_check_branch
    %3355 = sbr.rel (0) target = $region49
  $region48: #{decoder_cbn_forward.1} parent=0 // pred_region
    _
  $region49: #{decoder_cbn_forward.1} parent=0 // pred_fallthru
    _
  // Predicated region
  $region50: #{decoder_cbn_forward.1} parent=0 // pred_check
    _
  $region51: #{decoder_cbn_forward.1} parent=0 // pred_check_branch
    %3357 = sbr.rel (0) target = $region53
  $region52: #{decoder_cbn_forward.1} parent=0 // pred_region
    _
  $region53: #{decoder_cbn_forward.1} parent=0 // pred_fallthru
    _

</llo_original>
